<compile_context>
chip_gen: v5e
topology: v5e:2x2
jax: 0.10.0
libtpu: 0.0.40
codegen_flags: <defaults>
</compile_context>

<pallas_src>
import jax
import jax.numpy as jnp
from jax.experimental import pallas as pl
from jax.experimental.pallas import tpu as pltpu


def _fold_bn_into_conv(w, b, gamma, beta, mean, var, eps=1e-5):
    """Fold eval-mode BatchNorm into conv weight (HWIO) and bias."""
    s = gamma / jnp.sqrt(var + eps)                  # (Cout,)
    w_f = w * s                                      # scale per output channel
    b_f = (b - mean) * s + beta
    return w_f.astype(jnp.float32), b_f.astype(jnp.float32)


def init_params(key, in_channels=3, out_channels=1, features=(64, 128)):
    f0, f1 = features
    ks = jax.random.split(key, 6)

    def conv_init(k, kh, kw, cin, cout):
        fan_in = kh * kw * cin
        w = jax.random.normal(k, (kh, kw, cin, cout), jnp.float32) / jnp.sqrt(fan_in)
        b = jnp.zeros((cout,), jnp.float32)
        return w, b

    w1, b1 = conv_init(ks[0], 3, 3, in_channels, f0)
    w2, b2 = conv_init(ks[1], 3, 3, f0, f1)
    w3, b3 = conv_init(ks[2], 1, 1, f1, out_channels)

    bn1 = dict(
        gamma=1.0 + 0.1 * jax.random.normal(ks[3], (f0,), jnp.float32),
        beta=0.1 * jax.random.normal(ks[4], (f0,), jnp.float32),
        mean=0.05 * jnp.arange(f0, dtype=jnp.float32) / f0,
        var=jnp.ones((f0,), jnp.float32) + 0.01 * jnp.arange(f0, dtype=jnp.float32) / f0,
    )
    bn2 = dict(
        gamma=1.0 + 0.1 * jax.random.normal(ks[5], (f1,), jnp.float32),
        beta=jnp.zeros((f1,), jnp.float32),
        mean=jnp.zeros((f1,), jnp.float32),
        var=jnp.ones((f1,), jnp.float32),
    )
    return dict(w1=w1, b1=b1, bn1=bn1, w2=w2, b2=b2, bn2=bn2, w3=w3, b3=b3)


@jax.jit
def simple_cnn_forward(x_nchw, params):
    """Forward pass matching SimpleCNN.forward (BN in eval mode). I/O is NCHW."""
    N, CIN, H, W = x_nchw.shape
    HW = H * W
    GUARD = W + 1                       # one-sided zero guard on the flattened axis
    F0 = params["w1"].shape[-1]
    F1 = params["w2"].shape[-1]
    COUT = params["w3"].shape[-1]

    # ---- parameter prep (tiny XLA ops, once per call) -------------------------
    w1f, b1f = _fold_bn_into_conv(params["w1"], params["b1"],
                                  params["bn1"]["gamma"], params["bn1"]["beta"],
                                  params["bn1"]["mean"], params["bn1"]["var"])
    w2f, b2f = _fold_bn_into_conv(params["w2"], params["b2"],
                                  params["bn2"]["gamma"], params["bn2"]["beta"],
                                  params["bn2"]["mean"], params["bn2"]["var"])

    # weights laid out per tap as (tap, Cout, Cin) so each tap is an aligned 2-D slab
    w1t = jnp.transpose(w1f, (0, 1, 3, 2)).reshape(9, F0, CIN)
    w2t = jnp.transpose(w2f, (0, 1, 3, 2)).reshape(9, F1, F0)
    w3t = params["w3"].reshape(F1, COUT).T.astype(jnp.float32)          # (COUT, F1)
    b1r = b1f.reshape(F0, 1)
    b2r = b2f.reshape(F1, 1)
    b3r = params["b3"].reshape(COUT, 1).astype(jnp.float32)

    # channel-major, flattened spatial: (N, C, H*W)  -- free reshape of NCHW
    x = x_nchw.reshape(N, CIN, HW).astype(jnp.float32)

    # ---- fused kernel ----------------------------------------------------------
    def kernel(x_ref, w1_ref, b1_ref, w2_ref, b2_ref, w3_ref, b3_ref,
               o_ref, pad1_ref, pad2_ref, acc_ref):
        # column (x-coordinate) of every flattened pixel, used to kill the
        # row-wraparound lanes of horizontally shifted taps.
        col = jax.lax.broadcasted_iota(jnp.int32, (1, HW), 1) % W
        mask_l = col >= 1            # tap dx=0 reads column x-1 -> invalid at x==0
        mask_r = col <= W - 2        # tap dx=2 reads column x+1 -> invalid at x==W-1

        def shifted_taps(pad_ref):
            # 9 shifted + masked (C, HW) views of the zero-guarded flat feature map.
            # Vertical out-of-range hits the zero guard; horizontal wrap is masked.
            for dy in range(3):
                for dx in range(3):
                    s = (dy - 1) * W + (dx - 1)
                    tap = pad_ref[:, GUARD + s: GUARD + s + HW]
                    if dx == 0:
                        tap = jnp.where(mask_l, tap, 0.0)
                    elif dx == 2:
                        tap = jnp.where(mask_r, tap, 0.0)
                    yield dy * 3 + dx, tap

        # ---- layer 1: conv3x3 (CIN -> F0) with folded BN, + bias + ReLU -------
        pad1_ref[...] = jnp.zeros_like(pad1_ref)          # keep guard lanes zero
        pad1_ref[:, GUARD:GUARD + HW] = x_ref[0]
        h1 = jnp.zeros((F0, HW), jnp.float32)
        for t, tap in shifted_taps(pad1_ref):
            h1 = h1 + jnp.dot(w1_ref[t], tap, preferred_element_type=jnp.float32)
        h1 = jnp.maximum(h1 + b1_ref[...], 0.0)                          # (F0, HW)

        # ---- layer 2: conv3x3 (F0 -> F1) with folded BN, + bias + ReLU --------
        # Accumulate in a VMEM scratch ref to bound vreg live ranges.
        pad2_ref[...] = jnp.zeros_like(pad2_ref)
        pad2_ref[:, GUARD:GUARD + HW] = h1
        acc_ref[...] = jnp.zeros_like(acc_ref)
        for t, tap in shifted_taps(pad2_ref):
            acc_ref[...] += jnp.dot(w2_ref[t], tap, preferred_element_type=jnp.float32)
        h2 = jnp.maximum(acc_ref[...] + b2_ref[...], 0.0)                # (F1, HW)

        # ---- layer 3: 1x1 conv (F1 -> COUT), lane-dense output ----------------
        y = jnp.dot(w3_ref[...], h2, preferred_element_type=jnp.float32) + b3_ref[...]
        o_ref[0] = y.astype(o_ref.dtype)                                 # (COUT, HW)

    out_flat = pl.pallas_call(
        kernel,
        out_shape=jax.ShapeDtypeStruct((N, COUT, HW), jnp.float32),
        grid=(N,),
        in_specs=[
            pl.BlockSpec((1, CIN, HW), lambda b: (b, 0, 0)),     # x
            pl.BlockSpec((9, F0, CIN), lambda b: (0, 0, 0)),     # w1 (tap, out, in), BN folded
            pl.BlockSpec((F0, 1), lambda b: (0, 0)),             # bias1 (conv + BN)
            pl.BlockSpec((9, F1, F0), lambda b: (0, 0, 0)),      # w2 (tap, out, in), BN folded
            pl.BlockSpec((F1, 1), lambda b: (0, 0)),             # bias2 (conv + BN)
            pl.BlockSpec((COUT, F1), lambda b: (0, 0)),          # w3
            pl.BlockSpec((COUT, 1), lambda b: (0, 0)),           # conv3 bias
        ],
        out_specs=pl.BlockSpec((1, COUT, HW), lambda b: (b, 0, 0)),
        scratch_shapes=[
            pltpu.VMEM((CIN, HW + 2 * GUARD), jnp.float32),      # zero-guarded input
            pltpu.VMEM((F0, HW + 2 * GUARD), jnp.float32),       # zero-guarded h1
            pltpu.VMEM((F1, HW), jnp.float32),                   # layer-2 accumulator
        ],
        compiler_params=pltpu.CompilerParams(
            dimension_semantics=("parallel",),                   # v7x: one image per TC
        ),
    )(x, w1t, b1r, w2t, b2r, w3t, b3r)

    return out_flat.reshape(N, COUT, H, W)                        # NCHW


def _reference_forward(x_nchw, params, eps=1e-5):
    """Pure-JAX reference (lax.conv, full precision) for correctness checking."""
    x = jnp.transpose(x_nchw, (0, 2, 3, 1)).astype(jnp.float32)

    def conv(x, w, b, pad):
        y = jax.lax.conv_general_dilated(
            x, w, window_strides=(1, 1), padding=[(pad, pad), (pad, pad)],
            dimension_numbers=("NHWC", "HWIO", "NHWC"),
            precision=jax.lax.Precision.HIGHEST)
        return y + b

    def bn(y, p):
        return (y - p["mean"]) / jnp.sqrt(p["var"] + eps) * p["gamma"] + p["beta"]

    y = jnp.maximum(bn(conv(x, params["w1"], params["b1"], 1), params["bn1"]), 0.0)
    y = jnp.maximum(bn(conv(y, params["w2"], params["b2"], 1), params["bn2"]), 0.0)
    y = conv(y, params["w3"], params["b3"], 0)
    return jnp.transpose(y, (0, 3, 1, 2))


if __name__ == "__main__":
    key = jax.random.PRNGKey(0)
    k_x, k_p = jax.random.split(key)

    # Small shapes consistent with the module: batch=2, in_channels=3, 16x16 spatial.
    x = jax.random.normal(k_x, (2, 3, 16, 16), jnp.float32)       # NCHW, like PyTorch
    params = init_params(k_p, in_channels=3, out_channels=1, features=(64, 128))

    out = simple_cnn_forward(x, params)
    out = jax.block_until_ready(out)
    assert out.shape == (2, 1, 16, 16), out.shape

    ref = jax.block_until_ready(_reference_forward(x, params))
    max_err = float(jnp.max(jnp.abs(out - ref)))
    assert jnp.allclose(out, ref, atol=2e-4, rtol=2e-4), max_err

    print("KERNEL_OK")
</pallas_src>

<mosaic_0001>
module attributes {stable_mosaic.version = 11 : i64} {
  func.func @kernel(%arg0: i32, %arg1: memref<1x3x256xf32, #tpu.memory_space<vmem>>, %arg2: memref<9x64x3xf32, #tpu.memory_space<vmem>>, %arg3: memref<64x1xf32, #tpu.memory_space<vmem>>, %arg4: memref<9x128x64xf32, #tpu.memory_space<vmem>>, %arg5: memref<128x1xf32, #tpu.memory_space<vmem>>, %arg6: memref<1x128xf32, #tpu.memory_space<vmem>>, %arg7: memref<1x1xf32, #tpu.memory_space<vmem>>, %arg8: memref<1x1x256xf32, #tpu.memory_space<vmem>>, %arg9: memref<3x290xf32, #tpu.memory_space<vmem>>, %arg10: memref<64x290xf32, #tpu.memory_space<vmem>>, %arg11: memref<128x256xf32, #tpu.memory_space<vmem>>) attributes {dimension_semantics = [#tpu.dimension_semantics<parallel>], iteration_bounds = array<i64: 2>, scalar_prefetch = 0 : i64, scratch_operands = 3 : i64, tpu.core_type = #tpu.core_type<tc>, window_params = [{transform_indices = @transform_0, window_bounds = array<i64: 1, 3, 256>}, {pipeline_mode = #tpu.pipeline_mode<synchronous>, transform_indices = @transform_1, window_bounds = array<i64: 9, 64, 3>}, {pipeline_mode = #tpu.pipeline_mode<synchronous>, transform_indices = @transform_2, window_bounds = array<i64: 64, 1>}, {pipeline_mode = #tpu.pipeline_mode<synchronous>, transform_indices = @transform_3, window_bounds = array<i64: 9, 128, 64>}, {pipeline_mode = #tpu.pipeline_mode<synchronous>, transform_indices = @transform_4, window_bounds = array<i64: 128, 1>}, {pipeline_mode = #tpu.pipeline_mode<synchronous>, transform_indices = @transform_5, window_bounds = array<i64: 1, 128>}, {pipeline_mode = #tpu.pipeline_mode<synchronous>, transform_indices = @transform_6, window_bounds = array<i64: 1, 1>}, {transform_indices = @transform_7, window_bounds = array<i64: 1, 1, 256>}]} {
    %0 = tpu.iota {dimensions = array<i32: 1>} : vector<1x256xi32>
    %c16_i32 = arith.constant 16 : i32
    %c0_i32 = arith.constant 0 : i32
    %1 = arith.cmpi eq, %c16_i32, %c0_i32 : i32
    %c1_i32 = arith.constant 1 : i32
    %2 = arith.select %1, %c1_i32, %c16_i32 : i32
    %3 = vector.broadcast %2 : i32 to vector<1x256xi32>
    %4 = arith.remsi %0, %3 : vector<1x256xi32>
    %c0_i32_0 = arith.constant 0 : i32
    %5 = vector.broadcast %c0_i32_0 : i32 to vector<1x256xi32>
    %6 = arith.cmpi ne, %4, %5 : vector<1x256xi32>
    %c0_i32_1 = arith.constant 0 : i32
    %7 = vector.broadcast %c0_i32_1 : i32 to vector<1x256xi32>
    %8 = arith.cmpi slt, %4, %7 : vector<1x256xi32>
    %c0_i32_2 = arith.constant 0 : i32
    %9 = arith.cmpi slt, %2, %c0_i32_2 : i32
    %10 = vector.broadcast %9 : i1 to vector<1x256xi1>
    %11 = vector.broadcast %10 : vector<1x256xi1> to vector<1x256xi1>
    %12 = arith.xori %8, %11 : vector<1x256xi1>
    %13 = arith.andi %12, %6 : vector<1x256xi1>
    %14 = vector.broadcast %2 : i32 to vector<1x256xi32>
    %15 = arith.addi %4, %14 : vector<1x256xi32>
    %16 = arith.select %13, %15, %4 : vector<1x256xi1>, vector<1x256xi32>
    %c1_i32_3 = arith.constant 1 : i32
    %17 = vector.broadcast %c1_i32_3 : i32 to vector<1x256xi32>
    %18 = arith.cmpi sge, %16, %17 : vector<1x256xi32>
    %c14_i32 = arith.constant 14 : i32
    %19 = vector.broadcast %c14_i32 : i32 to vector<1x256xi32>
    %20 = arith.cmpi sle, %16, %19 : vector<1x256xi32>
    %cst = arith.constant 0.000000e+00 : f32
    %21 = vector.broadcast %cst : f32 to vector<3x290xf32>
    %c0 = arith.constant 0 : index
    %c0_4 = arith.constant 0 : index
    %22 = vector.load %arg9[%c0, %c0_4] : memref<3x290xf32, #tpu.memory_space<vmem>>, vector<3x290xf32>
    tpu.vector_store %arg9[%c0, %c0_4], %21 {strides = array<i32>} : memref<3x290xf32, #tpu.memory_space<vmem>>, vector<3x290xf32>,
    %c0_5 = arith.constant 0 : index
    %c0_6 = arith.constant 0 : index
    %c0_7 = arith.constant 0 : index
    %23 = vector.load %arg1[%c0_5, %c0_6, %c0_7] : memref<1x3x256xf32, #tpu.memory_space<vmem>>, vector<1x3x256xf32>
    %24 = vector.shape_cast %23 : vector<1x3x256xf32> to vector<3x256xf32>
    %c0_8 = arith.constant 0 : index
    %c17 = arith.constant 17 : index
    %25 = vector.load %arg9[%c0_8, %c17] : memref<3x290xf32, #tpu.memory_space<vmem>>, vector<3x256xf32>
    tpu.vector_store %arg9[%c0_8, %c17], %24 {strides = array<i32>} : memref<3x290xf32, #tpu.memory_space<vmem>>, vector<3x256xf32>,
    %cst_9 = arith.constant 0.000000e+00 : f32
    %26 = vector.broadcast %cst_9 : f32 to vector<64x256xf32>
    %c0_10 = arith.constant 0 : index
    %c0_11 = arith.constant 0 : index
    %27 = vector.load %arg9[%c0_10, %c0_11] : memref<3x290xf32, #tpu.memory_space<vmem>>, vector<3x256xf32>
    %cst_12 = arith.constant 0.000000e+00 : f32
    %28 = vector.shape_cast %18 : vector<1x256xi1> to vector<1x256xi1>
    %29 = vector.broadcast %28 : vector<1x256xi1> to vector<3x256xi1>
    %30 = vector.broadcast %cst_12 : f32 to vector<3x256xf32>
    %31 = arith.select %29, %27, %30 : vector<3x256xi1>, vector<3x256xf32>
    %c0_13 = arith.constant 0 : index
    %c0_14 = arith.constant 0 : index
    %c0_15 = arith.constant 0 : index
    %32 = vector.load %arg2[%c0_13, %c0_14, %c0_15] : memref<9x64x3xf32, #tpu.memory_space<vmem>>, vector<1x64x3xf32>
    %33 = vector.shape_cast %32 : vector<1x64x3xf32> to vector<64x3xf32>
    %cst_16 = arith.constant dense<0.000000e+00> : vector<64x256xf32>
    %34 = tpu.matmul %33, %31, %cst_16 {dimension_numbers = #tpu.dot_dimension_numbers<[1], [0], [0], [1], [0, 0, 1, 1], [], []>} : vector<64x3xf32>, vector<3x256xf32>, vector<64x256xf32> -> vector<64x256xf32>
    %35 = arith.addf %26, %34 : vector<64x256xf32>
    %c0_17 = arith.constant 0 : index
    %c1 = arith.constant 1 : index
    %36 = vector.load %arg9[%c0_17, %c1] : memref<3x290xf32, #tpu.memory_space<vmem>>, vector<3x256xf32>
    %c1_18 = arith.constant 1 : index
    %c0_19 = arith.constant 0 : index
    %c0_20 = arith.constant 0 : index
    %37 = vector.load %arg2[%c1_18, %c0_19, %c0_20] : memref<9x64x3xf32, #tpu.memory_space<vmem>>, vector<1x64x3xf32>
    %38 = vector.shape_cast %37 : vector<1x64x3xf32> to vector<64x3xf32>
    %cst_21 = arith.constant dense<0.000000e+00> : vector<64x256xf32>
    %39 = tpu.matmul %38, %36, %cst_21 {dimension_numbers = #tpu.dot_dimension_numbers<[1], [0], [0], [1], [0, 0, 1, 1], [], []>} : vector<64x3xf32>, vector<3x256xf32>, vector<64x256xf32> -> vector<64x256xf32>
    %40 = arith.addf %35, %39 : vector<64x256xf32>
    %c0_22 = arith.constant 0 : index
    %c2 = arith.constant 2 : index
    %41 = vector.load %arg9[%c0_22, %c2] : memref<3x290xf32, #tpu.memory_space<vmem>>, vector<3x256xf32>
    %cst_23 = arith.constant 0.000000e+00 : f32
    %42 = vector.shape_cast %20 : vector<1x256xi1> to vector<1x256xi1>
    %43 = vector.broadcast %42 : vector<1x256xi1> to vector<3x256xi1>
    %44 = vector.broadcast %cst_23 : f32 to vector<3x256xf32>
    %45 = arith.select %43, %41, %44 : vector<3x256xi1>, vector<3x256xf32>
    %c2_24 = arith.constant 2 : index
    %c0_25 = arith.constant 0 : index
    %c0_26 = arith.constant 0 : index
    %46 = vector.load %arg2[%c2_24, %c0_25, %c0_26] : memref<9x64x3xf32, #tpu.memory_space<vmem>>, vector<1x64x3xf32>
    %47 = vector.shape_cast %46 : vector<1x64x3xf32> to vector<64x3xf32>
    %cst_27 = arith.constant dense<0.000000e+00> : vector<64x256xf32>
    %48 = tpu.matmul %47, %45, %cst_27 {dimension_numbers = #tpu.dot_dimension_numbers<[1], [0], [0], [1], [0, 0, 1, 1], [], []>} : vector<64x3xf32>, vector<3x256xf32>, vector<64x256xf32> -> vector<64x256xf32>
    %49 = arith.addf %40, %48 : vector<64x256xf32>
    %c0_28 = arith.constant 0 : index
    %c16 = arith.constant 16 : index
    %50 = vector.load %arg9[%c0_28, %c16] : memref<3x290xf32, #tpu.memory_space<vmem>>, vector<3x256xf32>
    %cst_29 = arith.constant 0.000000e+00 : f32
    %51 = vector.shape_cast %18 : vector<1x256xi1> to vector<1x256xi1>
    %52 = vector.broadcast %51 : vector<1x256xi1> to vector<3x256xi1>
    %53 = vector.broadcast %cst_29 : f32 to vector<3x256xf32>
    %54 = arith.select %52, %50, %53 : vector<3x256xi1>, vector<3x256xf32>
    %c3 = arith.constant 3 : index
    %c0_30 = arith.constant 0 : index
    %c0_31 = arith.constant 0 : index
    %55 = vector.load %arg2[%c3, %c0_30, %c0_31] : memref<9x64x3xf32, #tpu.memory_space<vmem>>, vector<1x64x3xf32>
    %56 = vector.shape_cast %55 : vector<1x64x3xf32> to vector<64x3xf32>
    %cst_32 = arith.constant dense<0.000000e+00> : vector<64x256xf32>
    %57 = tpu.matmul %56, %54, %cst_32 {dimension_numbers = #tpu.dot_dimension_numbers<[1], [0], [0], [1], [0, 0, 1, 1], [], []>} : vector<64x3xf32>, vector<3x256xf32>, vector<64x256xf32> -> vector<64x256xf32>
    %58 = arith.addf %49, %57 : vector<64x256xf32>
    %c0_33 = arith.constant 0 : index
    %c17_34 = arith.constant 17 : index
    %59 = vector.load %arg9[%c0_33, %c17_34] : memref<3x290xf32, #tpu.memory_space<vmem>>, vector<3x256xf32>
    %c4 = arith.constant 4 : index
    %c0_35 = arith.constant 0 : index
    %c0_36 = arith.constant 0 : index
    %60 = vector.load %arg2[%c4, %c0_35, %c0_36] : memref<9x64x3xf32, #tpu.memory_space<vmem>>, vector<1x64x3xf32>
    %61 = vector.shape_cast %60 : vector<1x64x3xf32> to vector<64x3xf32>
    %cst_37 = arith.constant dense<0.000000e+00> : vector<64x256xf32>
    %62 = tpu.matmul %61, %59, %cst_37 {dimension_numbers = #tpu.dot_dimension_numbers<[1], [0], [0], [1], [0, 0, 1, 1], [], []>} : vector<64x3xf32>, vector<3x256xf32>, vector<64x256xf32> -> vector<64x256xf32>
    %63 = arith.addf %58, %62 : vector<64x256xf32>
    %c0_38 = arith.constant 0 : index
    %c18 = arith.constant 18 : index
    %64 = vector.load %arg9[%c0_38, %c18] : memref<3x290xf32, #tpu.memory_space<vmem>>, vector<3x256xf32>
    %cst_39 = arith.constant 0.000000e+00 : f32
    %65 = vector.shape_cast %20 : vector<1x256xi1> to vector<1x256xi1>
    %66 = vector.broadcast %65 : vector<1x256xi1> to vector<3x256xi1>
    %67 = vector.broadcast %cst_39 : f32 to vector<3x256xf32>
    %68 = arith.select %66, %64, %67 : vector<3x256xi1>, vector<3x256xf32>
    %c5 = arith.constant 5 : index
    %c0_40 = arith.constant 0 : index
    %c0_41 = arith.constant 0 : index
    %69 = vector.load %arg2[%c5, %c0_40, %c0_41] : memref<9x64x3xf32, #tpu.memory_space<vmem>>, vector<1x64x3xf32>
    %70 = vector.shape_cast %69 : vector<1x64x3xf32> to vector<64x3xf32>
    %cst_42 = arith.constant dense<0.000000e+00> : vector<64x256xf32>
    %71 = tpu.matmul %70, %68, %cst_42 {dimension_numbers = #tpu.dot_dimension_numbers<[1], [0], [0], [1], [0, 0, 1, 1], [], []>} : vector<64x3xf32>, vector<3x256xf32>, vector<64x256xf32> -> vector<64x256xf32>
    %72 = arith.addf %63, %71 : vector<64x256xf32>
    %c0_43 = arith.constant 0 : index
    %c32 = arith.constant 32 : index
    %73 = vector.load %arg9[%c0_43, %c32] : memref<3x290xf32, #tpu.memory_space<vmem>>, vector<3x256xf32>
    %cst_44 = arith.constant 0.000000e+00 : f32
    %74 = vector.shape_cast %18 : vector<1x256xi1> to vector<1x256xi1>
    %75 = vector.broadcast %74 : vector<1x256xi1> to vector<3x256xi1>
    %76 = vector.broadcast %cst_44 : f32 to vector<3x256xf32>
    %77 = arith.select %75, %73, %76 : vector<3x256xi1>, vector<3x256xf32>
    %c6 = arith.constant 6 : index
    %c0_45 = arith.constant 0 : index
    %c0_46 = arith.constant 0 : index
    %78 = vector.load %arg2[%c6, %c0_45, %c0_46] : memref<9x64x3xf32, #tpu.memory_space<vmem>>, vector<1x64x3xf32>
    %79 = vector.shape_cast %78 : vector<1x64x3xf32> to vector<64x3xf32>
    %cst_47 = arith.constant dense<0.000000e+00> : vector<64x256xf32>
    %80 = tpu.matmul %79, %77, %cst_47 {dimension_numbers = #tpu.dot_dimension_numbers<[1], [0], [0], [1], [0, 0, 1, 1], [], []>} : vector<64x3xf32>, vector<3x256xf32>, vector<64x256xf32> -> vector<64x256xf32>
    %81 = arith.addf %72, %80 : vector<64x256xf32>
    %c0_48 = arith.constant 0 : index
    %c33 = arith.constant 33 : index
    %82 = vector.load %arg9[%c0_48, %c33] : memref<3x290xf32, #tpu.memory_space<vmem>>, vector<3x256xf32>
    %c7 = arith.constant 7 : index
    %c0_49 = arith.constant 0 : index
    %c0_50 = arith.constant 0 : index
    %83 = vector.load %arg2[%c7, %c0_49, %c0_50] : memref<9x64x3xf32, #tpu.memory_space<vmem>>, vector<1x64x3xf32>
    %84 = vector.shape_cast %83 : vector<1x64x3xf32> to vector<64x3xf32>
    %cst_51 = arith.constant dense<0.000000e+00> : vector<64x256xf32>
    %85 = tpu.matmul %84, %82, %cst_51 {dimension_numbers = #tpu.dot_dimension_numbers<[1], [0], [0], [1], [0, 0, 1, 1], [], []>} : vector<64x3xf32>, vector<3x256xf32>, vector<64x256xf32> -> vector<64x256xf32>
    %86 = arith.addf %81, %85 : vector<64x256xf32>
    %c0_52 = arith.constant 0 : index
    %c34 = arith.constant 34 : index
    %87 = vector.load %arg9[%c0_52, %c34] : memref<3x290xf32, #tpu.memory_space<vmem>>, vector<3x256xf32>
    %cst_53 = arith.constant 0.000000e+00 : f32
    %88 = vector.shape_cast %20 : vector<1x256xi1> to vector<1x256xi1>
    %89 = vector.broadcast %88 : vector<1x256xi1> to vector<3x256xi1>
    %90 = vector.broadcast %cst_53 : f32 to vector<3x256xf32>
    %91 = arith.select %89, %87, %90 : vector<3x256xi1>, vector<3x256xf32>
    %c8 = arith.constant 8 : index
    %c0_54 = arith.constant 0 : index
    %c0_55 = arith.constant 0 : index
    %92 = vector.load %arg2[%c8, %c0_54, %c0_55] : memref<9x64x3xf32, #tpu.memory_space<vmem>>, vector<1x64x3xf32>
    %93 = vector.shape_cast %92 : vector<1x64x3xf32> to vector<64x3xf32>
    %cst_56 = arith.constant dense<0.000000e+00> : vector<64x256xf32>
    %94 = tpu.matmul %93, %91, %cst_56 {dimension_numbers = #tpu.dot_dimension_numbers<[1], [0], [0], [1], [0, 0, 1, 1], [], []>} : vector<64x3xf32>, vector<3x256xf32>, vector<64x256xf32> -> vector<64x256xf32>
    %95 = arith.addf %86, %94 : vector<64x256xf32>
    %c0_57 = arith.constant 0 : index
    %c0_58 = arith.constant 0 : index
    %96 = vector.load %arg3[%c0_57, %c0_58] : memref<64x1xf32, #tpu.memory_space<vmem>>, vector<64x1xf32>
    %97 = vector.broadcast %96 : vector<64x1xf32> to vector<64x256xf32>
    %98 = arith.addf %95, %97 : vector<64x256xf32>
    %cst_59 = arith.constant 0.000000e+00 : f32
    %99 = vector.broadcast %cst_59 : f32 to vector<64x256xf32>
    %100 = arith.maximumf %98, %99 : vector<64x256xf32>
    %cst_60 = arith.constant 0.000000e+00 : f32
    %101 = vector.broadcast %cst_60 : f32 to vector<64x290xf32>
    %c0_61 = arith.constant 0 : index
    %c0_62 = arith.constant 0 : index
    %102 = vector.load %arg10[%c0_61, %c0_62] : memref<64x290xf32, #tpu.memory_space<vmem>>, vector<64x290xf32>
    tpu.vector_store %arg10[%c0_61, %c0_62], %101 {strides = array<i32>} : memref<64x290xf32, #tpu.memory_space<vmem>>, vector<64x290xf32>,
    %c0_63 = arith.constant 0 : index
    %c17_64 = arith.constant 17 : index
    %103 = vector.load %arg10[%c0_63, %c17_64] : memref<64x290xf32, #tpu.memory_space<vmem>>, vector<64x256xf32>
    tpu.vector_store %arg10[%c0_63, %c17_64], %100 {strides = array<i32>} : memref<64x290xf32, #tpu.memory_space<vmem>>, vector<64x256xf32>,
    %cst_65 = arith.constant 0.000000e+00 : f32
    %104 = vector.broadcast %cst_65 : f32 to vector<128x256xf32>
    %c0_66 = arith.constant 0 : index
    %c0_67 = arith.constant 0 : index
    %105 = vector.load %arg11[%c0_66, %c0_67] : memref<128x256xf32, #tpu.memory_space<vmem>>, vector<128x256xf32>
    tpu.vector_store %arg11[%c0_66, %c0_67], %104 {strides = array<i32>} : memref<128x256xf32, #tpu.memory_space<vmem>>, vector<128x256xf32>,
    %c0_68 = arith.constant 0 : index
    %c0_69 = arith.constant 0 : index
    %106 = vector.load %arg10[%c0_68, %c0_69] : memref<64x290xf32, #tpu.memory_space<vmem>>, vector<64x256xf32>
    %cst_70 = arith.constant 0.000000e+00 : f32
    %107 = vector.shape_cast %18 : vector<1x256xi1> to vector<1x256xi1>
    %108 = vector.broadcast %107 : vector<1x256xi1> to vector<64x256xi1>
    %109 = vector.broadcast %cst_70 : f32 to vector<64x256xf32>
    %110 = arith.select %108, %106, %109 : vector<64x256xi1>, vector<64x256xf32>
    %c0_71 = arith.constant 0 : index
    %c0_72 = arith.constant 0 : index
    %111 = vector.load %arg11[%c0_71, %c0_72] : memref<128x256xf32, #tpu.memory_space<vmem>>, vector<128x256xf32>
    %c0_73 = arith.constant 0 : index
    %c0_74 = arith.constant 0 : index
    %c0_75 = arith.constant 0 : index
    %112 = vector.load %arg4[%c0_73, %c0_74, %c0_75] : memref<9x128x64xf32, #tpu.memory_space<vmem>>, vector<1x128x64xf32>
    %113 = vector.shape_cast %112 : vector<1x128x64xf32> to vector<128x64xf32>
    %cst_76 = arith.constant dense<0.000000e+00> : vector<128x256xf32>
    %114 = tpu.matmul %113, %110, %cst_76 {dimension_numbers = #tpu.dot_dimension_numbers<[1], [0], [0], [1], [0, 0, 1, 1], [], []>} : vector<128x64xf32>, vector<64x256xf32>, vector<128x256xf32> -> vector<128x256xf32>
    %115 = arith.addf %111, %114 : vector<128x256xf32>
    %c0_77 = arith.constant 0 : index
    %c0_78 = arith.constant 0 : index
    %116 = vector.load %arg11[%c0_77, %c0_78] : memref<128x256xf32, #tpu.memory_space<vmem>>, vector<128x256xf32>
    tpu.vector_store %arg11[%c0_77, %c0_78], %115 {strides = array<i32>} : memref<128x256xf32, #tpu.memory_space<vmem>>, vector<128x256xf32>,
    %c0_79 = arith.constant 0 : index
    %c1_80 = arith.constant 1 : index
    %117 = vector.load %arg10[%c0_79, %c1_80] : memref<64x290xf32, #tpu.memory_space<vmem>>, vector<64x256xf32>
    %c0_81 = arith.constant 0 : index
    %c0_82 = arith.constant 0 : index
    %118 = vector.load %arg11[%c0_81, %c0_82] : memref<128x256xf32, #tpu.memory_space<vmem>>, vector<128x256xf32>
    %c1_83 = arith.constant 1 : index
    %c0_84 = arith.constant 0 : index
    %c0_85 = arith.constant 0 : index
    %119 = vector.load %arg4[%c1_83, %c0_84, %c0_85] : memref<9x128x64xf32, #tpu.memory_space<vmem>>, vector<1x128x64xf32>
    %120 = vector.shape_cast %119 : vector<1x128x64xf32> to vector<128x64xf32>
    %cst_86 = arith.constant dense<0.000000e+00> : vector<128x256xf32>
    %121 = tpu.matmul %120, %117, %cst_86 {dimension_numbers = #tpu.dot_dimension_numbers<[1], [0], [0], [1], [0, 0, 1, 1], [], []>} : vector<128x64xf32>, vector<64x256xf32>, vector<128x256xf32> -> vector<128x256xf32>
    %122 = arith.addf %118, %121 : vector<128x256xf32>
    %c0_87 = arith.constant 0 : index
    %c0_88 = arith.constant 0 : index
    %123 = vector.load %arg11[%c0_87, %c0_88] : memref<128x256xf32, #tpu.memory_space<vmem>>, vector<128x256xf32>
    tpu.vector_store %arg11[%c0_87, %c0_88], %122 {strides = array<i32>} : memref<128x256xf32, #tpu.memory_space<vmem>>, vector<128x256xf32>,
    %c0_89 = arith.constant 0 : index
    %c2_90 = arith.constant 2 : index
    %124 = vector.load %arg10[%c0_89, %c2_90] : memref<64x290xf32, #tpu.memory_space<vmem>>, vector<64x256xf32>
    %cst_91 = arith.constant 0.000000e+00 : f32
    %125 = vector.shape_cast %20 : vector<1x256xi1> to vector<1x256xi1>
    %126 = vector.broadcast %125 : vector<1x256xi1> to vector<64x256xi1>
    %127 = vector.broadcast %cst_91 : f32 to vector<64x256xf32>
    %128 = arith.select %126, %124, %127 : vector<64x256xi1>, vector<64x256xf32>
    %c0_92 = arith.constant 0 : index
    %c0_93 = arith.constant 0 : index
    %129 = vector.load %arg11[%c0_92, %c0_93] : memref<128x256xf32, #tpu.memory_space<vmem>>, vector<128x256xf32>
    %c2_94 = arith.constant 2 : index
    %c0_95 = arith.constant 0 : index
    %c0_96 = arith.constant 0 : index
    %130 = vector.load %arg4[%c2_94, %c0_95, %c0_96] : memref<9x128x64xf32, #tpu.memory_space<vmem>>, vector<1x128x64xf32>
    %131 = vector.shape_cast %130 : vector<1x128x64xf32> to vector<128x64xf32>
    %cst_97 = arith.constant dense<0.000000e+00> : vector<128x256xf32>
    %132 = tpu.matmul %131, %128, %cst_97 {dimension_numbers = #tpu.dot_dimension_numbers<[1], [0], [0], [1], [0, 0, 1, 1], [], []>} : vector<128x64xf32>, vector<64x256xf32>, vector<128x256xf32> -> vector<128x256xf32>
    %133 = arith.addf %129, %132 : vector<128x256xf32>
    %c0_98 = arith.constant 0 : index
    %c0_99 = arith.constant 0 : index
    %134 = vector.load %arg11[%c0_98, %c0_99] : memref<128x256xf32, #tpu.memory_space<vmem>>, vector<128x256xf32>
    tpu.vector_store %arg11[%c0_98, %c0_99], %133 {strides = array<i32>} : memref<128x256xf32, #tpu.memory_space<vmem>>, vector<128x256xf32>,
    %c0_100 = arith.constant 0 : index
    %c16_101 = arith.constant 16 : index
    %135 = vector.load %arg10[%c0_100, %c16_101] : memref<64x290xf32, #tpu.memory_space<vmem>>, vector<64x256xf32>
    %cst_102 = arith.constant 0.000000e+00 : f32
    %136 = vector.shape_cast %18 : vector<1x256xi1> to vector<1x256xi1>
    %137 = vector.broadcast %136 : vector<1x256xi1> to vector<64x256xi1>
    %138 = vector.broadcast %cst_102 : f32 to vector<64x256xf32>
    %139 = arith.select %137, %135, %138 : vector<64x256xi1>, vector<64x256xf32>
    %c0_103 = arith.constant 0 : index
    %c0_104 = arith.constant 0 : index
    %140 = vector.load %arg11[%c0_103, %c0_104] : memref<128x256xf32, #tpu.memory_space<vmem>>, vector<128x256xf32>
    %c3_105 = arith.constant 3 : index
    %c0_106 = arith.constant 0 : index
    %c0_107 = arith.constant 0 : index
    %141 = vector.load %arg4[%c3_105, %c0_106, %c0_107] : memref<9x128x64xf32, #tpu.memory_space<vmem>>, vector<1x128x64xf32>
    %142 = vector.shape_cast %141 : vector<1x128x64xf32> to vector<128x64xf32>
    %cst_108 = arith.constant dense<0.000000e+00> : vector<128x256xf32>
    %143 = tpu.matmul %142, %139, %cst_108 {dimension_numbers = #tpu.dot_dimension_numbers<[1], [0], [0], [1], [0, 0, 1, 1], [], []>} : vector<128x64xf32>, vector<64x256xf32>, vector<128x256xf32> -> vector<128x256xf32>
    %144 = arith.addf %140, %143 : vector<128x256xf32>
    %c0_109 = arith.constant 0 : index
    %c0_110 = arith.constant 0 : index
    %145 = vector.load %arg11[%c0_109, %c0_110] : memref<128x256xf32, #tpu.memory_space<vmem>>, vector<128x256xf32>
    tpu.vector_store %arg11[%c0_109, %c0_110], %144 {strides = array<i32>} : memref<128x256xf32, #tpu.memory_space<vmem>>, vector<128x256xf32>,
    %c0_111 = arith.constant 0 : index
    %c17_112 = arith.constant 17 : index
    %146 = vector.load %arg10[%c0_111, %c17_112] : memref<64x290xf32, #tpu.memory_space<vmem>>, vector<64x256xf32>
    %c0_113 = arith.constant 0 : index
    %c0_114 = arith.constant 0 : index
    %147 = vector.load %arg11[%c0_113, %c0_114] : memref<128x256xf32, #tpu.memory_space<vmem>>, vector<128x256xf32>
    %c4_115 = arith.constant 4 : index
    %c0_116 = arith.constant 0 : index
    %c0_117 = arith.constant 0 : index
    %148 = vector.load %arg4[%c4_115, %c0_116, %c0_117] : memref<9x128x64xf32, #tpu.memory_space<vmem>>, vector<1x128x64xf32>
    %149 = vector.shape_cast %148 : vector<1x128x64xf32> to vector<128x64xf32>
    %cst_118 = arith.constant dense<0.000000e+00> : vector<128x256xf32>
    %150 = tpu.matmul %149, %146, %cst_118 {dimension_numbers = #tpu.dot_dimension_numbers<[1], [0], [0], [1], [0, 0, 1, 1], [], []>} : vector<128x64xf32>, vector<64x256xf32>, vector<128x256xf32> -> vector<128x256xf32>
    %151 = arith.addf %147, %150 : vector<128x256xf32>
    %c0_119 = arith.constant 0 : index
    %c0_120 = arith.constant 0 : index
    %152 = vector.load %arg11[%c0_119, %c0_120] : memref<128x256xf32, #tpu.memory_space<vmem>>, vector<128x256xf32>
    tpu.vector_store %arg11[%c0_119, %c0_120], %151 {strides = array<i32>} : memref<128x256xf32, #tpu.memory_space<vmem>>, vector<128x256xf32>,
    %c0_121 = arith.constant 0 : index
    %c18_122 = arith.constant 18 : index
    %153 = vector.load %arg10[%c0_121, %c18_122] : memref<64x290xf32, #tpu.memory_space<vmem>>, vector<64x256xf32>
    %cst_123 = arith.constant 0.000000e+00 : f32
    %154 = vector.shape_cast %20 : vector<1x256xi1> to vector<1x256xi1>
    %155 = vector.broadcast %154 : vector<1x256xi1> to vector<64x256xi1>
    %156 = vector.broadcast %cst_123 : f32 to vector<64x256xf32>
    %157 = arith.select %155, %153, %156 : vector<64x256xi1>, vector<64x256xf32>
    %c0_124 = arith.constant 0 : index
    %c0_125 = arith.constant 0 : index
    %158 = vector.load %arg11[%c0_124, %c0_125] : memref<128x256xf32, #tpu.memory_space<vmem>>, vector<128x256xf32>
    %c5_126 = arith.constant 5 : index
    %c0_127 = arith.constant 0 : index
    %c0_128 = arith.constant 0 : index
    %159 = vector.load %arg4[%c5_126, %c0_127, %c0_128] : memref<9x128x64xf32, #tpu.memory_space<vmem>>, vector<1x128x64xf32>
    %160 = vector.shape_cast %159 : vector<1x128x64xf32> to vector<128x64xf32>
    %cst_129 = arith.constant dense<0.000000e+00> : vector<128x256xf32>
    %161 = tpu.matmul %160, %157, %cst_129 {dimension_numbers = #tpu.dot_dimension_numbers<[1], [0], [0], [1], [0, 0, 1, 1], [], []>} : vector<128x64xf32>, vector<64x256xf32>, vector<128x256xf32> -> vector<128x256xf32>
    %162 = arith.addf %158, %161 : vector<128x256xf32>
    %c0_130 = arith.constant 0 : index
    %c0_131 = arith.constant 0 : index
    %163 = vector.load %arg11[%c0_130, %c0_131] : memref<128x256xf32, #tpu.memory_space<vmem>>, vector<128x256xf32>
    tpu.vector_store %arg11[%c0_130, %c0_131], %162 {strides = array<i32>} : memref<128x256xf32, #tpu.memory_space<vmem>>, vector<128x256xf32>,
    %c0_132 = arith.constant 0 : index
    %c32_133 = arith.constant 32 : index
    %164 = vector.load %arg10[%c0_132, %c32_133] : memref<64x290xf32, #tpu.memory_space<vmem>>, vector<64x256xf32>
    %cst_134 = arith.constant 0.000000e+00 : f32
    %165 = vector.shape_cast %18 : vector<1x256xi1> to vector<1x256xi1>
    %166 = vector.broadcast %165 : vector<1x256xi1> to vector<64x256xi1>
    %167 = vector.broadcast %cst_134 : f32 to vector<64x256xf32>
    %168 = arith.select %166, %164, %167 : vector<64x256xi1>, vector<64x256xf32>
    %c0_135 = arith.constant 0 : index
    %c0_136 = arith.constant 0 : index
    %169 = vector.load %arg11[%c0_135, %c0_136] : memref<128x256xf32, #tpu.memory_space<vmem>>, vector<128x256xf32>
    %c6_137 = arith.constant 6 : index
    %c0_138 = arith.constant 0 : index
    %c0_139 = arith.constant 0 : index
    %170 = vector.load %arg4[%c6_137, %c0_138, %c0_139] : memref<9x128x64xf32, #tpu.memory_space<vmem>>, vector<1x128x64xf32>
    %171 = vector.shape_cast %170 : vector<1x128x64xf32> to vector<128x64xf32>
    %cst_140 = arith.constant dense<0.000000e+00> : vector<128x256xf32>
    %172 = tpu.matmul %171, %168, %cst_140 {dimension_numbers = #tpu.dot_dimension_numbers<[1], [0], [0], [1], [0, 0, 1, 1], [], []>} : vector<128x64xf32>, vector<64x256xf32>, vector<128x256xf32> -> vector<128x256xf32>
    %173 = arith.addf %169, %172 : vector<128x256xf32>
    %c0_141 = arith.constant 0 : index
    %c0_142 = arith.constant 0 : index
    %174 = vector.load %arg11[%c0_141, %c0_142] : memref<128x256xf32, #tpu.memory_space<vmem>>, vector<128x256xf32>
    tpu.vector_store %arg11[%c0_141, %c0_142], %173 {strides = array<i32>} : memref<128x256xf32, #tpu.memory_space<vmem>>, vector<128x256xf32>,
    %c0_143 = arith.constant 0 : index
    %c33_144 = arith.constant 33 : index
    %175 = vector.load %arg10[%c0_143, %c33_144] : memref<64x290xf32, #tpu.memory_space<vmem>>, vector<64x256xf32>
    %c0_145 = arith.constant 0 : index
    %c0_146 = arith.constant 0 : index
    %176 = vector.load %arg11[%c0_145, %c0_146] : memref<128x256xf32, #tpu.memory_space<vmem>>, vector<128x256xf32>
    %c7_147 = arith.constant 7 : index
    %c0_148 = arith.constant 0 : index
    %c0_149 = arith.constant 0 : index
    %177 = vector.load %arg4[%c7_147, %c0_148, %c0_149] : memref<9x128x64xf32, #tpu.memory_space<vmem>>, vector<1x128x64xf32>
    %178 = vector.shape_cast %177 : vector<1x128x64xf32> to vector<128x64xf32>
    %cst_150 = arith.constant dense<0.000000e+00> : vector<128x256xf32>
    %179 = tpu.matmul %178, %175, %cst_150 {dimension_numbers = #tpu.dot_dimension_numbers<[1], [0], [0], [1], [0, 0, 1, 1], [], []>} : vector<128x64xf32>, vector<64x256xf32>, vector<128x256xf32> -> vector<128x256xf32>
    %180 = arith.addf %176, %179 : vector<128x256xf32>
    %c0_151 = arith.constant 0 : index
    %c0_152 = arith.constant 0 : index
    %181 = vector.load %arg11[%c0_151, %c0_152] : memref<128x256xf32, #tpu.memory_space<vmem>>, vector<128x256xf32>
    tpu.vector_store %arg11[%c0_151, %c0_152], %180 {strides = array<i32>} : memref<128x256xf32, #tpu.memory_space<vmem>>, vector<128x256xf32>,
    %c0_153 = arith.constant 0 : index
    %c34_154 = arith.constant 34 : index
    %182 = vector.load %arg10[%c0_153, %c34_154] : memref<64x290xf32, #tpu.memory_space<vmem>>, vector<64x256xf32>
    %cst_155 = arith.constant 0.000000e+00 : f32
    %183 = vector.shape_cast %20 : vector<1x256xi1> to vector<1x256xi1>
    %184 = vector.broadcast %183 : vector<1x256xi1> to vector<64x256xi1>
    %185 = vector.broadcast %cst_155 : f32 to vector<64x256xf32>
    %186 = arith.select %184, %182, %185 : vector<64x256xi1>, vector<64x256xf32>
    %c0_156 = arith.constant 0 : index
    %c0_157 = arith.constant 0 : index
    %187 = vector.load %arg11[%c0_156, %c0_157] : memref<128x256xf32, #tpu.memory_space<vmem>>, vector<128x256xf32>
    %c8_158 = arith.constant 8 : index
    %c0_159 = arith.constant 0 : index
    %c0_160 = arith.constant 0 : index
    %188 = vector.load %arg4[%c8_158, %c0_159, %c0_160] : memref<9x128x64xf32, #tpu.memory_space<vmem>>, vector<1x128x64xf32>
    %189 = vector.shape_cast %188 : vector<1x128x64xf32> to vector<128x64xf32>
    %cst_161 = arith.constant dense<0.000000e+00> : vector<128x256xf32>
    %190 = tpu.matmul %189, %186, %cst_161 {dimension_numbers = #tpu.dot_dimension_numbers<[1], [0], [0], [1], [0, 0, 1, 1], [], []>} : vector<128x64xf32>, vector<64x256xf32>, vector<128x256xf32> -> vector<128x256xf32>
    %191 = arith.addf %187, %190 : vector<128x256xf32>
    %c0_162 = arith.constant 0 : index
    %c0_163 = arith.constant 0 : index
    %192 = vector.load %arg11[%c0_162, %c0_163] : memref<128x256xf32, #tpu.memory_space<vmem>>, vector<128x256xf32>
    tpu.vector_store %arg11[%c0_162, %c0_163], %191 {strides = array<i32>} : memref<128x256xf32, #tpu.memory_space<vmem>>, vector<128x256xf32>,
    %c0_164 = arith.constant 0 : index
    %c0_165 = arith.constant 0 : index
    %193 = vector.load %arg11[%c0_164, %c0_165] : memref<128x256xf32, #tpu.memory_space<vmem>>, vector<128x256xf32>
    %c0_166 = arith.constant 0 : index
    %c0_167 = arith.constant 0 : index
    %194 = vector.load %arg5[%c0_166, %c0_167] : memref<128x1xf32, #tpu.memory_space<vmem>>, vector<128x1xf32>
    %195 = vector.broadcast %194 : vector<128x1xf32> to vector<128x256xf32>
    %196 = arith.addf %193, %195 : vector<128x256xf32>
    %cst_168 = arith.constant 0.000000e+00 : f32
    %197 = vector.broadcast %cst_168 : f32 to vector<128x256xf32>
    %198 = arith.maximumf %196, %197 : vector<128x256xf32>
    %c0_169 = arith.constant 0 : index
    %c0_170 = arith.constant 0 : index
    %199 = vector.load %arg6[%c0_169, %c0_170] : memref<1x128xf32, #tpu.memory_space<vmem>>, vector<1x128xf32>
    %cst_171 = arith.constant dense<0.000000e+00> : vector<1x256xf32>
    %200 = tpu.matmul %199, %198, %cst_171 {dimension_numbers = #tpu.dot_dimension_numbers<[1], [0], [0], [1], [0, 0, 1, 1], [], []>} : vector<1x128xf32>, vector<128x256xf32>, vector<1x256xf32> -> vector<1x256xf32>
    %c0_172 = arith.constant 0 : index
    %c0_173 = arith.constant 0 : index
    %201 = vector.load %arg7[%c0_172, %c0_173] : memref<1x1xf32, #tpu.memory_space<vmem>>, vector<1x1xf32>
    %202 = vector.broadcast %201 : vector<1x1xf32> to vector<1x256xf32>
    %203 = arith.addf %200, %202 : vector<1x256xf32>
    %c0_174 = arith.constant 0 : index
    %c0_175 = arith.constant 0 : index
    %c0_176 = arith.constant 0 : index
    %204 = vector.load %arg8[%c0_174, %c0_175, %c0_176] : memref<1x1x256xf32, #tpu.memory_space<vmem>>, vector<1x1x256xf32>
    %205 = vector.shape_cast %204 : vector<1x1x256xf32> to vector<1x256xf32>
    %206 = vector.shape_cast %203 : vector<1x256xf32> to vector<1x1x256xf32>
    tpu.vector_store %arg8[%c0_174, %c0_175, %c0_176], %206 {strides = array<i32>} : memref<1x1x256xf32, #tpu.memory_space<vmem>>, vector<1x1x256xf32>,
    return
  }
  func.func @transform_0(%arg0: i32) -> (i32, i32, i32) {
    %c0_i32 = arith.constant 0 : i32
    %c0_i32_0 = arith.constant 0 : i32
    %c0_i32_1 = arith.constant 0 : i32
    return %arg0, %c0_i32, %c0_i32_0 : i32, i32, i32
  }
  func.func @transform_1(%arg0: i32) -> (i32, i32, i32) {
    %c0_i32 = arith.constant 0 : i32
    %c0_i32_0 = arith.constant 0 : i32
    %c0_i32_1 = arith.constant 0 : i32
    %c0_i32_2 = arith.constant 0 : i32
    return %c0_i32, %c0_i32_0, %c0_i32_1 : i32, i32, i32
  }
  func.func @transform_2(%arg0: i32) -> (i32, i32) {
    %c0_i32 = arith.constant 0 : i32
    %c0_i32_0 = arith.constant 0 : i32
    %c0_i32_1 = arith.constant 0 : i32
    return %c0_i32, %c0_i32_0 : i32, i32
  }
  func.func @transform_3(%arg0: i32) -> (i32, i32, i32) {
    %c0_i32 = arith.constant 0 : i32
    %c0_i32_0 = arith.constant 0 : i32
    %c0_i32_1 = arith.constant 0 : i32
    %c0_i32_2 = arith.constant 0 : i32
    return %c0_i32, %c0_i32_0, %c0_i32_1 : i32, i32, i32
  }
  func.func @transform_4(%arg0: i32) -> (i32, i32) {
    %c0_i32 = arith.constant 0 : i32
    %c0_i32_0 = arith.constant 0 : i32
    %c0_i32_1 = arith.constant 0 : i32
    return %c0_i32, %c0_i32_0 : i32, i32
  }
  func.func @transform_5(%arg0: i32) -> (i32, i32) {
    %c0_i32 = arith.constant 0 : i32
    %c0_i32_0 = arith.constant 0 : i32
    %c0_i32_1 = arith.constant 0 : i32
    return %c0_i32, %c0_i32_0 : i32, i32
  }
  func.func @transform_6(%arg0: i32) -> (i32, i32) {
    %c0_i32 = arith.constant 0 : i32
    %c0_i32_0 = arith.constant 0 : i32
    %c0_i32_1 = arith.constant 0 : i32
    return %c0_i32, %c0_i32_0 : i32, i32
  }
  func.func @transform_7(%arg0: i32) -> (i32, i32, i32) {
    %c0_i32 = arith.constant 0 : i32
    %c0_i32_0 = arith.constant 0 : i32
    %c0_i32_1 = arith.constant 0 : i32
    return %arg0, %c0_i32, %c0_i32_0 : i32, i32, i32
  }
}

</mosaic_0001>

<llo_original>
// kernel: simple_cnn_forward.1
$region0: #{simple_cnn_forward.1}
  #allocation0 [shape = 'u32[]', space=smem, size = 0x4, offset = 0x4, fixed_abs, tag = 'smem constant byte address 0x4 - core index']
  #allocation1 [shape = 'u32[72,128]{1,0:T(1,128)}', space=vmem, size = 0x9000, scoped, tag = 'internal scratch']
  #allocation2 [shape = 'f32[3,290]{1,0:T(4,128)}', space=vmem, size = 0x1800, scoped, tag = 'scratch operand']
  #allocation3 [shape = 'f32[64,290]{1,0:T(8,128)}', space=vmem, size = 0x18000, scoped, tag = 'scratch operand']
  #allocation4 [shape = 'f32[128,256]{1,0:T(8,128)}', space=vmem, size = 0x20000, scoped, tag = 'scratch operand']
  #allocation5 [shape = 'f32[1,1]{1,0:T(1,128)S(1)}', space=vmem, size = 0x200, scoped, tag = 'scoped memory for simple_cnn_forward.1']
  %s0 = inlined_call_operand.vmem [shape: f32[2,3,256], index: 0, kind: input, shape index: {}]
  %s1 = inlined_call_operand.vmem [shape: f32[9,64,3], index: 1, kind: input, shape index: {}]
  %s2 = inlined_call_operand.vmem [shape: f32[64,1], index: 2, kind: input, shape index: {}]
  %s3 = inlined_call_operand.vmem [shape: f32[9,128,64], index: 3, kind: input, shape index: {}]
  %s4 = inlined_call_operand.vmem [shape: f32[128,1], index: 4, kind: input, shape index: {}]
  %s5 = inlined_call_operand.vmem [shape: f32[1,128], index: 5, kind: input, shape index: {}]
  %s6 = inlined_call_operand.<no memory space> [shape: f32[1,1], index: 6, kind: input, shape index: {}]
  %s7 = inlined_call_operand.vmem [shape: f32[2,1,256], index: 7, kind: output, shape index: {}]
  %s8 = sld [smem:[#allocation0]]
  $region61: #{simple_cnn_forward.1} parent=0
    _
  %s10 = ssub.s32 1, %s8
  %s11 = scalar_select 0, %s10, %s8
  %v12 = vstv %s6
  %13 = vst [vmem:[#allocation5] sm:$0x1] %v12
  loop: start=0, step=1, limit=4
  $region2: #{simple_cnn_forward.1} parent=0 // loop_pre_header
    _
  $region3: #{simple_cnn_forward.1} parent=0 // loop_header
    %s15 = sphi 0, %s19
    %p16 = scmp.ge.s32.totalorder %s15, 4
    %s25 = sphi 0, %s27
    %s28 = sphi 0, %s25
    %s29 = sphi 0, %s28
    %s45 = sphi 0, %s29
    %s49 = sphi 0, %s49
    %s51 = sphi 0, %s49
    %s52 = sphi 0, %s51
    %s66 = sphi 0, %s52
    %s70 = sphi 0, %s70
    %s72 = sphi 0, %s70
    %s73 = sphi 0, %s72
    %s87 = sphi 0, %s73
    %s91 = sphi 0, %s91
    %s93 = sphi 0, %s91
    %s94 = sphi 0, %s93
    %s108 = sphi 0, %s94
    %s112 = sphi 0, %s112
    %s114 = sphi 0, %s112
    %s115 = sphi 0, %s114
    %s129 = sphi 0, %s115
    %s133 = sphi 0, %s133
    %s135 = sphi 0, %s133
    %s136 = sphi 0, %s135
    %s150 = sphi 0, %s136
    %s154 = sphi 0, %s154
    %s156 = sphi 0, %s154
    %s157 = sphi 0, %s156
    %s171 = sphi 0, %s157
    %s177 = sphi 0, %s179
    %s180 = sphi 0, %s177
    %s181 = sphi 0, %s180
    %s197 = sphi 0, %s181
  $region4: #{simple_cnn_forward.1} parent=0 // loop_header_branch
    %18 = sbr.rel (%p16) target = $region8
  $region5: #{simple_cnn_forward.1} parent=0 // loop_body
    %s20 = ssub.s32 %s15, 1
    %s21 = ssub.s32 %s15, 2
    %s22 = sadd.s32 %s15, 1
    %s23 = ssub.s32 %s15, %s22
    %p24 = scmp.eq.s32.totalorder %s23, 0
    %s26 = sadd.s32 %s25, 1
    %s27 = scalar_select %p24, %s25, %s26
    %p30 = pneg %p24
    %p31 = scmp.eq.s32.totalorder %s15, 1
    %p32 = por %p30, %p31
    %p33 = scmp.ne.s32.totalorder %s25, %s28
    %p34 = scmp.eq.s32.totalorder %s15, 0
    %p35 = por %p33, %p34
    %p36 = scmp.ne.s32.totalorder %s25, %s28
    %p37 = scmp.eq.s32.totalorder %s20, 1
    %p38 = por %p36, %p37
    %p39 = scmp.ne.s32.totalorder %s28, %s29
    %p40 = scmp.eq.s32.totalorder %s20, 0
    %p41 = por %p39, %p40
    %p42 = scmp.ne.s32.totalorder %s28, %s29
    %p43 = scmp.eq.s32.totalorder %s21, 1
    %p44 = por %p42, %p43
    %p46 = scmp.ne.s32.totalorder %s29, %s45
    %p47 = scmp.eq.s32.totalorder %s21, 0
    %p48 = por %p46, %p47
    %s50 = sadd.s32 %s49, 1
    %p53 = scmp.eq.s32.totalorder %s15, 1
    %p54 = scmp.ne.s32.totalorder %s49, %s51
    %p55 = scmp.eq.s32.totalorder %s15, 0
    %p56 = por %p54, %p55
    %p57 = scmp.ne.s32.totalorder %s49, %s51
    %p58 = scmp.eq.s32.totalorder %s20, 1
    %p59 = por %p57, %p58
    %p60 = scmp.ne.s32.totalorder %s51, %s52
    %p61 = scmp.eq.s32.totalorder %s20, 0
    %p62 = por %p60, %p61
    %p63 = scmp.ne.s32.totalorder %s51, %s52
    %p64 = scmp.eq.s32.totalorder %s21, 1
    %p65 = por %p63, %p64
    %p67 = scmp.ne.s32.totalorder %s52, %s66
    %p68 = scmp.eq.s32.totalorder %s21, 0
    %p69 = por %p67, %p68
    %s71 = sadd.s32 %s70, 1
    %p74 = scmp.eq.s32.totalorder %s15, 1
    %p75 = scmp.ne.s32.totalorder %s70, %s72
    %p76 = scmp.eq.s32.totalorder %s15, 0
    %p77 = por %p75, %p76
    %p78 = scmp.ne.s32.totalorder %s70, %s72
    %p79 = scmp.eq.s32.totalorder %s20, 1
    %p80 = por %p78, %p79
    %p81 = scmp.ne.s32.totalorder %s72, %s73
    %p82 = scmp.eq.s32.totalorder %s20, 0
    %p83 = por %p81, %p82
    %p84 = scmp.ne.s32.totalorder %s72, %s73
    %p85 = scmp.eq.s32.totalorder %s21, 1
    %p86 = por %p84, %p85
    %p88 = scmp.ne.s32.totalorder %s73, %s87
    %p89 = scmp.eq.s32.totalorder %s21, 0
    %p90 = por %p88, %p89
    %s92 = sadd.s32 %s91, 1
    %p95 = scmp.eq.s32.totalorder %s15, 1
    %p96 = scmp.ne.s32.totalorder %s91, %s93
    %p97 = scmp.eq.s32.totalorder %s15, 0
    %p98 = por %p96, %p97
    %p99 = scmp.ne.s32.totalorder %s91, %s93
    %p100 = scmp.eq.s32.totalorder %s20, 1
    %p101 = por %p99, %p100
    %p102 = scmp.ne.s32.totalorder %s93, %s94
    %p103 = scmp.eq.s32.totalorder %s20, 0
    %p104 = por %p102, %p103
    %p105 = scmp.ne.s32.totalorder %s93, %s94
    %p106 = scmp.eq.s32.totalorder %s21, 1
    %p107 = por %p105, %p106
    %p109 = scmp.ne.s32.totalorder %s94, %s108
    %p110 = scmp.eq.s32.totalorder %s21, 0
    %p111 = por %p109, %p110
    %s113 = sadd.s32 %s112, 1
    %p116 = scmp.eq.s32.totalorder %s15, 1
    %p117 = scmp.ne.s32.totalorder %s112, %s114
    %p118 = scmp.eq.s32.totalorder %s15, 0
    %p119 = por %p117, %p118
    %p120 = scmp.ne.s32.totalorder %s112, %s114
    %p121 = scmp.eq.s32.totalorder %s20, 1
    %p122 = por %p120, %p121
    %p123 = scmp.ne.s32.totalorder %s114, %s115
    %p124 = scmp.eq.s32.totalorder %s20, 0
    %p125 = por %p123, %p124
    %p126 = scmp.ne.s32.totalorder %s114, %s115
    %p127 = scmp.eq.s32.totalorder %s21, 1
    %p128 = por %p126, %p127
    %p130 = scmp.ne.s32.totalorder %s115, %s129
    %p131 = scmp.eq.s32.totalorder %s21, 0
    %p132 = por %p130, %p131
    %s134 = sadd.s32 %s133, 1
    %p137 = scmp.eq.s32.totalorder %s15, 1
    %p138 = scmp.ne.s32.totalorder %s133, %s135
    %p139 = scmp.eq.s32.totalorder %s15, 0
    %p140 = por %p138, %p139
    %p141 = scmp.ne.s32.totalorder %s133, %s135
    %p142 = scmp.eq.s32.totalorder %s20, 1
    %p143 = por %p141, %p142
    %p144 = scmp.ne.s32.totalorder %s135, %s136
    %p145 = scmp.eq.s32.totalorder %s20, 0
    %p146 = por %p144, %p145
    %p147 = scmp.ne.s32.totalorder %s135, %s136
    %p148 = scmp.eq.s32.totalorder %s21, 1
    %p149 = por %p147, %p148
    %p151 = scmp.ne.s32.totalorder %s136, %s150
    %p152 = scmp.eq.s32.totalorder %s21, 0
    %p153 = por %p151, %p152
    %s155 = sadd.s32 %s154, 1
    %p158 = scmp.eq.s32.totalorder %s15, 1
    %p159 = scmp.ne.s32.totalorder %s154, %s156
    %p160 = scmp.eq.s32.totalorder %s15, 0
    %p161 = por %p159, %p160
    %p162 = scmp.ne.s32.totalorder %s154, %s156
    %p163 = scmp.eq.s32.totalorder %s20, 1
    %p164 = por %p162, %p163
    %p165 = scmp.ne.s32.totalorder %s156, %s157
    %p166 = scmp.eq.s32.totalorder %s20, 0
    %p167 = por %p165, %p166
    %p168 = scmp.ne.s32.totalorder %s156, %s157
    %p169 = scmp.eq.s32.totalorder %s21, 1
    %p170 = por %p168, %p169
    %p172 = scmp.ne.s32.totalorder %s157, %s171
    %p173 = scmp.eq.s32.totalorder %s21, 0
    %p174 = por %p172, %p173
    %s175 = ssub.s32 %s15, %s22
    %p176 = scmp.eq.s32.totalorder %s175, 0
    %s178 = sadd.s32 %s177, 1
    %s179 = scalar_select %p176, %s177, %s178
    %p182 = pneg %p176
    %p183 = scmp.eq.s32.totalorder %s15, 1
    %p184 = por %p182, %p183
    %p185 = scmp.ne.s32.totalorder %s177, %s180
    %p186 = scmp.eq.s32.totalorder %s15, 0
    %p187 = por %p185, %p186
    %p188 = scmp.ne.s32.totalorder %s177, %s180
    %p189 = scmp.eq.s32.totalorder %s20, 1
    %p190 = por %p188, %p189
    %p191 = scmp.ne.s32.totalorder %s180, %s181
    %p192 = scmp.eq.s32.totalorder %s20, 0
    %p193 = por %p191, %p192
    %p194 = scmp.ne.s32.totalorder %s180, %s181
    %p195 = scmp.eq.s32.totalorder %s21, 1
    %p196 = por %p194, %p195
    %p198 = scmp.ne.s32.totalorder %s181, %s197
    %p199 = scmp.eq.s32.totalorder %s21, 0
    %p200 = por %p198, %p199
    %p201 = scmp.le.s32.totalorder 1, %s15
    %p202 = scmp.lt.s32.totalorder %s15, 3
    %p203 = pnand %p201, %p202
    %p204 = pneg %p203
    // Predicated region
    $region9: #{simple_cnn_forward.1} parent=5 // pred_check
      _
    $region10: #{simple_cnn_forward.1} parent=5 // pred_check_branch
      %206 = sbr.rel (%p203) target = $region12
    $region11: #{simple_cnn_forward.1} parent=5 // pred_region
      %s207 = ssub.s32 %s15, 1
      // Predicated region
      $region13: #{simple_cnn_forward.1} parent=11 // pred_check
        %p208 = pneg %p62
      $region14: #{simple_cnn_forward.1} parent=11 // pred_check_branch
        %210 = sbr.rel (%p208) target = $region16
      $region15: #{simple_cnn_forward.1} parent=11 // pred_region
        _
      $region16: #{simple_cnn_forward.1} parent=11 // pred_fallthru
        _
      // Predicated region
      $region17: #{simple_cnn_forward.1} parent=11 // pred_check
        %p211 = pneg %p83
      $region18: #{simple_cnn_forward.1} parent=11 // pred_check_branch
        %213 = sbr.rel (%p211) target = $region20
      $region19: #{simple_cnn_forward.1} parent=11 // pred_region
        _
      $region20: #{simple_cnn_forward.1} parent=11 // pred_fallthru
        _
      // Predicated region
      $region21: #{simple_cnn_forward.1} parent=11 // pred_check
        %p214 = pneg %p104
      $region22: #{simple_cnn_forward.1} parent=11 // pred_check_branch
        %216 = sbr.rel (%p214) target = $region24
      $region23: #{simple_cnn_forward.1} parent=11 // pred_region
        _
      $region24: #{simple_cnn_forward.1} parent=11 // pred_fallthru
        _
      // Predicated region
      $region25: #{simple_cnn_forward.1} parent=11 // pred_check
        %p217 = pneg %p125
      $region26: #{simple_cnn_forward.1} parent=11 // pred_check_branch
        %219 = sbr.rel (%p217) target = $region28
      $region27: #{simple_cnn_forward.1} parent=11 // pred_region
        _
      $region28: #{simple_cnn_forward.1} parent=11 // pred_fallthru
        _
      // Predicated region
      $region29: #{simple_cnn_forward.1} parent=11 // pred_check
        %p220 = pneg %p146
      $region30: #{simple_cnn_forward.1} parent=11 // pred_check_branch
        %222 = sbr.rel (%p220) target = $region32
      $region31: #{simple_cnn_forward.1} parent=11 // pred_region
        _
      $region32: #{simple_cnn_forward.1} parent=11 // pred_fallthru
        _
      // Predicated region
      $region33: #{simple_cnn_forward.1} parent=11 // pred_check
        %p223 = pneg %p167
      $region34: #{simple_cnn_forward.1} parent=11 // pred_check_branch
        %225 = sbr.rel (%p223) target = $region36
      $region35: #{simple_cnn_forward.1} parent=11 // pred_region
        _
      $region36: #{simple_cnn_forward.1} parent=11 // pred_fallthru
        _
    $region12: #{simple_cnn_forward.1} parent=5 // pred_fallthru
      _
    %p226 = scmp.lt.s32.totalorder %s15, 2
    // Predicated region
    $region37: #{simple_cnn_forward.1} parent=5 // pred_check
      %p227 = pneg %p226
    $region38: #{simple_cnn_forward.1} parent=5 // pred_check_branch
      %229 = sbr.rel (%p227) target = $region40
    $region39: #{simple_cnn_forward.1} parent=5 // pred_region
      // Predicated region
      $region41: #{simple_cnn_forward.1} parent=39 // pred_check
        %p230 = pneg %p35
      $region42: #{simple_cnn_forward.1} parent=39 // pred_check_branch
        %232 = sbr.rel (%p230) target = $region44
      $region43: #{simple_cnn_forward.1} parent=39 // pred_region
        %p233 = scmp.lt.s32.totalorder %s15, 1
        %s234 = scalar_select %p233, %s15, 1
        %s235 = smul.addr %s234, 2
        %s236 = smul.addr %s235, 4
        %s237 = scalar_lea.vmem %s0, %s236
      $region44: #{simple_cnn_forward.1} parent=39 // pred_fallthru
        _
    $region40: #{simple_cnn_forward.1} parent=5 // pred_fallthru
      _
    %p238 = scmp.le.s32.totalorder 1, %s15
    %p239 = scmp.lt.s32.totalorder %s15, 3
    %p240 = pnand %p238, %p239
    %p241 = pneg %p240
    // Predicated region
    $region45: #{simple_cnn_forward.1} parent=5 // pred_check
      _
    $region46: #{simple_cnn_forward.1} parent=5 // pred_check_branch
      %243 = sbr.rel (%p240) target = $region48
    $region47: #{simple_cnn_forward.1} parent=5 // pred_region
      %s244 = ssub.s32 %s15, 1
      %p245 = scmp.lt.s32.totalorder %s20, 1
      %s246 = scalar_select %p245, %s20, 1
      %s247 = smul.addr %s246, 2
      %s248 = smul.addr %s247, 4
      %s249 = scalar_lea.vmem %s0, %s248
      %p250 = pneg %p41
      %p251 = pneg %p38
      %p252 = pneg %p62
      %p253 = pneg %p59
      %p254 = pneg %p83
      %p255 = pneg %p80
      %p256 = pneg %p104
      %p257 = pneg %p101
      %p258 = pneg %p125
      %p259 = pneg %p122
      %p260 = pneg %p146
      %p261 = pneg %p143
      %p262 = pneg %p167
      %p263 = pneg %p164
      %p264 = pneg %p193
      %p265 = pneg %p190
      %p266 = scmp.lt.s32.totalorder %s20, 1
      %s267 = scalar_select %p266, %s20, 1
      %s268 = smul.addr %s267, 2
      %s269 = scalar_lea.vmem %s7, %s268
      %p270 = scmp.lt.s32.totalorder %s20, 1
      %s271 = scalar_select %p270, %s20, 1
      %s272 = smul.addr %s271, 2
      %s273 = smul.addr %s272, 4
      %s274 = scalar_lea.vmem %s0, %s273
      %p275 = scmp.lt.s32.totalorder %s20, 1
      %s276 = scalar_select %p275, %s20, 1
      %s277 = smul.addr %s276, 2
      %s278 = scalar_lea.vmem %s7, %s277
      %v279 = vlaneseq
      %v280 = vand.u32 %v279, 127
      %v281 = vadd.s32 %v280, 128
      %vm282 = vcmp.lt.s32.totalorder %v280, 0
      %v283 = vsub.s32 0, %v280
      %v284 = vsel %vm282, %v283, %v280
      %v285 = vshrl.u32 %v284, 4
      %v286 = vand.u32 %v284, 15
      %v287 = vsub.s32 0, %v286
      %v288 = vsel %vm282, %v287, %v286
      %vm289 = vcmp.lt.s32.totalorder %v281, 0
      %v290 = vsub.s32 0, %v281
      %v291 = vsel %vm289, %v290, %v281
      %v292 = vshrl.u32 %v291, 4
      %v293 = vand.u32 %v291, 15
      %v294 = vsub.s32 0, %v293
      %v295 = vsel %vm289, %v294, %v293
      %vm296 = vcmp.ne.s32.totalorder %v288, 0
      %vm297 = vcmp.ne.s32.totalorder %v295, 0
      %vm298 = vcmp.lt.s32.totalorder %v288, 0
      %vm299 = vcmp.lt.s32.totalorder %v295, 0
      %vm300 = vmand %vm298, %vm296
      %vm301 = vmand %vm299, %vm297
      %v302 = vadd.s32 %v288, 16
      %v303 = vadd.s32 %v295, 16
      %v304 = vsel %vm300, %v302, %v288
      %v305 = vsel %vm301, %v303, %v295
      %vm306 = vcmp.ge.s32.totalorder %v304, 1
      %vm307 = vcmp.ge.s32.totalorder %v305, 1
      %vm308 = vcmp.le.s32.totalorder %v304, 14
      %vm309 = vcmp.le.s32.totalorder %v305, 14
      %310 = vst [vmem:[#allocation2] sm:$0x77] 0.0
      %vm311 = vcmask 272384
      %312 = vst.msk [vmem:[#allocation2 + $0x8] sm:$0x7] %vm311, 0.0
      %v313 = vld [vmem:[%s274] sm:$0x77]
      %315 = vrot.lane.b32.xlu0 %v313, 17
      %v316 = vpop.permute.xlu0 %315
      %v317 = vrot.slane %v316, 4
      %vm318 = vcmask 138240
      %v319 = vsel %vm318, %v317, %v316
      %vm322 = vcmask 1042568
      %vm323 = vcmask 1046532
      %vm324 = vmor %vm323, %vm322
      %325 = vst.msk [vmem:[#allocation2] sm:$0x77] %vm324, %v319
      %vm326 = vcmask 133120
      %327 = vst.msk [vmem:[#allocation2 + $0x8] sm:$0x7] %vm326, %v317
      %v328 = vld [vmem:[#allocation2] sm:$0x77]
      %v329 = vsel %vm306, 1, 0
      %v330 = vsel %vm307, 1, 0
      %vm331 = vcmp.eq.s32.totalorder %v329, 1
      %vm332 = vcmp.eq.s32.totalorder %v330, 1
      %334 = vst [vmem:[#allocation1] ss:$2 sm:$0xff] %v328
      %v335 = vld.sshfl [vmem:[#allocation1] sm:$0xff pattern:$0x75316420]
      %v336 = vld.sshfl [vmem:[#allocation1 + $0x8] sm:$0xff pattern:$0x75316420]
      %v339 = vsel %vm331, %v335, 0.0
      %v340 = vsel %vm332, %v336, 0.0
      %v341 = vld [vmem:[%s1] sm:$0xff]
      %v342 = vld [vmem:[%s1 + $0x8] sm:$0xff]
      %v343 = vld [vmem:[%s1 + $0x10] sm:$0xff]
      %v344 = vld [vmem:[%s1 + $0x18] sm:$0xff]
      %v345 = vld [vmem:[%s1 + $0x20] sm:$0xff]
      %v346 = vld [vmem:[%s1 + $0x28] sm:$0xff]
      %v347 = vld [vmem:[%s1 + $0x30] sm:$0xff]
      %v348 = vld [vmem:[%s1 + $0x38] sm:$0xff]
      %v349 = vld [vmem:[#allocation2] sm:$0x77]
      %v350 = vld [vmem:[#allocation2 + $0x8] sm:$0x7]
      %s351 = scalar_lea.vmem %s1, 64
      %v352 = vld [vmem:[%s351] sm:$0xff]
      %v353 = vld [vmem:[%s351 + $0x8] sm:$0xff]
      %v354 = vld [vmem:[%s351 + $0x10] sm:$0xff]
      %v355 = vld [vmem:[%s351 + $0x18] sm:$0xff]
      %v356 = vld [vmem:[%s351 + $0x20] sm:$0xff]
      %v357 = vld [vmem:[%s351 + $0x28] sm:$0xff]
      %v358 = vld [vmem:[%s351 + $0x30] sm:$0xff]
      %v359 = vld [vmem:[%s351 + $0x38] sm:$0xff]
      %362 = vst [vmem:[#allocation1] ss:$2 sm:$0xff] %v349
      %s363 = scalar_lea.vmem [#allocation1], 16
      %364 = vst [vmem:[%s363] ss:$2 sm:$0xff] %v350
      %v365 = vld.sshfl [vmem:[#allocation1] sm:$0xff pattern:$0x75316420]
      %v366 = vld.sshfl [vmem:[#allocation1 + $0x8] sm:$0xff pattern:$0x75316420]
      %v367 = vld.sshfl [vmem:[#allocation1 + $0x10] sm:$0xff pattern:$0x75316420]
      %368 = vrot.lane.b32.xlu0 %v365, 127
      %v369 = vpop.permute.xlu0 %368
      %370 = vrot.lane.b32.xlu0 %v366, 127
      %v371 = vpop.permute.xlu0 %370
      %372 = vrot.lane.b32.xlu0 %v367, 127
      %v373 = vpop.permute.xlu0 %372
      %vm374 = vcmask 1039360
      %v375 = vsel %vm374, %v369, %v371
      %v376 = vsel %vm374, %v371, %v373
      %vm377 = vcmask 23552
      %v379 = vsel %vm377, %v352, 0
      %v382 = vsel %vm377, %v353, 0
      %v385 = vsel %vm377, %v354, 0
      %v388 = vsel %vm377, %v355, 0
      %v391 = vsel %vm377, %v356, 0
      %v394 = vsel %vm377, %v357, 0
      %v397 = vsel %vm377, %v358, 0
      %v400 = vsel %vm377, %v359, 0
      %vm402 = vcmask 1042432
      %v403 = vsel %vm402, %v375, 0
      %v405 = vsel %vm402, %v376, 0
      %407 = vmatpush.msra.mxu0 0.0
      %408 = vmatpush.msra.mxu0 0.0
      %409 = vmatpush.msra.mxu0 0.0
      %410 = vmatpush.msra.mxu0 0.0
      %411 = vmatpush.msra.mxu0 0.0
      %412 = vmatpush.msra.mxu0 0.0
      %413 = vmatpush.msra.mxu0 0.0
      %414 = vmatpush.msra.mxu0 0.0
      %415 = vmatpush.msra.mxu0 0.0
      %416 = vmatpush.msra.mxu0 0.0
      %417 = vmatpush.msra.mxu0 0.0
      %418 = vmatpush.msra.mxu0 0.0
      %419 = vmatpush.msra.mxu0 0.0
      %420 = vmatpush.msra.mxu0 0.0
      %421 = vmatpush.msra.mxu0 0.0
      %422 = vmatpush.msra.mxu0 %v403
      %423 = vmatmul.f32.gmra.mxu0 %v379
      %v424 = vpop.f32.mrf.mxu0
      %v425 = vadd.f32 0.0, %v424
      %426 = vmatmul.f32.gmra.mxu0 %v382
      %v427 = vpop.f32.mrf.mxu0
      %v428 = vadd.f32 0.0, %v427
      %429 = vmatmul.f32.gmra.mxu0 %v385
      %v430 = vpop.f32.mrf.mxu0
      %v431 = vadd.f32 0.0, %v430
      %432 = vmatmul.f32.gmra.mxu0 %v388
      %v433 = vpop.f32.mrf.mxu0
      %v434 = vadd.f32 0.0, %v433
      %435 = vmatmul.f32.gmra.mxu0 %v391
      %v436 = vpop.f32.mrf.mxu0
      %v437 = vadd.f32 0.0, %v436
      %438 = vmatmul.f32.gmra.mxu0 %v394
      %v439 = vpop.f32.mrf.mxu0
      %v440 = vadd.f32 0.0, %v439
      %441 = vmatmul.f32.gmra.mxu0 %v397
      %v442 = vpop.f32.mrf.mxu0
      %v443 = vadd.f32 0.0, %v442
      %444 = vmatmul.f32.gmra.mxu0 %v400
      %v445 = vpop.f32.mrf.mxu0
      %v446 = vadd.f32 0.0, %v445
      %447 = vdwg.mxu0
      %448 = vmatpush.msra.mxu0 0.0
      %449 = vmatpush.msra.mxu0 0.0
      %450 = vmatpush.msra.mxu0 0.0
      %451 = vmatpush.msra.mxu0 0.0
      %452 = vmatpush.msra.mxu0 0.0
      %453 = vmatpush.msra.mxu0 0.0
      %454 = vmatpush.msra.mxu0 0.0
      %455 = vmatpush.msra.mxu0 0.0
      %456 = vmatpush.msra.mxu0 0.0
      %457 = vmatpush.msra.mxu0 0.0
      %458 = vmatpush.msra.mxu0 0.0
      %459 = vmatpush.msra.mxu0 0.0
      %460 = vmatpush.msra.mxu0 0.0
      %461 = vmatpush.msra.mxu0 0.0
      %462 = vmatpush.msra.mxu0 0.0
      %463 = vmatpush.msra.mxu0 %v405
      %464 = vmatmul.f32.gmra.mxu0 %v379
      %v465 = vpop.f32.mrf.mxu0
      %v466 = vadd.f32 0.0, %v465
      %467 = vmatmul.f32.gmra.mxu0 %v382
      %v468 = vpop.f32.mrf.mxu0
      %v469 = vadd.f32 0.0, %v468
      %470 = vmatmul.f32.gmra.mxu0 %v385
      %v471 = vpop.f32.mrf.mxu0
      %v472 = vadd.f32 0.0, %v471
      %473 = vmatmul.f32.gmra.mxu0 %v388
      %v474 = vpop.f32.mrf.mxu0
      %v475 = vadd.f32 0.0, %v474
      %476 = vmatmul.f32.gmra.mxu0 %v391
      %v477 = vpop.f32.mrf.mxu0
      %v478 = vadd.f32 0.0, %v477
      %479 = vmatmul.f32.gmra.mxu0 %v394
      %v480 = vpop.f32.mrf.mxu0
      %v481 = vadd.f32 0.0, %v480
      %482 = vmatmul.f32.gmra.mxu0 %v397
      %v483 = vpop.f32.mrf.mxu0
      %v484 = vadd.f32 0.0, %v483
      %485 = vmatmul.f32.gmra.mxu0 %v400
      %v486 = vpop.f32.mrf.mxu0
      %v487 = vadd.f32 0.0, %v486
      %488 = vdwg.mxu0
      %v490 = vsel %vm377, %v341, 0
      %v493 = vsel %vm377, %v342, 0
      %v496 = vsel %vm377, %v343, 0
      %v499 = vsel %vm377, %v344, 0
      %v502 = vsel %vm377, %v345, 0
      %v505 = vsel %vm377, %v346, 0
      %v508 = vsel %vm377, %v347, 0
      %v511 = vsel %vm377, %v348, 0
      %v514 = vsel %vm402, %v339, 0
      %v517 = vsel %vm402, %v340, 0
      %519 = vmatpush.msra.mxu0 0.0
      %520 = vmatpush.msra.mxu0 0.0
      %521 = vmatpush.msra.mxu0 0.0
      %522 = vmatpush.msra.mxu0 0.0
      %523 = vmatpush.msra.mxu0 0.0
      %524 = vmatpush.msra.mxu0 0.0
      %525 = vmatpush.msra.mxu0 0.0
      %526 = vmatpush.msra.mxu0 0.0
      %527 = vmatpush.msra.mxu0 0.0
      %528 = vmatpush.msra.mxu0 0.0
      %529 = vmatpush.msra.mxu0 0.0
      %530 = vmatpush.msra.mxu0 0.0
      %531 = vmatpush.msra.mxu0 0.0
      %532 = vmatpush.msra.mxu0 0.0
      %533 = vmatpush.msra.mxu0 0.0
      %534 = vmatpush.msra.mxu0 %v514
      %535 = vmatmul.f32.gmra.mxu0 %v490
      %v536 = vpop.f32.mrf.mxu0
      %v537 = vadd.f32 %v425, %v536
      %538 = vmatmul.f32.gmra.mxu0 %v493
      %v539 = vpop.f32.mrf.mxu0
      %v540 = vadd.f32 %v428, %v539
      %541 = vmatmul.f32.gmra.mxu0 %v496
      %v542 = vpop.f32.mrf.mxu0
      %v543 = vadd.f32 %v431, %v542
      %544 = vmatmul.f32.gmra.mxu0 %v499
      %v545 = vpop.f32.mrf.mxu0
      %v546 = vadd.f32 %v434, %v545
      %547 = vmatmul.f32.gmra.mxu0 %v502
      %v548 = vpop.f32.mrf.mxu0
      %v549 = vadd.f32 %v437, %v548
      %550 = vmatmul.f32.gmra.mxu0 %v505
      %v551 = vpop.f32.mrf.mxu0
      %v552 = vadd.f32 %v440, %v551
      %553 = vmatmul.f32.gmra.mxu0 %v508
      %v554 = vpop.f32.mrf.mxu0
      %v555 = vadd.f32 %v443, %v554
      %556 = vmatmul.f32.gmra.mxu0 %v511
      %v557 = vpop.f32.mrf.mxu0
      %v558 = vadd.f32 %v446, %v557
      %559 = vdwg.mxu0
      %560 = vmatpush.msra.mxu0 0.0
      %561 = vmatpush.msra.mxu0 0.0
      %562 = vmatpush.msra.mxu0 0.0
      %563 = vmatpush.msra.mxu0 0.0
      %564 = vmatpush.msra.mxu0 0.0
      %565 = vmatpush.msra.mxu0 0.0
      %566 = vmatpush.msra.mxu0 0.0
      %567 = vmatpush.msra.mxu0 0.0
      %568 = vmatpush.msra.mxu0 0.0
      %569 = vmatpush.msra.mxu0 0.0
      %570 = vmatpush.msra.mxu0 0.0
      %571 = vmatpush.msra.mxu0 0.0
      %572 = vmatpush.msra.mxu0 0.0
      %573 = vmatpush.msra.mxu0 0.0
      %574 = vmatpush.msra.mxu0 0.0
      %575 = vmatpush.msra.mxu0 %v517
      %576 = vmatmul.f32.gmra.mxu0 %v490
      %v577 = vpop.f32.mrf.mxu0
      %v578 = vadd.f32 %v466, %v577
      %579 = vmatmul.f32.gmra.mxu0 %v493
      %v580 = vpop.f32.mrf.mxu0
      %v581 = vadd.f32 %v469, %v580
      %582 = vmatmul.f32.gmra.mxu0 %v496
      %v583 = vpop.f32.mrf.mxu0
      %v584 = vadd.f32 %v472, %v583
      %585 = vmatmul.f32.gmra.mxu0 %v499
      %v586 = vpop.f32.mrf.mxu0
      %v587 = vadd.f32 %v475, %v586
      %588 = vmatmul.f32.gmra.mxu0 %v502
      %v589 = vpop.f32.mrf.mxu0
      %v590 = vadd.f32 %v478, %v589
      %591 = vmatmul.f32.gmra.mxu0 %v505
      %v592 = vpop.f32.mrf.mxu0
      %v593 = vadd.f32 %v481, %v592
      %594 = vmatmul.f32.gmra.mxu0 %v508
      %v595 = vpop.f32.mrf.mxu0
      %v596 = vadd.f32 %v484, %v595
      %597 = vmatmul.f32.gmra.mxu0 %v511
      %v598 = vpop.f32.mrf.mxu0
      %v599 = vadd.f32 %v487, %v598
      %600 = vdwg.mxu0
      %v601 = vld [vmem:[#allocation2] sm:$0x77]
      %v602 = vld [vmem:[#allocation2 + $0x8] sm:$0x7]
      %v603 = vsel %vm308, 1, 0
      %v604 = vsel %vm309, 1, 0
      %vm605 = vcmp.eq.s32.totalorder %v603, 1
      %vm606 = vcmp.eq.s32.totalorder %v604, 1
      %609 = vst [vmem:[#allocation1] ss:$2 sm:$0xff] %v601
      %s610 = scalar_lea.vmem [#allocation1], 16
      %611 = vst [vmem:[%s610] ss:$2 sm:$0xff] %v602
      %v612 = vld.sshfl [vmem:[#allocation1] sm:$0xff pattern:$0x75316420]
      %v613 = vld.sshfl [vmem:[#allocation1 + $0x8] sm:$0xff pattern:$0x75316420]
      %v614 = vld.sshfl [vmem:[#allocation1 + $0x10] sm:$0xff pattern:$0x75316420]
      %615 = vrot.lane.b32.xlu0 %v612, 126
      %v616 = vpop.permute.xlu0 %615
      %617 = vrot.lane.b32.xlu0 %v613, 126
      %v618 = vpop.permute.xlu0 %617
      %619 = vrot.lane.b32.xlu0 %v614, 126
      %v620 = vpop.permute.xlu0 %619
      %vm621 = vcmask 1031168
      %v622 = vsel %vm621, %v616, %v618
      %v623 = vsel %vm621, %v618, %v620
      %v626 = vsel %vm605, %v622, 0.0
      %v627 = vsel %vm606, %v623, 0.0
      %s628 = scalar_lea.vmem %s1, 128
      %v629 = vld [vmem:[%s628] sm:$0xff]
      %v630 = vld [vmem:[%s628 + $0x8] sm:$0xff]
      %v631 = vld [vmem:[%s628 + $0x10] sm:$0xff]
      %v632 = vld [vmem:[%s628 + $0x18] sm:$0xff]
      %v633 = vld [vmem:[%s628 + $0x20] sm:$0xff]
      %v634 = vld [vmem:[%s628 + $0x28] sm:$0xff]
      %v635 = vld [vmem:[%s628 + $0x30] sm:$0xff]
      %v636 = vld [vmem:[%s628 + $0x38] sm:$0xff]
      %v638 = vsel %vm377, %v629, 0
      %v641 = vsel %vm377, %v630, 0
      %v644 = vsel %vm377, %v631, 0
      %v647 = vsel %vm377, %v632, 0
      %v650 = vsel %vm377, %v633, 0
      %v653 = vsel %vm377, %v634, 0
      %v656 = vsel %vm377, %v635, 0
      %v659 = vsel %vm377, %v636, 0
      %v662 = vsel %vm402, %v626, 0
      %v665 = vsel %vm402, %v627, 0
      %667 = vmatpush.msra.mxu0 0.0
      %668 = vmatpush.msra.mxu0 0.0
      %669 = vmatpush.msra.mxu0 0.0
      %670 = vmatpush.msra.mxu0 0.0
      %671 = vmatpush.msra.mxu0 0.0
      %672 = vmatpush.msra.mxu0 0.0
      %673 = vmatpush.msra.mxu0 0.0
      %674 = vmatpush.msra.mxu0 0.0
      %675 = vmatpush.msra.mxu0 0.0
      %676 = vmatpush.msra.mxu0 0.0
      %677 = vmatpush.msra.mxu0 0.0
      %678 = vmatpush.msra.mxu0 0.0
      %679 = vmatpush.msra.mxu0 0.0
      %680 = vmatpush.msra.mxu0 0.0
      %681 = vmatpush.msra.mxu0 0.0
      %682 = vmatpush.msra.mxu0 %v662
      %683 = vmatmul.f32.gmra.mxu0 %v638
      %v684 = vpop.f32.mrf.mxu0
      %v685 = vadd.f32 0.0, %v684
      %686 = vmatmul.f32.gmra.mxu0 %v641
      %v687 = vpop.f32.mrf.mxu0
      %v688 = vadd.f32 0.0, %v687
      %689 = vmatmul.f32.gmra.mxu0 %v644
      %v690 = vpop.f32.mrf.mxu0
      %v691 = vadd.f32 0.0, %v690
      %692 = vmatmul.f32.gmra.mxu0 %v647
      %v693 = vpop.f32.mrf.mxu0
      %v694 = vadd.f32 0.0, %v693
      %695 = vmatmul.f32.gmra.mxu0 %v650
      %v696 = vpop.f32.mrf.mxu0
      %v697 = vadd.f32 0.0, %v696
      %698 = vmatmul.f32.gmra.mxu0 %v653
      %v699 = vpop.f32.mrf.mxu0
      %v700 = vadd.f32 0.0, %v699
      %701 = vmatmul.f32.gmra.mxu0 %v656
      %v702 = vpop.f32.mrf.mxu0
      %v703 = vadd.f32 0.0, %v702
      %704 = vmatmul.f32.gmra.mxu0 %v659
      %v705 = vpop.f32.mrf.mxu0
      %v706 = vadd.f32 0.0, %v705
      %707 = vdwg.mxu0
      %708 = vmatpush.msra.mxu0 0.0
      %709 = vmatpush.msra.mxu0 0.0
      %710 = vmatpush.msra.mxu0 0.0
      %711 = vmatpush.msra.mxu0 0.0
      %712 = vmatpush.msra.mxu0 0.0
      %713 = vmatpush.msra.mxu0 0.0
      %714 = vmatpush.msra.mxu0 0.0
      %715 = vmatpush.msra.mxu0 0.0
      %716 = vmatpush.msra.mxu0 0.0
      %717 = vmatpush.msra.mxu0 0.0
      %718 = vmatpush.msra.mxu0 0.0
      %719 = vmatpush.msra.mxu0 0.0
      %720 = vmatpush.msra.mxu0 0.0
      %721 = vmatpush.msra.mxu0 0.0
      %722 = vmatpush.msra.mxu0 0.0
      %723 = vmatpush.msra.mxu0 %v665
      %724 = vmatmul.f32.gmra.mxu0 %v638
      %v725 = vpop.f32.mrf.mxu0
      %v726 = vadd.f32 0.0, %v725
      %727 = vmatmul.f32.gmra.mxu0 %v641
      %v728 = vpop.f32.mrf.mxu0
      %v729 = vadd.f32 0.0, %v728
      %730 = vmatmul.f32.gmra.mxu0 %v644
      %v731 = vpop.f32.mrf.mxu0
      %v732 = vadd.f32 0.0, %v731
      %733 = vmatmul.f32.gmra.mxu0 %v647
      %v734 = vpop.f32.mrf.mxu0
      %v735 = vadd.f32 0.0, %v734
      %736 = vmatmul.f32.gmra.mxu0 %v650
      %v737 = vpop.f32.mrf.mxu0
      %v738 = vadd.f32 0.0, %v737
      %739 = vmatmul.f32.gmra.mxu0 %v653
      %v740 = vpop.f32.mrf.mxu0
      %v741 = vadd.f32 0.0, %v740
      %742 = vmatmul.f32.gmra.mxu0 %v656
      %v743 = vpop.f32.mrf.mxu0
      %v744 = vadd.f32 0.0, %v743
      %745 = vmatmul.f32.gmra.mxu0 %v659
      %v746 = vpop.f32.mrf.mxu0
      %v747 = vadd.f32 0.0, %v746
      %748 = vdwg.mxu0
      %v749 = vadd.f32 %v537, %v685
      %v750 = vadd.f32 %v578, %v726
      %v751 = vadd.f32 %v540, %v688
      %v752 = vadd.f32 %v581, %v729
      %v753 = vadd.f32 %v543, %v691
      %v754 = vadd.f32 %v584, %v732
      %v755 = vadd.f32 %v546, %v694
      %v756 = vadd.f32 %v587, %v735
      %v757 = vadd.f32 %v549, %v697
      %v758 = vadd.f32 %v590, %v738
      %v759 = vadd.f32 %v552, %v700
      %v760 = vadd.f32 %v593, %v741
      %v761 = vadd.f32 %v555, %v703
      %v762 = vadd.f32 %v596, %v744
      %v763 = vadd.f32 %v558, %v706
      %v764 = vadd.f32 %v599, %v747
      %v765 = vld [vmem:[#allocation2] sm:$0x77]
      %v766 = vld [vmem:[#allocation2 + $0x8] sm:$0x7]
      %769 = vst [vmem:[#allocation1] ss:$2 sm:$0xff] %v765
      %s770 = scalar_lea.vmem [#allocation1], 16
      %771 = vst [vmem:[%s770] ss:$2 sm:$0xff] %v766
      %v772 = vld.sshfl [vmem:[#allocation1] sm:$0xff pattern:$0x75316420]
      %v773 = vld.sshfl [vmem:[#allocation1 + $0x8] sm:$0xff pattern:$0x75316420]
      %v774 = vld.sshfl [vmem:[#allocation1 + $0x10] sm:$0xff pattern:$0x75316420]
      %775 = vrot.lane.b32.xlu0 %v772, 112
      %v776 = vpop.permute.xlu0 %775
      %777 = vrot.lane.b32.xlu0 %v773, 112
      %v778 = vpop.permute.xlu0 %777
      %779 = vrot.lane.b32.xlu0 %v774, 112
      %v780 = vpop.permute.xlu0 %779
      %vm781 = vcmask 916480
      %v782 = vsel %vm781, %v776, %v778
      %v783 = vsel %vm781, %v778, %v780
      %v786 = vsel %vm331, %v782, 0.0
      %v787 = vsel %vm332, %v783, 0.0
      %s788 = scalar_lea.vmem %s1, 192
      %v789 = vld [vmem:[%s788] sm:$0xff]
      %v790 = vld [vmem:[%s788 + $0x8] sm:$0xff]
      %v791 = vld [vmem:[%s788 + $0x10] sm:$0xff]
      %v792 = vld [vmem:[%s788 + $0x18] sm:$0xff]
      %v793 = vld [vmem:[%s788 + $0x20] sm:$0xff]
      %v794 = vld [vmem:[%s788 + $0x28] sm:$0xff]
      %v795 = vld [vmem:[%s788 + $0x30] sm:$0xff]
      %v796 = vld [vmem:[%s788 + $0x38] sm:$0xff]
      %v798 = vsel %vm377, %v789, 0
      %v801 = vsel %vm377, %v790, 0
      %v804 = vsel %vm377, %v791, 0
      %v807 = vsel %vm377, %v792, 0
      %v810 = vsel %vm377, %v793, 0
      %v813 = vsel %vm377, %v794, 0
      %v816 = vsel %vm377, %v795, 0
      %v819 = vsel %vm377, %v796, 0
      %v822 = vsel %vm402, %v786, 0
      %v825 = vsel %vm402, %v787, 0
      %827 = vmatpush.msra.mxu0 0.0
      %828 = vmatpush.msra.mxu0 0.0
      %829 = vmatpush.msra.mxu0 0.0
      %830 = vmatpush.msra.mxu0 0.0
      %831 = vmatpush.msra.mxu0 0.0
      %832 = vmatpush.msra.mxu0 0.0
      %833 = vmatpush.msra.mxu0 0.0
      %834 = vmatpush.msra.mxu0 0.0
      %835 = vmatpush.msra.mxu0 0.0
      %836 = vmatpush.msra.mxu0 0.0
      %837 = vmatpush.msra.mxu0 0.0
      %838 = vmatpush.msra.mxu0 0.0
      %839 = vmatpush.msra.mxu0 0.0
      %840 = vmatpush.msra.mxu0 0.0
      %841 = vmatpush.msra.mxu0 0.0
      %842 = vmatpush.msra.mxu0 %v822
      %843 = vmatmul.f32.gmra.mxu0 %v798
      %v844 = vpop.f32.mrf.mxu0
      %v845 = vadd.f32 0.0, %v844
      %846 = vmatmul.f32.gmra.mxu0 %v801
      %v847 = vpop.f32.mrf.mxu0
      %v848 = vadd.f32 0.0, %v847
      %849 = vmatmul.f32.gmra.mxu0 %v804
      %v850 = vpop.f32.mrf.mxu0
      %v851 = vadd.f32 0.0, %v850
      %852 = vmatmul.f32.gmra.mxu0 %v807
      %v853 = vpop.f32.mrf.mxu0
      %v854 = vadd.f32 0.0, %v853
      %855 = vmatmul.f32.gmra.mxu0 %v810
      %v856 = vpop.f32.mrf.mxu0
      %v857 = vadd.f32 0.0, %v856
      %858 = vmatmul.f32.gmra.mxu0 %v813
      %v859 = vpop.f32.mrf.mxu0
      %v860 = vadd.f32 0.0, %v859
      %861 = vmatmul.f32.gmra.mxu0 %v816
      %v862 = vpop.f32.mrf.mxu0
      %v863 = vadd.f32 0.0, %v862
      %864 = vmatmul.f32.gmra.mxu0 %v819
      %v865 = vpop.f32.mrf.mxu0
      %v866 = vadd.f32 0.0, %v865
      %867 = vdwg.mxu0
      %868 = vmatpush.msra.mxu0 0.0
      %869 = vmatpush.msra.mxu0 0.0
      %870 = vmatpush.msra.mxu0 0.0
      %871 = vmatpush.msra.mxu0 0.0
      %872 = vmatpush.msra.mxu0 0.0
      %873 = vmatpush.msra.mxu0 0.0
      %874 = vmatpush.msra.mxu0 0.0
      %875 = vmatpush.msra.mxu0 0.0
      %876 = vmatpush.msra.mxu0 0.0
      %877 = vmatpush.msra.mxu0 0.0
      %878 = vmatpush.msra.mxu0 0.0
      %879 = vmatpush.msra.mxu0 0.0
      %880 = vmatpush.msra.mxu0 0.0
      %881 = vmatpush.msra.mxu0 0.0
      %882 = vmatpush.msra.mxu0 0.0
      %883 = vmatpush.msra.mxu0 %v825
      %884 = vmatmul.f32.gmra.mxu0 %v798
      %v885 = vpop.f32.mrf.mxu0
      %v886 = vadd.f32 0.0, %v885
      %887 = vmatmul.f32.gmra.mxu0 %v801
      %v888 = vpop.f32.mrf.mxu0
      %v889 = vadd.f32 0.0, %v888
      %890 = vmatmul.f32.gmra.mxu0 %v804
      %v891 = vpop.f32.mrf.mxu0
      %v892 = vadd.f32 0.0, %v891
      %893 = vmatmul.f32.gmra.mxu0 %v807
      %v894 = vpop.f32.mrf.mxu0
      %v895 = vadd.f32 0.0, %v894
      %896 = vmatmul.f32.gmra.mxu0 %v810
      %v897 = vpop.f32.mrf.mxu0
      %v898 = vadd.f32 0.0, %v897
      %899 = vmatmul.f32.gmra.mxu0 %v813
      %v900 = vpop.f32.mrf.mxu0
      %v901 = vadd.f32 0.0, %v900
      %902 = vmatmul.f32.gmra.mxu0 %v816
      %v903 = vpop.f32.mrf.mxu0
      %v904 = vadd.f32 0.0, %v903
      %905 = vmatmul.f32.gmra.mxu0 %v819
      %v906 = vpop.f32.mrf.mxu0
      %v907 = vadd.f32 0.0, %v906
      %908 = vdwg.mxu0
      %v909 = vadd.f32 %v749, %v845
      %v910 = vadd.f32 %v750, %v886
      %v911 = vadd.f32 %v751, %v848
      %v912 = vadd.f32 %v752, %v889
      %v913 = vadd.f32 %v753, %v851
      %v914 = vadd.f32 %v754, %v892
      %v915 = vadd.f32 %v755, %v854
      %v916 = vadd.f32 %v756, %v895
      %v917 = vadd.f32 %v757, %v857
      %v918 = vadd.f32 %v758, %v898
      %v919 = vadd.f32 %v759, %v860
      %v920 = vadd.f32 %v760, %v901
      %v921 = vadd.f32 %v761, %v863
      %v922 = vadd.f32 %v762, %v904
      %v923 = vadd.f32 %v763, %v866
      %v924 = vadd.f32 %v764, %v907
      %v925 = vld [vmem:[#allocation2] sm:$0x77]
      %v926 = vld [vmem:[#allocation2 + $0x8] sm:$0x7]
      %s927 = scalar_lea.vmem %s1, 256
      %v928 = vld [vmem:[%s927] sm:$0xff]
      %v929 = vld [vmem:[%s927 + $0x8] sm:$0xff]
      %v930 = vld [vmem:[%s927 + $0x10] sm:$0xff]
      %v931 = vld [vmem:[%s927 + $0x18] sm:$0xff]
      %v932 = vld [vmem:[%s927 + $0x20] sm:$0xff]
      %v933 = vld [vmem:[%s927 + $0x28] sm:$0xff]
      %v934 = vld [vmem:[%s927 + $0x30] sm:$0xff]
      %v935 = vld [vmem:[%s927 + $0x38] sm:$0xff]
      %938 = vst [vmem:[#allocation1] ss:$2 sm:$0xff] %v925
      %s939 = scalar_lea.vmem [#allocation1], 16
      %940 = vst [vmem:[%s939] ss:$2 sm:$0xff] %v926
      %v941 = vld.sshfl [vmem:[#allocation1] sm:$0xff pattern:$0x75316420]
      %v942 = vld.sshfl [vmem:[#allocation1 + $0x8] sm:$0xff pattern:$0x75316420]
      %v943 = vld.sshfl [vmem:[#allocation1 + $0x10] sm:$0xff pattern:$0x75316420]
      %944 = vrot.lane.b32.xlu0 %v941, 111
      %v945 = vpop.permute.xlu0 %944
      %946 = vrot.lane.b32.xlu0 %v942, 111
      %v947 = vpop.permute.xlu0 %946
      %948 = vrot.lane.b32.xlu0 %v943, 111
      %v949 = vpop.permute.xlu0 %948
      %vm950 = vcmask 908288
      %v951 = vsel %vm950, %v945, %v947
      %v952 = vsel %vm950, %v947, %v949
      %v954 = vsel %vm377, %v928, 0
      %v957 = vsel %vm377, %v929, 0
      %v960 = vsel %vm377, %v930, 0
      %v963 = vsel %vm377, %v931, 0
      %v966 = vsel %vm377, %v932, 0
      %v969 = vsel %vm377, %v933, 0
      %v972 = vsel %vm377, %v934, 0
      %v975 = vsel %vm377, %v935, 0
      %v977 = vsel %vm402, %v951, 0
      %v979 = vsel %vm402, %v952, 0
      %981 = vmatpush.msra.mxu0 0.0
      %982 = vmatpush.msra.mxu0 0.0
      %983 = vmatpush.msra.mxu0 0.0
      %984 = vmatpush.msra.mxu0 0.0
      %985 = vmatpush.msra.mxu0 0.0
      %986 = vmatpush.msra.mxu0 0.0
      %987 = vmatpush.msra.mxu0 0.0
      %988 = vmatpush.msra.mxu0 0.0
      %989 = vmatpush.msra.mxu0 0.0
      %990 = vmatpush.msra.mxu0 0.0
      %991 = vmatpush.msra.mxu0 0.0
      %992 = vmatpush.msra.mxu0 0.0
      %993 = vmatpush.msra.mxu0 0.0
      %994 = vmatpush.msra.mxu0 0.0
      %995 = vmatpush.msra.mxu0 0.0
      %996 = vmatpush.msra.mxu0 %v977
      %997 = vmatmul.f32.gmra.mxu0 %v954
      %v998 = vpop.f32.mrf.mxu0
      %v999 = vadd.f32 0.0, %v998
      %1000 = vmatmul.f32.gmra.mxu0 %v957
      %v1001 = vpop.f32.mrf.mxu0
      %v1002 = vadd.f32 0.0, %v1001
      %1003 = vmatmul.f32.gmra.mxu0 %v960
      %v1004 = vpop.f32.mrf.mxu0
      %v1005 = vadd.f32 0.0, %v1004
      %1006 = vmatmul.f32.gmra.mxu0 %v963
      %v1007 = vpop.f32.mrf.mxu0
      %v1008 = vadd.f32 0.0, %v1007
      %1009 = vmatmul.f32.gmra.mxu0 %v966
      %v1010 = vpop.f32.mrf.mxu0
      %v1011 = vadd.f32 0.0, %v1010
      %1012 = vmatmul.f32.gmra.mxu0 %v969
      %v1013 = vpop.f32.mrf.mxu0
      %v1014 = vadd.f32 0.0, %v1013
      %1015 = vmatmul.f32.gmra.mxu0 %v972
      %v1016 = vpop.f32.mrf.mxu0
      %v1017 = vadd.f32 0.0, %v1016
      %1018 = vmatmul.f32.gmra.mxu0 %v975
      %v1019 = vpop.f32.mrf.mxu0
      %v1020 = vadd.f32 0.0, %v1019
      %1021 = vdwg.mxu0
      %1022 = vmatpush.msra.mxu0 0.0
      %1023 = vmatpush.msra.mxu0 0.0
      %1024 = vmatpush.msra.mxu0 0.0
      %1025 = vmatpush.msra.mxu0 0.0
      %1026 = vmatpush.msra.mxu0 0.0
      %1027 = vmatpush.msra.mxu0 0.0
      %1028 = vmatpush.msra.mxu0 0.0
      %1029 = vmatpush.msra.mxu0 0.0
      %1030 = vmatpush.msra.mxu0 0.0
      %1031 = vmatpush.msra.mxu0 0.0
      %1032 = vmatpush.msra.mxu0 0.0
      %1033 = vmatpush.msra.mxu0 0.0
      %1034 = vmatpush.msra.mxu0 0.0
      %1035 = vmatpush.msra.mxu0 0.0
      %1036 = vmatpush.msra.mxu0 0.0
      %1037 = vmatpush.msra.mxu0 %v979
      %1038 = vmatmul.f32.gmra.mxu0 %v954
      %v1039 = vpop.f32.mrf.mxu0
      %v1040 = vadd.f32 0.0, %v1039
      %1041 = vmatmul.f32.gmra.mxu0 %v957
      %v1042 = vpop.f32.mrf.mxu0
      %v1043 = vadd.f32 0.0, %v1042
      %1044 = vmatmul.f32.gmra.mxu0 %v960
      %v1045 = vpop.f32.mrf.mxu0
      %v1046 = vadd.f32 0.0, %v1045
      %1047 = vmatmul.f32.gmra.mxu0 %v963
      %v1048 = vpop.f32.mrf.mxu0
      %v1049 = vadd.f32 0.0, %v1048
      %1050 = vmatmul.f32.gmra.mxu0 %v966
      %v1051 = vpop.f32.mrf.mxu0
      %v1052 = vadd.f32 0.0, %v1051
      %1053 = vmatmul.f32.gmra.mxu0 %v969
      %v1054 = vpop.f32.mrf.mxu0
      %v1055 = vadd.f32 0.0, %v1054
      %1056 = vmatmul.f32.gmra.mxu0 %v972
      %v1057 = vpop.f32.mrf.mxu0
      %v1058 = vadd.f32 0.0, %v1057
      %1059 = vmatmul.f32.gmra.mxu0 %v975
      %v1060 = vpop.f32.mrf.mxu0
      %v1061 = vadd.f32 0.0, %v1060
      %1062 = vdwg.mxu0
      %v1063 = vadd.f32 %v909, %v999
      %v1064 = vadd.f32 %v910, %v1040
      %v1065 = vadd.f32 %v911, %v1002
      %v1066 = vadd.f32 %v912, %v1043
      %v1067 = vadd.f32 %v913, %v1005
      %v1068 = vadd.f32 %v914, %v1046
      %v1069 = vadd.f32 %v915, %v1008
      %v1070 = vadd.f32 %v916, %v1049
      %v1071 = vadd.f32 %v917, %v1011
      %v1072 = vadd.f32 %v918, %v1052
      %v1073 = vadd.f32 %v919, %v1014
      %v1074 = vadd.f32 %v920, %v1055
      %v1075 = vadd.f32 %v921, %v1017
      %v1076 = vadd.f32 %v922, %v1058
      %v1077 = vadd.f32 %v923, %v1020
      %v1078 = vadd.f32 %v924, %v1061
      %v1079 = vld [vmem:[#allocation2] sm:$0x77]
      %v1080 = vld [vmem:[#allocation2 + $0x8] sm:$0x7]
      %1083 = vst [vmem:[#allocation1] ss:$2 sm:$0xff] %v1079
      %s1084 = scalar_lea.vmem [#allocation1], 16
      %1085 = vst [vmem:[%s1084] ss:$2 sm:$0xff] %v1080
      %v1086 = vld.sshfl [vmem:[#allocation1] sm:$0xff pattern:$0x75316420]
      %v1087 = vld.sshfl [vmem:[#allocation1 + $0x8] sm:$0xff pattern:$0x75316420]
      %v1088 = vld.sshfl [vmem:[#allocation1 + $0x10] sm:$0xff pattern:$0x75316420]
      %1089 = vrot.lane.b32.xlu0 %v1086, 110
      %v1090 = vpop.permute.xlu0 %1089
      %1091 = vrot.lane.b32.xlu0 %v1087, 110
      %v1092 = vpop.permute.xlu0 %1091
      %1093 = vrot.lane.b32.xlu0 %v1088, 110
      %v1094 = vpop.permute.xlu0 %1093
      %vm1095 = vcmask 900096
      %v1096 = vsel %vm1095, %v1090, %v1092
      %v1097 = vsel %vm1095, %v1092, %v1094
      %v1100 = vsel %vm605, %v1096, 0.0
      %v1101 = vsel %vm606, %v1097, 0.0
      %s1102 = scalar_lea.vmem %s1, 320
      %v1103 = vld [vmem:[%s1102] sm:$0xff]
      %v1104 = vld [vmem:[%s1102 + $0x8] sm:$0xff]
      %v1105 = vld [vmem:[%s1102 + $0x10] sm:$0xff]
      %v1106 = vld [vmem:[%s1102 + $0x18] sm:$0xff]
      %v1107 = vld [vmem:[%s1102 + $0x20] sm:$0xff]
      %v1108 = vld [vmem:[%s1102 + $0x28] sm:$0xff]
      %v1109 = vld [vmem:[%s1102 + $0x30] sm:$0xff]
      %v1110 = vld [vmem:[%s1102 + $0x38] sm:$0xff]
      %v1112 = vsel %vm377, %v1103, 0
      %v1115 = vsel %vm377, %v1104, 0
      %v1118 = vsel %vm377, %v1105, 0
      %v1121 = vsel %vm377, %v1106, 0
      %v1124 = vsel %vm377, %v1107, 0
      %v1127 = vsel %vm377, %v1108, 0
      %v1130 = vsel %vm377, %v1109, 0
      %v1133 = vsel %vm377, %v1110, 0
      %v1136 = vsel %vm402, %v1100, 0
      %v1139 = vsel %vm402, %v1101, 0
      %1141 = vmatpush.msra.mxu0 0.0
      %1142 = vmatpush.msra.mxu0 0.0
      %1143 = vmatpush.msra.mxu0 0.0
      %1144 = vmatpush.msra.mxu0 0.0
      %1145 = vmatpush.msra.mxu0 0.0
      %1146 = vmatpush.msra.mxu0 0.0
      %1147 = vmatpush.msra.mxu0 0.0
      %1148 = vmatpush.msra.mxu0 0.0
      %1149 = vmatpush.msra.mxu0 0.0
      %1150 = vmatpush.msra.mxu0 0.0
      %1151 = vmatpush.msra.mxu0 0.0
      %1152 = vmatpush.msra.mxu0 0.0
      %1153 = vmatpush.msra.mxu0 0.0
      %1154 = vmatpush.msra.mxu0 0.0
      %1155 = vmatpush.msra.mxu0 0.0
      %1156 = vmatpush.msra.mxu0 %v1136
      %1157 = vmatmul.f32.gmra.mxu0 %v1112
      %v1158 = vpop.f32.mrf.mxu0
      %v1159 = vadd.f32 0.0, %v1158
      %1160 = vmatmul.f32.gmra.mxu0 %v1115
      %v1161 = vpop.f32.mrf.mxu0
      %v1162 = vadd.f32 0.0, %v1161
      %1163 = vmatmul.f32.gmra.mxu0 %v1118
      %v1164 = vpop.f32.mrf.mxu0
      %v1165 = vadd.f32 0.0, %v1164
      %1166 = vmatmul.f32.gmra.mxu0 %v1121
      %v1167 = vpop.f32.mrf.mxu0
      %v1168 = vadd.f32 0.0, %v1167
      %1169 = vmatmul.f32.gmra.mxu0 %v1124
      %v1170 = vpop.f32.mrf.mxu0
      %v1171 = vadd.f32 0.0, %v1170
      %1172 = vmatmul.f32.gmra.mxu0 %v1127
      %v1173 = vpop.f32.mrf.mxu0
      %v1174 = vadd.f32 0.0, %v1173
      %1175 = vmatmul.f32.gmra.mxu0 %v1130
      %v1176 = vpop.f32.mrf.mxu0
      %v1177 = vadd.f32 0.0, %v1176
      %1178 = vmatmul.f32.gmra.mxu0 %v1133
      %v1179 = vpop.f32.mrf.mxu0
      %v1180 = vadd.f32 0.0, %v1179
      %1181 = vdwg.mxu0
      %1182 = vmatpush.msra.mxu0 0.0
      %1183 = vmatpush.msra.mxu0 0.0
      %1184 = vmatpush.msra.mxu0 0.0
      %1185 = vmatpush.msra.mxu0 0.0
      %1186 = vmatpush.msra.mxu0 0.0
      %1187 = vmatpush.msra.mxu0 0.0
      %1188 = vmatpush.msra.mxu0 0.0
      %1189 = vmatpush.msra.mxu0 0.0
      %1190 = vmatpush.msra.mxu0 0.0
      %1191 = vmatpush.msra.mxu0 0.0
      %1192 = vmatpush.msra.mxu0 0.0
      %1193 = vmatpush.msra.mxu0 0.0
      %1194 = vmatpush.msra.mxu0 0.0
      %1195 = vmatpush.msra.mxu0 0.0
      %1196 = vmatpush.msra.mxu0 0.0
      %1197 = vmatpush.msra.mxu0 %v1139
      %1198 = vmatmul.f32.gmra.mxu0 %v1112
      %v1199 = vpop.f32.mrf.mxu0
      %v1200 = vadd.f32 0.0, %v1199
      %1201 = vmatmul.f32.gmra.mxu0 %v1115
      %v1202 = vpop.f32.mrf.mxu0
      %v1203 = vadd.f32 0.0, %v1202
      %1204 = vmatmul.f32.gmra.mxu0 %v1118
      %v1205 = vpop.f32.mrf.mxu0
      %v1206 = vadd.f32 0.0, %v1205
      %1207 = vmatmul.f32.gmra.mxu0 %v1121
      %v1208 = vpop.f32.mrf.mxu0
      %v1209 = vadd.f32 0.0, %v1208
      %1210 = vmatmul.f32.gmra.mxu0 %v1124
      %v1211 = vpop.f32.mrf.mxu0
      %v1212 = vadd.f32 0.0, %v1211
      %1213 = vmatmul.f32.gmra.mxu0 %v1127
      %v1214 = vpop.f32.mrf.mxu0
      %v1215 = vadd.f32 0.0, %v1214
      %1216 = vmatmul.f32.gmra.mxu0 %v1130
      %v1217 = vpop.f32.mrf.mxu0
      %v1218 = vadd.f32 0.0, %v1217
      %1219 = vmatmul.f32.gmra.mxu0 %v1133
      %v1220 = vpop.f32.mrf.mxu0
      %v1221 = vadd.f32 0.0, %v1220
      %1222 = vdwg.mxu0
      %v1223 = vadd.f32 %v1063, %v1159
      %v1224 = vadd.f32 %v1064, %v1200
      %v1225 = vadd.f32 %v1065, %v1162
      %v1226 = vadd.f32 %v1066, %v1203
      %v1227 = vadd.f32 %v1067, %v1165
      %v1228 = vadd.f32 %v1068, %v1206
      %v1229 = vadd.f32 %v1069, %v1168
      %v1230 = vadd.f32 %v1070, %v1209
      %v1231 = vadd.f32 %v1071, %v1171
      %v1232 = vadd.f32 %v1072, %v1212
      %v1233 = vadd.f32 %v1073, %v1174
      %v1234 = vadd.f32 %v1074, %v1215
      %v1235 = vadd.f32 %v1075, %v1177
      %v1236 = vadd.f32 %v1076, %v1218
      %v1237 = vadd.f32 %v1077, %v1180
      %v1238 = vadd.f32 %v1078, %v1221
      %v1239 = vld [vmem:[#allocation2] sm:$0x77]
      %v1240 = vld [vmem:[#allocation2 + $0x8] sm:$0x7]
      %1243 = vst [vmem:[#allocation1] ss:$2 sm:$0xff] %v1239
      %s1244 = scalar_lea.vmem [#allocation1], 16
      %1245 = vst [vmem:[%s1244] ss:$2 sm:$0xff] %v1240
      %v1246 = vld.sshfl [vmem:[#allocation1] sm:$0xff pattern:$0x75316420]
      %v1247 = vld.sshfl [vmem:[#allocation1 + $0x8] sm:$0xff pattern:$0x75316420]
      %v1248 = vld.sshfl [vmem:[#allocation1 + $0x10] sm:$0xff pattern:$0x75316420]
      %1249 = vrot.lane.b32.xlu0 %v1246, 96
      %v1250 = vpop.permute.xlu0 %1249
      %1251 = vrot.lane.b32.xlu0 %v1247, 96
      %v1252 = vpop.permute.xlu0 %1251
      %1253 = vrot.lane.b32.xlu0 %v1248, 96
      %v1254 = vpop.permute.xlu0 %1253
      %vm1255 = vcmask 785408
      %v1256 = vsel %vm1255, %v1250, %v1252
      %v1257 = vsel %vm1255, %v1252, %v1254
      %v1260 = vsel %vm331, %v1256, 0.0
      %v1261 = vsel %vm332, %v1257, 0.0
      %s1262 = scalar_lea.vmem %s1, 384
      %v1263 = vld [vmem:[%s1262] sm:$0xff]
      %v1264 = vld [vmem:[%s1262 + $0x8] sm:$0xff]
      %v1265 = vld [vmem:[%s1262 + $0x10] sm:$0xff]
      %v1266 = vld [vmem:[%s1262 + $0x18] sm:$0xff]
      %v1267 = vld [vmem:[%s1262 + $0x20] sm:$0xff]
      %v1268 = vld [vmem:[%s1262 + $0x28] sm:$0xff]
      %v1269 = vld [vmem:[%s1262 + $0x30] sm:$0xff]
      %v1270 = vld [vmem:[%s1262 + $0x38] sm:$0xff]
      %v1272 = vsel %vm377, %v1263, 0
      %v1275 = vsel %vm377, %v1264, 0
      %v1278 = vsel %vm377, %v1265, 0
      %v1281 = vsel %vm377, %v1266, 0
      %v1284 = vsel %vm377, %v1267, 0
      %v1287 = vsel %vm377, %v1268, 0
      %v1290 = vsel %vm377, %v1269, 0
      %v1293 = vsel %vm377, %v1270, 0
      %v1296 = vsel %vm402, %v1260, 0
      %v1299 = vsel %vm402, %v1261, 0
      %1301 = vmatpush.msra.mxu0 0.0
      %1302 = vmatpush.msra.mxu0 0.0
      %1303 = vmatpush.msra.mxu0 0.0
      %1304 = vmatpush.msra.mxu0 0.0
      %1305 = vmatpush.msra.mxu0 0.0
      %1306 = vmatpush.msra.mxu0 0.0
      %1307 = vmatpush.msra.mxu0 0.0
      %1308 = vmatpush.msra.mxu0 0.0
      %1309 = vmatpush.msra.mxu0 0.0
      %1310 = vmatpush.msra.mxu0 0.0
      %1311 = vmatpush.msra.mxu0 0.0
      %1312 = vmatpush.msra.mxu0 0.0
      %1313 = vmatpush.msra.mxu0 0.0
      %1314 = vmatpush.msra.mxu0 0.0
      %1315 = vmatpush.msra.mxu0 0.0
      %1316 = vmatpush.msra.mxu0 %v1296
      %1317 = vmatmul.f32.gmra.mxu0 %v1272
      %v1318 = vpop.f32.mrf.mxu0
      %v1319 = vadd.f32 0.0, %v1318
      %1320 = vmatmul.f32.gmra.mxu0 %v1275
      %v1321 = vpop.f32.mrf.mxu0
      %v1322 = vadd.f32 0.0, %v1321
      %1323 = vmatmul.f32.gmra.mxu0 %v1278
      %v1324 = vpop.f32.mrf.mxu0
      %v1325 = vadd.f32 0.0, %v1324
      %1326 = vmatmul.f32.gmra.mxu0 %v1281
      %v1327 = vpop.f32.mrf.mxu0
      %v1328 = vadd.f32 0.0, %v1327
      %1329 = vmatmul.f32.gmra.mxu0 %v1284
      %v1330 = vpop.f32.mrf.mxu0
      %v1331 = vadd.f32 0.0, %v1330
      %1332 = vmatmul.f32.gmra.mxu0 %v1287
      %v1333 = vpop.f32.mrf.mxu0
      %v1334 = vadd.f32 0.0, %v1333
      %1335 = vmatmul.f32.gmra.mxu0 %v1290
      %v1336 = vpop.f32.mrf.mxu0
      %v1337 = vadd.f32 0.0, %v1336
      %1338 = vmatmul.f32.gmra.mxu0 %v1293
      %v1339 = vpop.f32.mrf.mxu0
      %v1340 = vadd.f32 0.0, %v1339
      %1341 = vdwg.mxu0
      %1342 = vmatpush.msra.mxu0 0.0
      %1343 = vmatpush.msra.mxu0 0.0
      %1344 = vmatpush.msra.mxu0 0.0
      %1345 = vmatpush.msra.mxu0 0.0
      %1346 = vmatpush.msra.mxu0 0.0
      %1347 = vmatpush.msra.mxu0 0.0
      %1348 = vmatpush.msra.mxu0 0.0
      %1349 = vmatpush.msra.mxu0 0.0
      %1350 = vmatpush.msra.mxu0 0.0
      %1351 = vmatpush.msra.mxu0 0.0
      %1352 = vmatpush.msra.mxu0 0.0
      %1353 = vmatpush.msra.mxu0 0.0
      %1354 = vmatpush.msra.mxu0 0.0
      %1355 = vmatpush.msra.mxu0 0.0
      %1356 = vmatpush.msra.mxu0 0.0
      %1357 = vmatpush.msra.mxu0 %v1299
      %1358 = vmatmul.f32.gmra.mxu0 %v1272
      %v1359 = vpop.f32.mrf.mxu0
      %v1360 = vadd.f32 0.0, %v1359
      %1361 = vmatmul.f32.gmra.mxu0 %v1275
      %v1362 = vpop.f32.mrf.mxu0
      %v1363 = vadd.f32 0.0, %v1362
      %1364 = vmatmul.f32.gmra.mxu0 %v1278
      %v1365 = vpop.f32.mrf.mxu0
      %v1366 = vadd.f32 0.0, %v1365
      %1367 = vmatmul.f32.gmra.mxu0 %v1281
      %v1368 = vpop.f32.mrf.mxu0
      %v1369 = vadd.f32 0.0, %v1368
      %1370 = vmatmul.f32.gmra.mxu0 %v1284
      %v1371 = vpop.f32.mrf.mxu0
      %v1372 = vadd.f32 0.0, %v1371
      %1373 = vmatmul.f32.gmra.mxu0 %v1287
      %v1374 = vpop.f32.mrf.mxu0
      %v1375 = vadd.f32 0.0, %v1374
      %1376 = vmatmul.f32.gmra.mxu0 %v1290
      %v1377 = vpop.f32.mrf.mxu0
      %v1378 = vadd.f32 0.0, %v1377
      %1379 = vmatmul.f32.gmra.mxu0 %v1293
      %v1380 = vpop.f32.mrf.mxu0
      %v1381 = vadd.f32 0.0, %v1380
      %1382 = vdwg.mxu0
      %v1383 = vadd.f32 %v1223, %v1319
      %v1384 = vadd.f32 %v1224, %v1360
      %v1385 = vadd.f32 %v1225, %v1322
      %v1386 = vadd.f32 %v1226, %v1363
      %v1387 = vadd.f32 %v1227, %v1325
      %v1388 = vadd.f32 %v1228, %v1366
      %v1389 = vadd.f32 %v1229, %v1328
      %v1390 = vadd.f32 %v1230, %v1369
      %v1391 = vadd.f32 %v1231, %v1331
      %v1392 = vadd.f32 %v1232, %v1372
      %v1393 = vadd.f32 %v1233, %v1334
      %v1394 = vadd.f32 %v1234, %v1375
      %v1395 = vadd.f32 %v1235, %v1337
      %v1396 = vadd.f32 %v1236, %v1378
      %v1397 = vadd.f32 %v1237, %v1340
      %v1398 = vadd.f32 %v1238, %v1381
      %v1399 = vld [vmem:[#allocation2] sm:$0x77]
      %v1400 = vld [vmem:[#allocation2 + $0x8] sm:$0x7]
      %s1401 = scalar_lea.vmem %s1, 448
      %v1402 = vld [vmem:[%s1401] sm:$0xff]
      %v1403 = vld [vmem:[%s1401 + $0x8] sm:$0xff]
      %v1404 = vld [vmem:[%s1401 + $0x10] sm:$0xff]
      %v1405 = vld [vmem:[%s1401 + $0x18] sm:$0xff]
      %v1406 = vld [vmem:[%s1401 + $0x20] sm:$0xff]
      %v1407 = vld [vmem:[%s1401 + $0x28] sm:$0xff]
      %v1408 = vld [vmem:[%s1401 + $0x30] sm:$0xff]
      %v1409 = vld [vmem:[%s1401 + $0x38] sm:$0xff]
      %1412 = vst [vmem:[#allocation1] ss:$2 sm:$0xff] %v1399
      %s1413 = scalar_lea.vmem [#allocation1], 16
      %1414 = vst [vmem:[%s1413] ss:$2 sm:$0xff] %v1400
      %v1415 = vld.sshfl [vmem:[#allocation1] sm:$0xff pattern:$0x75316420]
      %v1416 = vld.sshfl [vmem:[#allocation1 + $0x8] sm:$0xff pattern:$0x75316420]
      %v1417 = vld.sshfl [vmem:[#allocation1 + $0x10] sm:$0xff pattern:$0x75316420]
      %1418 = vrot.lane.b32.xlu0 %v1415, 95
      %v1419 = vpop.permute.xlu0 %1418
      %1420 = vrot.lane.b32.xlu0 %v1416, 95
      %v1421 = vpop.permute.xlu0 %1420
      %1422 = vrot.lane.b32.xlu0 %v1417, 95
      %v1423 = vpop.permute.xlu0 %1422
      %vm1424 = vcmask 777216
      %v1425 = vsel %vm1424, %v1419, %v1421
      %v1426 = vsel %vm1424, %v1421, %v1423
      %v1428 = vsel %vm377, %v1402, 0
      %v1431 = vsel %vm377, %v1403, 0
      %v1434 = vsel %vm377, %v1404, 0
      %v1437 = vsel %vm377, %v1405, 0
      %v1440 = vsel %vm377, %v1406, 0
      %v1443 = vsel %vm377, %v1407, 0
      %v1446 = vsel %vm377, %v1408, 0
      %v1449 = vsel %vm377, %v1409, 0
      %v1451 = vsel %vm402, %v1425, 0
      %v1453 = vsel %vm402, %v1426, 0
      %1455 = vmatpush.msra.mxu0 0.0
      %1456 = vmatpush.msra.mxu0 0.0
      %1457 = vmatpush.msra.mxu0 0.0
      %1458 = vmatpush.msra.mxu0 0.0
      %1459 = vmatpush.msra.mxu0 0.0
      %1460 = vmatpush.msra.mxu0 0.0
      %1461 = vmatpush.msra.mxu0 0.0
      %1462 = vmatpush.msra.mxu0 0.0
      %1463 = vmatpush.msra.mxu0 0.0
      %1464 = vmatpush.msra.mxu0 0.0
      %1465 = vmatpush.msra.mxu0 0.0
      %1466 = vmatpush.msra.mxu0 0.0
      %1467 = vmatpush.msra.mxu0 0.0
      %1468 = vmatpush.msra.mxu0 0.0
      %1469 = vmatpush.msra.mxu0 0.0
      %1470 = vmatpush.msra.mxu0 %v1451
      %1471 = vmatmul.f32.gmra.mxu0 %v1428
      %v1472 = vpop.f32.mrf.mxu0
      %v1473 = vadd.f32 0.0, %v1472
      %1474 = vmatmul.f32.gmra.mxu0 %v1431
      %v1475 = vpop.f32.mrf.mxu0
      %v1476 = vadd.f32 0.0, %v1475
      %1477 = vmatmul.f32.gmra.mxu0 %v1434
      %v1478 = vpop.f32.mrf.mxu0
      %v1479 = vadd.f32 0.0, %v1478
      %1480 = vmatmul.f32.gmra.mxu0 %v1437
      %v1481 = vpop.f32.mrf.mxu0
      %v1482 = vadd.f32 0.0, %v1481
      %1483 = vmatmul.f32.gmra.mxu0 %v1440
      %v1484 = vpop.f32.mrf.mxu0
      %v1485 = vadd.f32 0.0, %v1484
      %1486 = vmatmul.f32.gmra.mxu0 %v1443
      %v1487 = vpop.f32.mrf.mxu0
      %v1488 = vadd.f32 0.0, %v1487
      %1489 = vmatmul.f32.gmra.mxu0 %v1446
      %v1490 = vpop.f32.mrf.mxu0
      %v1491 = vadd.f32 0.0, %v1490
      %1492 = vmatmul.f32.gmra.mxu0 %v1449
      %v1493 = vpop.f32.mrf.mxu0
      %v1494 = vadd.f32 0.0, %v1493
      %1495 = vdwg.mxu0
      %1496 = vmatpush.msra.mxu0 0.0
      %1497 = vmatpush.msra.mxu0 0.0
      %1498 = vmatpush.msra.mxu0 0.0
      %1499 = vmatpush.msra.mxu0 0.0
      %1500 = vmatpush.msra.mxu0 0.0
      %1501 = vmatpush.msra.mxu0 0.0
      %1502 = vmatpush.msra.mxu0 0.0
      %1503 = vmatpush.msra.mxu0 0.0
      %1504 = vmatpush.msra.mxu0 0.0
      %1505 = vmatpush.msra.mxu0 0.0
      %1506 = vmatpush.msra.mxu0 0.0
      %1507 = vmatpush.msra.mxu0 0.0
      %1508 = vmatpush.msra.mxu0 0.0
      %1509 = vmatpush.msra.mxu0 0.0
      %1510 = vmatpush.msra.mxu0 0.0
      %1511 = vmatpush.msra.mxu0 %v1453
      %1512 = vmatmul.f32.gmra.mxu0 %v1428
      %v1513 = vpop.f32.mrf.mxu0
      %v1514 = vadd.f32 0.0, %v1513
      %1515 = vmatmul.f32.gmra.mxu0 %v1431
      %v1516 = vpop.f32.mrf.mxu0
      %v1517 = vadd.f32 0.0, %v1516
      %1518 = vmatmul.f32.gmra.mxu0 %v1434
      %v1519 = vpop.f32.mrf.mxu0
      %v1520 = vadd.f32 0.0, %v1519
      %1521 = vmatmul.f32.gmra.mxu0 %v1437
      %v1522 = vpop.f32.mrf.mxu0
      %v1523 = vadd.f32 0.0, %v1522
      %1524 = vmatmul.f32.gmra.mxu0 %v1440
      %v1525 = vpop.f32.mrf.mxu0
      %v1526 = vadd.f32 0.0, %v1525
      %1527 = vmatmul.f32.gmra.mxu0 %v1443
      %v1528 = vpop.f32.mrf.mxu0
      %v1529 = vadd.f32 0.0, %v1528
      %1530 = vmatmul.f32.gmra.mxu0 %v1446
      %v1531 = vpop.f32.mrf.mxu0
      %v1532 = vadd.f32 0.0, %v1531
      %1533 = vmatmul.f32.gmra.mxu0 %v1449
      %v1534 = vpop.f32.mrf.mxu0
      %v1535 = vadd.f32 0.0, %v1534
      %1536 = vdwg.mxu0
      %v1537 = vadd.f32 %v1383, %v1473
      %v1538 = vadd.f32 %v1384, %v1514
      %v1539 = vadd.f32 %v1385, %v1476
      %v1540 = vadd.f32 %v1386, %v1517
      %v1541 = vadd.f32 %v1387, %v1479
      %v1542 = vadd.f32 %v1388, %v1520
      %v1543 = vadd.f32 %v1389, %v1482
      %v1544 = vadd.f32 %v1390, %v1523
      %v1545 = vadd.f32 %v1391, %v1485
      %v1546 = vadd.f32 %v1392, %v1526
      %v1547 = vadd.f32 %v1393, %v1488
      %v1548 = vadd.f32 %v1394, %v1529
      %v1549 = vadd.f32 %v1395, %v1491
      %v1550 = vadd.f32 %v1396, %v1532
      %v1551 = vadd.f32 %v1397, %v1494
      %v1552 = vadd.f32 %v1398, %v1535
      %v1553 = vld [vmem:[#allocation2] sm:$0x77]
      %v1554 = vld [vmem:[#allocation2 + $0x8] sm:$0x7]
      %1557 = vst [vmem:[#allocation1] ss:$2 sm:$0xff] %v1553
      %s1558 = scalar_lea.vmem [#allocation1], 16
      %1559 = vst [vmem:[%s1558] ss:$2 sm:$0xff] %v1554
      %v1560 = vld.sshfl [vmem:[#allocation1] sm:$0xff pattern:$0x75316420]
      %v1561 = vld.sshfl [vmem:[#allocation1 + $0x8] sm:$0xff pattern:$0x75316420]
      %v1562 = vld.sshfl [vmem:[#allocation1 + $0x10] sm:$0xff pattern:$0x75316420]
      %1563 = vrot.lane.b32.xlu0 %v1560, 94
      %v1564 = vpop.permute.xlu0 %1563
      %1565 = vrot.lane.b32.xlu0 %v1561, 94
      %v1566 = vpop.permute.xlu0 %1565
      %1567 = vrot.lane.b32.xlu0 %v1562, 94
      %v1568 = vpop.permute.xlu0 %1567
      %vm1569 = vcmask 769024
      %v1570 = vsel %vm1569, %v1564, %v1566
      %v1571 = vsel %vm1569, %v1566, %v1568
      %v1574 = vsel %vm605, %v1570, 0.0
      %v1575 = vsel %vm606, %v1571, 0.0
      %s1576 = scalar_lea.vmem %s1, 512
      %v1577 = vld [vmem:[%s1576] sm:$0xff]
      %v1578 = vld [vmem:[%s1576 + $0x8] sm:$0xff]
      %v1579 = vld [vmem:[%s1576 + $0x10] sm:$0xff]
      %v1580 = vld [vmem:[%s1576 + $0x18] sm:$0xff]
      %v1581 = vld [vmem:[%s1576 + $0x20] sm:$0xff]
      %v1582 = vld [vmem:[%s1576 + $0x28] sm:$0xff]
      %v1583 = vld [vmem:[%s1576 + $0x30] sm:$0xff]
      %v1584 = vld [vmem:[%s1576 + $0x38] sm:$0xff]
      %v1586 = vsel %vm377, %v1577, 0
      %v1589 = vsel %vm377, %v1578, 0
      %v1592 = vsel %vm377, %v1579, 0
      %v1595 = vsel %vm377, %v1580, 0
      %v1598 = vsel %vm377, %v1581, 0
      %v1601 = vsel %vm377, %v1582, 0
      %v1604 = vsel %vm377, %v1583, 0
      %v1607 = vsel %vm377, %v1584, 0
      %v1610 = vsel %vm402, %v1574, 0
      %v1613 = vsel %vm402, %v1575, 0
      %1615 = vmatpush.msra.mxu0 0.0
      %1616 = vmatpush.msra.mxu0 0.0
      %1617 = vmatpush.msra.mxu0 0.0
      %1618 = vmatpush.msra.mxu0 0.0
      %1619 = vmatpush.msra.mxu0 0.0
      %1620 = vmatpush.msra.mxu0 0.0
      %1621 = vmatpush.msra.mxu0 0.0
      %1622 = vmatpush.msra.mxu0 0.0
      %1623 = vmatpush.msra.mxu0 0.0
      %1624 = vmatpush.msra.mxu0 0.0
      %1625 = vmatpush.msra.mxu0 0.0
      %1626 = vmatpush.msra.mxu0 0.0
      %1627 = vmatpush.msra.mxu0 0.0
      %1628 = vmatpush.msra.mxu0 0.0
      %1629 = vmatpush.msra.mxu0 0.0
      %1630 = vmatpush.msra.mxu0 %v1610
      %1631 = vmatmul.f32.gmra.mxu0 %v1586
      %v1632 = vpop.f32.mrf.mxu0
      %v1633 = vadd.f32 0.0, %v1632
      %1634 = vmatmul.f32.gmra.mxu0 %v1589
      %v1635 = vpop.f32.mrf.mxu0
      %v1636 = vadd.f32 0.0, %v1635
      %1637 = vmatmul.f32.gmra.mxu0 %v1592
      %v1638 = vpop.f32.mrf.mxu0
      %v1639 = vadd.f32 0.0, %v1638
      %1640 = vmatmul.f32.gmra.mxu0 %v1595
      %v1641 = vpop.f32.mrf.mxu0
      %v1642 = vadd.f32 0.0, %v1641
      %1643 = vmatmul.f32.gmra.mxu0 %v1598
      %v1644 = vpop.f32.mrf.mxu0
      %v1645 = vadd.f32 0.0, %v1644
      %1646 = vmatmul.f32.gmra.mxu0 %v1601
      %v1647 = vpop.f32.mrf.mxu0
      %v1648 = vadd.f32 0.0, %v1647
      %1649 = vmatmul.f32.gmra.mxu0 %v1604
      %v1650 = vpop.f32.mrf.mxu0
      %v1651 = vadd.f32 0.0, %v1650
      %1652 = vmatmul.f32.gmra.mxu0 %v1607
      %v1653 = vpop.f32.mrf.mxu0
      %v1654 = vadd.f32 0.0, %v1653
      %1655 = vdwg.mxu0
      %1656 = vmatpush.msra.mxu0 0.0
      %1657 = vmatpush.msra.mxu0 0.0
      %1658 = vmatpush.msra.mxu0 0.0
      %1659 = vmatpush.msra.mxu0 0.0
      %1660 = vmatpush.msra.mxu0 0.0
      %1661 = vmatpush.msra.mxu0 0.0
      %1662 = vmatpush.msra.mxu0 0.0
      %1663 = vmatpush.msra.mxu0 0.0
      %1664 = vmatpush.msra.mxu0 0.0
      %1665 = vmatpush.msra.mxu0 0.0
      %1666 = vmatpush.msra.mxu0 0.0
      %1667 = vmatpush.msra.mxu0 0.0
      %1668 = vmatpush.msra.mxu0 0.0
      %1669 = vmatpush.msra.mxu0 0.0
      %1670 = vmatpush.msra.mxu0 0.0
      %1671 = vmatpush.msra.mxu0 %v1613
      %1672 = vmatmul.f32.gmra.mxu0 %v1586
      %v1673 = vpop.f32.mrf.mxu0
      %v1674 = vadd.f32 0.0, %v1673
      %1675 = vmatmul.f32.gmra.mxu0 %v1589
      %v1676 = vpop.f32.mrf.mxu0
      %v1677 = vadd.f32 0.0, %v1676
      %1678 = vmatmul.f32.gmra.mxu0 %v1592
      %v1679 = vpop.f32.mrf.mxu0
      %v1680 = vadd.f32 0.0, %v1679
      %1681 = vmatmul.f32.gmra.mxu0 %v1595
      %v1682 = vpop.f32.mrf.mxu0
      %v1683 = vadd.f32 0.0, %v1682
      %1684 = vmatmul.f32.gmra.mxu0 %v1598
      %v1685 = vpop.f32.mrf.mxu0
      %v1686 = vadd.f32 0.0, %v1685
      %1687 = vmatmul.f32.gmra.mxu0 %v1601
      %v1688 = vpop.f32.mrf.mxu0
      %v1689 = vadd.f32 0.0, %v1688
      %1690 = vmatmul.f32.gmra.mxu0 %v1604
      %v1691 = vpop.f32.mrf.mxu0
      %v1692 = vadd.f32 0.0, %v1691
      %1693 = vmatmul.f32.gmra.mxu0 %v1607
      %v1694 = vpop.f32.mrf.mxu0
      %v1695 = vadd.f32 0.0, %v1694
      %1696 = vdwg.mxu0
      %v1697 = vadd.f32 %v1537, %v1633
      %v1698 = vadd.f32 %v1538, %v1674
      %v1699 = vadd.f32 %v1539, %v1636
      %v1700 = vadd.f32 %v1540, %v1677
      %v1701 = vadd.f32 %v1541, %v1639
      %v1702 = vadd.f32 %v1542, %v1680
      %v1703 = vadd.f32 %v1543, %v1642
      %v1704 = vadd.f32 %v1544, %v1683
      %v1705 = vadd.f32 %v1545, %v1645
      %v1706 = vadd.f32 %v1546, %v1686
      %v1707 = vadd.f32 %v1547, %v1648
      %v1708 = vadd.f32 %v1548, %v1689
      %v1709 = vadd.f32 %v1549, %v1651
      %v1710 = vadd.f32 %v1550, %v1692
      %v1711 = vadd.f32 %v1551, %v1654
      %v1712 = vadd.f32 %v1552, %v1695
      %v1713 = vld [vmem:[%s2] sm:$0xff]
      %v1714 = vld [vmem:[%s2 + $0x8] sm:$0xff]
      %v1715 = vld [vmem:[%s2 + $0x10] sm:$0xff]
      %v1716 = vld [vmem:[%s2 + $0x18] sm:$0xff]
      %v1717 = vld [vmem:[%s2 + $0x20] sm:$0xff]
      %v1718 = vld [vmem:[%s2 + $0x28] sm:$0xff]
      %v1719 = vld [vmem:[%s2 + $0x30] sm:$0xff]
      %v1720 = vld [vmem:[%s2 + $0x38] sm:$0xff]
      %1722 = vset.pattern.permute.xlu0 0
      %1723 = vperm.xlu0 %1722, %v1713
      %v1724 = vpop.permute.xlu0 %1723
      %1727 = vset.pattern.permute.xlu0 0
      %1728 = vperm.xlu0 %1727, %v1714
      %v1729 = vpop.permute.xlu0 %1728
      %1732 = vset.pattern.permute.xlu0 0
      %1733 = vperm.xlu0 %1732, %v1715
      %v1734 = vpop.permute.xlu0 %1733
      %1737 = vset.pattern.permute.xlu0 0
      %1738 = vperm.xlu0 %1737, %v1716
      %v1739 = vpop.permute.xlu0 %1738
      %1742 = vset.pattern.permute.xlu0 0
      %1743 = vperm.xlu0 %1742, %v1717
      %v1744 = vpop.permute.xlu0 %1743
      %1747 = vset.pattern.permute.xlu0 0
      %1748 = vperm.xlu0 %1747, %v1718
      %v1749 = vpop.permute.xlu0 %1748
      %1752 = vset.pattern.permute.xlu0 0
      %1753 = vperm.xlu0 %1752, %v1719
      %v1754 = vpop.permute.xlu0 %1753
      %1757 = vset.pattern.permute.xlu0 0
      %1758 = vperm.xlu0 %1757, %v1720
      %v1759 = vpop.permute.xlu0 %1758
      %v1761 = vadd.f32 %v1697, %v1724
      %v1762 = vadd.f32 %v1698, %v1724
      %v1763 = vadd.f32 %v1699, %v1729
      %v1764 = vadd.f32 %v1700, %v1729
      %v1765 = vadd.f32 %v1701, %v1734
      %v1766 = vadd.f32 %v1702, %v1734
      %v1767 = vadd.f32 %v1703, %v1739
      %v1768 = vadd.f32 %v1704, %v1739
      %v1769 = vadd.f32 %v1705, %v1744
      %v1770 = vadd.f32 %v1706, %v1744
      %v1771 = vadd.f32 %v1707, %v1749
      %v1772 = vadd.f32 %v1708, %v1749
      %v1773 = vadd.f32 %v1709, %v1754
      %v1774 = vadd.f32 %v1710, %v1754
      %v1775 = vadd.f32 %v1711, %v1759
      %v1776 = vadd.f32 %v1712, %v1759
      %v1777 = vmax.f32 %v1761, 0.0
      %v1778 = vmax.f32 %v1762, 0.0
      %v1779 = vmax.f32 %v1763, 0.0
      %v1780 = vmax.f32 %v1764, 0.0
      %v1781 = vmax.f32 %v1765, 0.0
      %v1782 = vmax.f32 %v1766, 0.0
      %v1783 = vmax.f32 %v1767, 0.0
      %v1784 = vmax.f32 %v1768, 0.0
      %v1785 = vmax.f32 %v1769, 0.0
      %v1786 = vmax.f32 %v1770, 0.0
      %v1787 = vmax.f32 %v1771, 0.0
      %v1788 = vmax.f32 %v1772, 0.0
      %v1789 = vmax.f32 %v1773, 0.0
      %v1790 = vmax.f32 %v1774, 0.0
      %v1791 = vmax.f32 %v1775, 0.0
      %v1792 = vmax.f32 %v1776, 0.0
      %1793 = vst [vmem:[#allocation3] sm:$0xff] 0.0
      %1794 = vst [vmem:[#allocation3 + $0x8] sm:$0xff] 0.0
      %vm1795 = vcmask 277504
      %1796 = vst.msk [vmem:[#allocation3 + $0x10] sm:$0xff] %vm1795, 0.0
      %1797 = vst [vmem:[#allocation3 + $0x18] sm:$0xff] 0.0
      %1798 = vst [vmem:[#allocation3 + $0x20] sm:$0xff] 0.0
      %1799 = vst.msk [vmem:[#allocation3 + $0x28] sm:$0xff] %vm1795, 0.0
      %1800 = vst [vmem:[#allocation3 + $0x30] sm:$0xff] 0.0
      %1801 = vst [vmem:[#allocation3 + $0x38] sm:$0xff] 0.0
      %1802 = vst.msk [vmem:[#allocation3 + $0x40] sm:$0xff] %vm1795, 0.0
      %1803 = vst [vmem:[#allocation3 + $0x48] sm:$0xff] 0.0
      %1804 = vst [vmem:[#allocation3 + $0x50] sm:$0xff] 0.0
      %1805 = vst.msk [vmem:[#allocation3 + $0x58] sm:$0xff] %vm1795, 0.0
      %1806 = vst [vmem:[#allocation3 + $0x60] sm:$0xff] 0.0
      %1807 = vst [vmem:[#allocation3 + $0x68] sm:$0xff] 0.0
      %1808 = vst.msk [vmem:[#allocation3 + $0x70] sm:$0xff] %vm1795, 0.0
      %1809 = vst [vmem:[#allocation3 + $0x78] sm:$0xff] 0.0
      %1810 = vst [vmem:[#allocation3 + $0x80] sm:$0xff] 0.0
      %1811 = vst.msk [vmem:[#allocation3 + $0x88] sm:$0xff] %vm1795, 0.0
      %1812 = vst [vmem:[#allocation3 + $0x90] sm:$0xff] 0.0
      %1813 = vst [vmem:[#allocation3 + $0x98] sm:$0xff] 0.0
      %1814 = vst.msk [vmem:[#allocation3 + $0xa0] sm:$0xff] %vm1795, 0.0
      %1815 = vst [vmem:[#allocation3 + $0xa8] sm:$0xff] 0.0
      %1816 = vst [vmem:[#allocation3 + $0xb0] sm:$0xff] 0.0
      %1817 = vst.msk [vmem:[#allocation3 + $0xb8] sm:$0xff] %vm1795, 0.0
      %1834 = vrot.lane.b32.xlu0 %v1777, 17
      %v1835 = vpop.permute.xlu0 %1834
      %1836 = vrot.lane.b32.xlu0 %v1778, 17
      %v1837 = vpop.permute.xlu0 %1836
      %1838 = vrot.lane.b32.xlu0 %v1779, 17
      %v1839 = vpop.permute.xlu0 %1838
      %1840 = vrot.lane.b32.xlu0 %v1780, 17
      %v1841 = vpop.permute.xlu0 %1840
      %1842 = vrot.lane.b32.xlu0 %v1781, 17
      %v1843 = vpop.permute.xlu0 %1842
      %1844 = vrot.lane.b32.xlu0 %v1782, 17
      %v1845 = vpop.permute.xlu0 %1844
      %1846 = vrot.lane.b32.xlu0 %v1783, 17
      %v1847 = vpop.permute.xlu0 %1846
      %1848 = vrot.lane.b32.xlu0 %v1784, 17
      %v1849 = vpop.permute.xlu0 %1848
      %1850 = vrot.lane.b32.xlu0 %v1785, 17
      %v1851 = vpop.permute.xlu0 %1850
      %1852 = vrot.lane.b32.xlu0 %v1786, 17
      %v1853 = vpop.permute.xlu0 %1852
      %1854 = vrot.lane.b32.xlu0 %v1787, 17
      %v1855 = vpop.permute.xlu0 %1854
      %1856 = vrot.lane.b32.xlu0 %v1788, 17
      %v1857 = vpop.permute.xlu0 %1856
      %1858 = vrot.lane.b32.xlu0 %v1789, 17
      %v1859 = vpop.permute.xlu0 %1858
      %1860 = vrot.lane.b32.xlu0 %v1790, 17
      %v1861 = vpop.permute.xlu0 %1860
      %1862 = vrot.lane.b32.xlu0 %v1791, 17
      %v1863 = vpop.permute.xlu0 %1862
      %1864 = vrot.lane.b32.xlu0 %v1792, 17
      %v1865 = vpop.permute.xlu0 %1864
      %v1866 = vsel %vm318, %v1835, %v1837
      %v1867 = vsel %vm318, %v1839, %v1841
      %v1868 = vsel %vm318, %v1843, %v1845
      %v1869 = vsel %vm318, %v1847, %v1849
      %v1870 = vsel %vm318, %v1851, %v1853
      %v1871 = vsel %vm318, %v1855, %v1857
      %v1872 = vsel %vm318, %v1859, %v1861
      %v1873 = vsel %vm318, %v1863, %v1865
      %vm1898 = vcmask 1047688
      %1899 = vst.msk [vmem:[#allocation3] sm:$0xff] %vm1898, %v1835
      %1900 = vst [vmem:[#allocation3 + $0x8] sm:$0xff] %v1866
      %1901 = vst.msk [vmem:[#allocation3 + $0x10] sm:$0xff] %vm318, %v1837
      %1902 = vst.msk [vmem:[#allocation3 + $0x18] sm:$0xff] %vm1898, %v1839
      %1903 = vst [vmem:[#allocation3 + $0x20] sm:$0xff] %v1867
      %1904 = vst.msk [vmem:[#allocation3 + $0x28] sm:$0xff] %vm318, %v1841
      %1905 = vst.msk [vmem:[#allocation3 + $0x30] sm:$0xff] %vm1898, %v1843
      %1906 = vst [vmem:[#allocation3 + $0x38] sm:$0xff] %v1868
      %1907 = vst.msk [vmem:[#allocation3 + $0x40] sm:$0xff] %vm318, %v1845
      %1908 = vst.msk [vmem:[#allocation3 + $0x48] sm:$0xff] %vm1898, %v1847
      %1909 = vst [vmem:[#allocation3 + $0x50] sm:$0xff] %v1869
      %1910 = vst.msk [vmem:[#allocation3 + $0x58] sm:$0xff] %vm318, %v1849
      %1911 = vst.msk [vmem:[#allocation3 + $0x60] sm:$0xff] %vm1898, %v1851
      %1912 = vst [vmem:[#allocation3 + $0x68] sm:$0xff] %v1870
      %1913 = vst.msk [vmem:[#allocation3 + $0x70] sm:$0xff] %vm318, %v1853
      %1914 = vst.msk [vmem:[#allocation3 + $0x78] sm:$0xff] %vm1898, %v1855
      %1915 = vst [vmem:[#allocation3 + $0x80] sm:$0xff] %v1871
      %1916 = vst.msk [vmem:[#allocation3 + $0x88] sm:$0xff] %vm318, %v1857
      %1917 = vst.msk [vmem:[#allocation3 + $0x90] sm:$0xff] %vm1898, %v1859
      %1918 = vst [vmem:[#allocation3 + $0x98] sm:$0xff] %v1872
      %1919 = vst.msk [vmem:[#allocation3 + $0xa0] sm:$0xff] %vm318, %v1861
      %1920 = vst.msk [vmem:[#allocation3 + $0xa8] sm:$0xff] %vm1898, %v1863
      %1921 = vst [vmem:[#allocation3 + $0xb0] sm:$0xff] %v1873
      %1922 = vst.msk [vmem:[#allocation3 + $0xb8] sm:$0xff] %vm318, %v1865
      %1923 = vst [vmem:[#allocation4] sm:$0xff] 0.0
      %1924 = vst [vmem:[#allocation4 + $0x8] sm:$0xff] 0.0
      %1925 = vst [vmem:[#allocation4 + $0x10] sm:$0xff] 0.0
      %1926 = vst [vmem:[#allocation4 + $0x18] sm:$0xff] 0.0
      %1927 = vst [vmem:[#allocation4 + $0x20] sm:$0xff] 0.0
      %1928 = vst [vmem:[#allocation4 + $0x28] sm:$0xff] 0.0
      %1929 = vst [vmem:[#allocation4 + $0x30] sm:$0xff] 0.0
      %1930 = vst [vmem:[#allocation4 + $0x38] sm:$0xff] 0.0
      %1931 = vst [vmem:[#allocation4 + $0x40] sm:$0xff] 0.0
      %1932 = vst [vmem:[#allocation4 + $0x48] sm:$0xff] 0.0
      %1933 = vst [vmem:[#allocation4 + $0x50] sm:$0xff] 0.0
      %1934 = vst [vmem:[#allocation4 + $0x58] sm:$0xff] 0.0
      %1935 = vst [vmem:[#allocation4 + $0x60] sm:$0xff] 0.0
      %1936 = vst [vmem:[#allocation4 + $0x68] sm:$0xff] 0.0
      %1937 = vst [vmem:[#allocation4 + $0x70] sm:$0xff] 0.0
      %1938 = vst [vmem:[#allocation4 + $0x78] sm:$0xff] 0.0
      %1939 = vst [vmem:[#allocation4 + $0x80] sm:$0xff] 0.0
      %1940 = vst [vmem:[#allocation4 + $0x88] sm:$0xff] 0.0
      %1941 = vst [vmem:[#allocation4 + $0x90] sm:$0xff] 0.0
      %1942 = vst [vmem:[#allocation4 + $0x98] sm:$0xff] 0.0
      %1943 = vst [vmem:[#allocation4 + $0xa0] sm:$0xff] 0.0
      %1944 = vst [vmem:[#allocation4 + $0xa8] sm:$0xff] 0.0
      %1945 = vst [vmem:[#allocation4 + $0xb0] sm:$0xff] 0.0
      %1946 = vst [vmem:[#allocation4 + $0xb8] sm:$0xff] 0.0
      %1947 = vst [vmem:[#allocation4 + $0xc0] sm:$0xff] 0.0
      %1948 = vst [vmem:[#allocation4 + $0xc8] sm:$0xff] 0.0
      %1949 = vst [vmem:[#allocation4 + $0xd0] sm:$0xff] 0.0
      %1950 = vst [vmem:[#allocation4 + $0xd8] sm:$0xff] 0.0
      %1951 = vst [vmem:[#allocation4 + $0xe0] sm:$0xff] 0.0
      %1952 = vst [vmem:[#allocation4 + $0xe8] sm:$0xff] 0.0
      %1953 = vst [vmem:[#allocation4 + $0xf0] sm:$0xff] 0.0
      %1954 = vst [vmem:[#allocation4 + $0xf8] sm:$0xff] 0.0
      %v1955 = vld [vmem:[#allocation3] sm:$0xff]
      %v1956 = vld [vmem:[#allocation3 + $0x8] sm:$0xff]
      %v1957 = vld [vmem:[#allocation3 + $0x18] sm:$0xff]
      %v1958 = vld [vmem:[#allocation3 + $0x20] sm:$0xff]
      %v1959 = vld [vmem:[#allocation3 + $0x30] sm:$0xff]
      %v1960 = vld [vmem:[#allocation3 + $0x38] sm:$0xff]
      %v1961 = vld [vmem:[#allocation3 + $0x48] sm:$0xff]
      %v1962 = vld [vmem:[#allocation3 + $0x50] sm:$0xff]
      %v1963 = vld [vmem:[#allocation3 + $0x60] sm:$0xff]
      %v1964 = vld [vmem:[#allocation3 + $0x68] sm:$0xff]
      %v1965 = vld [vmem:[#allocation3 + $0x78] sm:$0xff]
      %v1966 = vld [vmem:[#allocation3 + $0x80] sm:$0xff]
      %v1967 = vld [vmem:[#allocation3 + $0x90] sm:$0xff]
      %v1968 = vld [vmem:[#allocation3 + $0x98] sm:$0xff]
      %v1969 = vld [vmem:[#allocation3 + $0xa8] sm:$0xff]
      %v1970 = vld [vmem:[#allocation3 + $0xb0] sm:$0xff]
      %v1971 = vsel %vm331, %v1955, 0.0
      %v1972 = vsel %vm332, %v1956, 0.0
      %v1973 = vsel %vm331, %v1957, 0.0
      %v1974 = vsel %vm332, %v1958, 0.0
      %v1975 = vsel %vm331, %v1959, 0.0
      %v1976 = vsel %vm332, %v1960, 0.0
      %v1977 = vsel %vm331, %v1961, 0.0
      %v1978 = vsel %vm332, %v1962, 0.0
      %v1979 = vsel %vm331, %v1963, 0.0
      %v1980 = vsel %vm332, %v1964, 0.0
      %v1981 = vsel %vm331, %v1965, 0.0
      %v1982 = vsel %vm332, %v1966, 0.0
      %v1983 = vsel %vm331, %v1967, 0.0
      %v1984 = vsel %vm332, %v1968, 0.0
      %v1985 = vsel %vm331, %v1969, 0.0
      %v1986 = vsel %vm332, %v1970, 0.0
      %v1987 = vld [vmem:[#allocation4] sm:$0xff]
      %v1988 = vld [vmem:[#allocation4 + $0x8] sm:$0xff]
      %v1989 = vld [vmem:[#allocation4 + $0x10] sm:$0xff]
      %v1990 = vld [vmem:[#allocation4 + $0x18] sm:$0xff]
      %v1991 = vld [vmem:[#allocation4 + $0x20] sm:$0xff]
      %v1992 = vld [vmem:[#allocation4 + $0x28] sm:$0xff]
      %v1993 = vld [vmem:[#allocation4 + $0x30] sm:$0xff]
      %v1994 = vld [vmem:[#allocation4 + $0x38] sm:$0xff]
      %v1995 = vld [vmem:[#allocation4 + $0x40] sm:$0xff]
      %v1996 = vld [vmem:[#allocation4 + $0x48] sm:$0xff]
      %v1997 = vld [vmem:[#allocation4 + $0x50] sm:$0xff]
      %v1998 = vld [vmem:[#allocation4 + $0x58] sm:$0xff]
      %v1999 = vld [vmem:[#allocation4 + $0x60] sm:$0xff]
      %v2000 = vld [vmem:[#allocation4 + $0x68] sm:$0xff]
      %v2001 = vld [vmem:[#allocation4 + $0x70] sm:$0xff]
      %v2002 = vld [vmem:[#allocation4 + $0x78] sm:$0xff]
      %v2003 = vld [vmem:[#allocation4 + $0x80] sm:$0xff]
      %v2004 = vld [vmem:[#allocation4 + $0x88] sm:$0xff]
      %v2005 = vld [vmem:[#allocation4 + $0x90] sm:$0xff]
      %v2006 = vld [vmem:[#allocation4 + $0x98] sm:$0xff]
      %v2007 = vld [vmem:[#allocation4 + $0xa0] sm:$0xff]
      %v2008 = vld [vmem:[#allocation4 + $0xa8] sm:$0xff]
      %v2009 = vld [vmem:[#allocation4 + $0xb0] sm:$0xff]
      %v2010 = vld [vmem:[#allocation4 + $0xb8] sm:$0xff]
      %v2011 = vld [vmem:[#allocation4 + $0xc0] sm:$0xff]
      %v2012 = vld [vmem:[#allocation4 + $0xc8] sm:$0xff]
      %v2013 = vld [vmem:[#allocation4 + $0xd0] sm:$0xff]
      %v2014 = vld [vmem:[#allocation4 + $0xd8] sm:$0xff]
      %v2015 = vld [vmem:[#allocation4 + $0xe0] sm:$0xff]
      %v2016 = vld [vmem:[#allocation4 + $0xe8] sm:$0xff]
      %v2017 = vld [vmem:[#allocation4 + $0xf0] sm:$0xff]
      %v2018 = vld [vmem:[#allocation4 + $0xf8] sm:$0xff]
      %v2019 = vld [vmem:[%s3] sm:$0xff]
      %v2020 = vld [vmem:[%s3 + $0x8] sm:$0xff]
      %v2021 = vld [vmem:[%s3 + $0x10] sm:$0xff]
      %v2022 = vld [vmem:[%s3 + $0x18] sm:$0xff]
      %v2023 = vld [vmem:[%s3 + $0x20] sm:$0xff]
      %v2024 = vld [vmem:[%s3 + $0x28] sm:$0xff]
      %v2025 = vld [vmem:[%s3 + $0x30] sm:$0xff]
      %v2026 = vld [vmem:[%s3 + $0x38] sm:$0xff]
      %v2027 = vld [vmem:[%s3 + $0x40] sm:$0xff]
      %v2028 = vld [vmem:[%s3 + $0x48] sm:$0xff]
      %v2029 = vld [vmem:[%s3 + $0x50] sm:$0xff]
      %v2030 = vld [vmem:[%s3 + $0x58] sm:$0xff]
      %v2031 = vld [vmem:[%s3 + $0x60] sm:$0xff]
      %v2032 = vld [vmem:[%s3 + $0x68] sm:$0xff]
      %v2033 = vld [vmem:[%s3 + $0x70] sm:$0xff]
      %v2034 = vld [vmem:[%s3 + $0x78] sm:$0xff]
      %vm2035 = vcmask 523264
      %v2037 = vsel %vm2035, %v2019, 0
      %v2040 = vsel %vm2035, %v2020, 0
      %v2043 = vsel %vm2035, %v2021, 0
      %v2046 = vsel %vm2035, %v2022, 0
      %v2049 = vsel %vm2035, %v2023, 0
      %v2052 = vsel %vm2035, %v2024, 0
      %v2055 = vsel %vm2035, %v2025, 0
      %v2058 = vsel %vm2035, %v2026, 0
      %v2061 = vsel %vm2035, %v2027, 0
      %v2064 = vsel %vm2035, %v2028, 0
      %v2067 = vsel %vm2035, %v2029, 0
      %v2070 = vsel %vm2035, %v2030, 0
      %v2073 = vsel %vm2035, %v2031, 0
      %v2076 = vsel %vm2035, %v2032, 0
      %v2079 = vsel %vm2035, %v2033, 0
      %v2082 = vsel %vm2035, %v2034, 0
      %2084 = vmatpush.msra.mxu0 0.0
      %2085 = vmatpush.msra.mxu0 0.0
      %2086 = vmatpush.msra.mxu0 0.0
      %2087 = vmatpush.msra.mxu0 0.0
      %2088 = vmatpush.msra.mxu0 0.0
      %2089 = vmatpush.msra.mxu0 0.0
      %2090 = vmatpush.msra.mxu0 0.0
      %2091 = vmatpush.msra.mxu0 0.0
      %2092 = vmatpush.msra.mxu0 %v1985
      %2093 = vmatpush.msra.mxu0 %v1983
      %2094 = vmatpush.msra.mxu0 %v1981
      %2095 = vmatpush.msra.mxu0 %v1979
      %2096 = vmatpush.msra.mxu0 %v1977
      %2097 = vmatpush.msra.mxu0 %v1975
      %2098 = vmatpush.msra.mxu0 %v1973
      %2099 = vmatpush.msra.mxu0 %v1971
      %2100 = vmatmul.f32.gmra.mxu0 %v2037
      %v2101 = vpop.f32.mrf.mxu0
      %v2102 = vadd.f32 0.0, %v2101
      %2103 = vmatmul.f32.gmra.mxu0 %v2040
      %v2104 = vpop.f32.mrf.mxu0
      %v2105 = vadd.f32 0.0, %v2104
      %2106 = vmatmul.f32.gmra.mxu0 %v2043
      %v2107 = vpop.f32.mrf.mxu0
      %v2108 = vadd.f32 0.0, %v2107
      %2109 = vmatmul.f32.gmra.mxu0 %v2046
      %v2110 = vpop.f32.mrf.mxu0
      %v2111 = vadd.f32 0.0, %v2110
      %2112 = vmatmul.f32.gmra.mxu0 %v2049
      %v2113 = vpop.f32.mrf.mxu0
      %v2114 = vadd.f32 0.0, %v2113
      %2115 = vmatmul.f32.gmra.mxu0 %v2052
      %v2116 = vpop.f32.mrf.mxu0
      %v2117 = vadd.f32 0.0, %v2116
      %2118 = vmatmul.f32.gmra.mxu0 %v2055
      %v2119 = vpop.f32.mrf.mxu0
      %v2120 = vadd.f32 0.0, %v2119
      %2121 = vmatmul.f32.gmra.mxu0 %v2058
      %v2122 = vpop.f32.mrf.mxu0
      %v2123 = vadd.f32 0.0, %v2122
      %2124 = vmatmul.f32.gmra.mxu0 %v2061
      %v2125 = vpop.f32.mrf.mxu0
      %v2126 = vadd.f32 0.0, %v2125
      %2127 = vmatmul.f32.gmra.mxu0 %v2064
      %v2128 = vpop.f32.mrf.mxu0
      %v2129 = vadd.f32 0.0, %v2128
      %2130 = vmatmul.f32.gmra.mxu0 %v2067
      %v2131 = vpop.f32.mrf.mxu0
      %v2132 = vadd.f32 0.0, %v2131
      %2133 = vmatmul.f32.gmra.mxu0 %v2070
      %v2134 = vpop.f32.mrf.mxu0
      %v2135 = vadd.f32 0.0, %v2134
      %2136 = vmatmul.f32.gmra.mxu0 %v2073
      %v2137 = vpop.f32.mrf.mxu0
      %v2138 = vadd.f32 0.0, %v2137
      %2139 = vmatmul.f32.gmra.mxu0 %v2076
      %v2140 = vpop.f32.mrf.mxu0
      %v2141 = vadd.f32 0.0, %v2140
      %2142 = vmatmul.f32.gmra.mxu0 %v2079
      %v2143 = vpop.f32.mrf.mxu0
      %v2144 = vadd.f32 0.0, %v2143
      %2145 = vmatmul.f32.gmra.mxu0 %v2082
      %v2146 = vpop.f32.mrf.mxu0
      %v2147 = vadd.f32 0.0, %v2146
      %2148 = vdwg.mxu0
      %2149 = vmatpush.msra.mxu0 0.0
      %2150 = vmatpush.msra.mxu0 0.0
      %2151 = vmatpush.msra.mxu0 0.0
      %2152 = vmatpush.msra.mxu0 0.0
      %2153 = vmatpush.msra.mxu0 0.0
      %2154 = vmatpush.msra.mxu0 0.0
      %2155 = vmatpush.msra.mxu0 0.0
      %2156 = vmatpush.msra.mxu0 0.0
      %2157 = vmatpush.msra.mxu0 %v1986
      %2158 = vmatpush.msra.mxu0 %v1984
      %2159 = vmatpush.msra.mxu0 %v1982
      %2160 = vmatpush.msra.mxu0 %v1980
      %2161 = vmatpush.msra.mxu0 %v1978
      %2162 = vmatpush.msra.mxu0 %v1976
      %2163 = vmatpush.msra.mxu0 %v1974
      %2164 = vmatpush.msra.mxu0 %v1972
      %2165 = vmatmul.f32.gmra.mxu0 %v2037
      %v2166 = vpop.f32.mrf.mxu0
      %v2167 = vadd.f32 0.0, %v2166
      %2168 = vmatmul.f32.gmra.mxu0 %v2040
      %v2169 = vpop.f32.mrf.mxu0
      %v2170 = vadd.f32 0.0, %v2169
      %2171 = vmatmul.f32.gmra.mxu0 %v2043
      %v2172 = vpop.f32.mrf.mxu0
      %v2173 = vadd.f32 0.0, %v2172
      %2174 = vmatmul.f32.gmra.mxu0 %v2046
      %v2175 = vpop.f32.mrf.mxu0
      %v2176 = vadd.f32 0.0, %v2175
      %2177 = vmatmul.f32.gmra.mxu0 %v2049
      %v2178 = vpop.f32.mrf.mxu0
      %v2179 = vadd.f32 0.0, %v2178
      %2180 = vmatmul.f32.gmra.mxu0 %v2052
      %v2181 = vpop.f32.mrf.mxu0
      %v2182 = vadd.f32 0.0, %v2181
      %2183 = vmatmul.f32.gmra.mxu0 %v2055
      %v2184 = vpop.f32.mrf.mxu0
      %v2185 = vadd.f32 0.0, %v2184
      %2186 = vmatmul.f32.gmra.mxu0 %v2058
      %v2187 = vpop.f32.mrf.mxu0
      %v2188 = vadd.f32 0.0, %v2187
      %2189 = vmatmul.f32.gmra.mxu0 %v2061
      %v2190 = vpop.f32.mrf.mxu0
      %v2191 = vadd.f32 0.0, %v2190
      %2192 = vmatmul.f32.gmra.mxu0 %v2064
      %v2193 = vpop.f32.mrf.mxu0
      %v2194 = vadd.f32 0.0, %v2193
      %2195 = vmatmul.f32.gmra.mxu0 %v2067
      %v2196 = vpop.f32.mrf.mxu0
      %v2197 = vadd.f32 0.0, %v2196
      %2198 = vmatmul.f32.gmra.mxu0 %v2070
      %v2199 = vpop.f32.mrf.mxu0
      %v2200 = vadd.f32 0.0, %v2199
      %2201 = vmatmul.f32.gmra.mxu0 %v2073
      %v2202 = vpop.f32.mrf.mxu0
      %v2203 = vadd.f32 0.0, %v2202
      %2204 = vmatmul.f32.gmra.mxu0 %v2076
      %v2205 = vpop.f32.mrf.mxu0
      %v2206 = vadd.f32 0.0, %v2205
      %2207 = vmatmul.f32.gmra.mxu0 %v2079
      %v2208 = vpop.f32.mrf.mxu0
      %v2209 = vadd.f32 0.0, %v2208
      %2210 = vmatmul.f32.gmra.mxu0 %v2082
      %v2211 = vpop.f32.mrf.mxu0
      %v2212 = vadd.f32 0.0, %v2211
      %2213 = vdwg.mxu0
      %v2214 = vadd.f32 %v1987, %v2102
      %v2215 = vadd.f32 %v1988, %v2167
      %v2216 = vadd.f32 %v1989, %v2105
      %v2217 = vadd.f32 %v1990, %v2170
      %v2218 = vadd.f32 %v1991, %v2108
      %v2219 = vadd.f32 %v1992, %v2173
      %v2220 = vadd.f32 %v1993, %v2111
      %v2221 = vadd.f32 %v1994, %v2176
      %v2222 = vadd.f32 %v1995, %v2114
      %v2223 = vadd.f32 %v1996, %v2179
      %v2224 = vadd.f32 %v1997, %v2117
      %v2225 = vadd.f32 %v1998, %v2182
      %v2226 = vadd.f32 %v1999, %v2120
      %v2227 = vadd.f32 %v2000, %v2185
      %v2228 = vadd.f32 %v2001, %v2123
      %v2229 = vadd.f32 %v2002, %v2188
      %v2230 = vadd.f32 %v2003, %v2126
      %v2231 = vadd.f32 %v2004, %v2191
      %v2232 = vadd.f32 %v2005, %v2129
      %v2233 = vadd.f32 %v2006, %v2194
      %v2234 = vadd.f32 %v2007, %v2132
      %v2235 = vadd.f32 %v2008, %v2197
      %v2236 = vadd.f32 %v2009, %v2135
      %v2237 = vadd.f32 %v2010, %v2200
      %v2238 = vadd.f32 %v2011, %v2138
      %v2239 = vadd.f32 %v2012, %v2203
      %v2240 = vadd.f32 %v2013, %v2141
      %v2241 = vadd.f32 %v2014, %v2206
      %v2242 = vadd.f32 %v2015, %v2144
      %v2243 = vadd.f32 %v2016, %v2209
      %v2244 = vadd.f32 %v2017, %v2147
      %v2245 = vadd.f32 %v2018, %v2212
      %2246 = vst [vmem:[#allocation4] sm:$0xff] %v2214
      %2247 = vst [vmem:[#allocation4 + $0x8] sm:$0xff] %v2215
      %2248 = vst [vmem:[#allocation4 + $0x10] sm:$0xff] %v2216
      %2249 = vst [vmem:[#allocation4 + $0x18] sm:$0xff] %v2217
      %2250 = vst [vmem:[#allocation4 + $0x20] sm:$0xff] %v2218
      %2251 = vst [vmem:[#allocation4 + $0x28] sm:$0xff] %v2219
      %2252 = vst [vmem:[#allocation4 + $0x30] sm:$0xff] %v2220
      %2253 = vst [vmem:[#allocation4 + $0x38] sm:$0xff] %v2221
      %2254 = vst [vmem:[#allocation4 + $0x40] sm:$0xff] %v2222
      %2255 = vst [vmem:[#allocation4 + $0x48] sm:$0xff] %v2223
      %2256 = vst [vmem:[#allocation4 + $0x50] sm:$0xff] %v2224
      %2257 = vst [vmem:[#allocation4 + $0x58] sm:$0xff] %v2225
      %2258 = vst [vmem:[#allocation4 + $0x60] sm:$0xff] %v2226
      %2259 = vst [vmem:[#allocation4 + $0x68] sm:$0xff] %v2227
      %2260 = vst [vmem:[#allocation4 + $0x70] sm:$0xff] %v2228
      %2261 = vst [vmem:[#allocation4 + $0x78] sm:$0xff] %v2229
      %2262 = vst [vmem:[#allocation4 + $0x80] sm:$0xff] %v2230
      %2263 = vst [vmem:[#allocation4 + $0x88] sm:$0xff] %v2231
      %2264 = vst [vmem:[#allocation4 + $0x90] sm:$0xff] %v2232
      %2265 = vst [vmem:[#allocation4 + $0x98] sm:$0xff] %v2233
      %2266 = vst [vmem:[#allocation4 + $0xa0] sm:$0xff] %v2234
      %2267 = vst [vmem:[#allocation4 + $0xa8] sm:$0xff] %v2235
      %2268 = vst [vmem:[#allocation4 + $0xb0] sm:$0xff] %v2236
      %2269 = vst [vmem:[#allocation4 + $0xb8] sm:$0xff] %v2237
      %2270 = vst [vmem:[#allocation4 + $0xc0] sm:$0xff] %v2238
      %2271 = vst [vmem:[#allocation4 + $0xc8] sm:$0xff] %v2239
      %2272 = vst [vmem:[#allocation4 + $0xd0] sm:$0xff] %v2240
      %2273 = vst [vmem:[#allocation4 + $0xd8] sm:$0xff] %v2241
      %2274 = vst [vmem:[#allocation4 + $0xe0] sm:$0xff] %v2242
      %2275 = vst [vmem:[#allocation4 + $0xe8] sm:$0xff] %v2243
      %2276 = vst [vmem:[#allocation4 + $0xf0] sm:$0xff] %v2244
      %2277 = vst [vmem:[#allocation4 + $0xf8] sm:$0xff] %v2245
      %v2278 = vld [vmem:[#allocation3] sm:$0xff]
      %v2279 = vld [vmem:[#allocation3 + $0x8] sm:$0xff]
      %v2280 = vld [vmem:[#allocation3 + $0x10] sm:$0xff]
      %v2281 = vld [vmem:[#allocation3 + $0x18] sm:$0xff]
      %v2282 = vld [vmem:[#allocation3 + $0x20] sm:$0xff]
      %v2283 = vld [vmem:[#allocation3 + $0x28] sm:$0xff]
      %v2284 = vld [vmem:[#allocation3 + $0x30] sm:$0xff]
      %v2285 = vld [vmem:[#allocation3 + $0x38] sm:$0xff]
      %v2286 = vld [vmem:[#allocation3 + $0x40] sm:$0xff]
      %v2287 = vld [vmem:[#allocation3 + $0x48] sm:$0xff]
      %v2288 = vld [vmem:[#allocation3 + $0x50] sm:$0xff]
      %v2289 = vld [vmem:[#allocation3 + $0x58] sm:$0xff]
      %v2290 = vld [vmem:[#allocation3 + $0x60] sm:$0xff]
      %v2291 = vld [vmem:[#allocation3 + $0x68] sm:$0xff]
      %v2292 = vld [vmem:[#allocation3 + $0x70] sm:$0xff]
      %v2293 = vld [vmem:[#allocation3 + $0x78] sm:$0xff]
      %v2294 = vld [vmem:[#allocation3 + $0x80] sm:$0xff]
      %v2295 = vld [vmem:[#allocation3 + $0x88] sm:$0xff]
      %v2296 = vld [vmem:[#allocation3 + $0x90] sm:$0xff]
      %v2297 = vld [vmem:[#allocation3 + $0x98] sm:$0xff]
      %v2298 = vld [vmem:[#allocation3 + $0xa0] sm:$0xff]
      %v2299 = vld [vmem:[#allocation3 + $0xa8] sm:$0xff]
      %v2300 = vld [vmem:[#allocation3 + $0xb0] sm:$0xff]
      %v2301 = vld [vmem:[#allocation3 + $0xb8] sm:$0xff]
      %v2302 = vld [vmem:[#allocation4] sm:$0xff]
      %v2303 = vld [vmem:[#allocation4 + $0x8] sm:$0xff]
      %v2304 = vld [vmem:[#allocation4 + $0x10] sm:$0xff]
      %v2305 = vld [vmem:[#allocation4 + $0x18] sm:$0xff]
      %v2306 = vld [vmem:[#allocation4 + $0x20] sm:$0xff]
      %v2307 = vld [vmem:[#allocation4 + $0x28] sm:$0xff]
      %v2308 = vld [vmem:[#allocation4 + $0x30] sm:$0xff]
      %v2309 = vld [vmem:[#allocation4 + $0x38] sm:$0xff]
      %v2310 = vld [vmem:[#allocation4 + $0x40] sm:$0xff]
      %v2311 = vld [vmem:[#allocation4 + $0x48] sm:$0xff]
      %v2312 = vld [vmem:[#allocation4 + $0x50] sm:$0xff]
      %v2313 = vld [vmem:[#allocation4 + $0x58] sm:$0xff]
      %v2314 = vld [vmem:[#allocation4 + $0x60] sm:$0xff]
      %v2315 = vld [vmem:[#allocation4 + $0x68] sm:$0xff]
      %v2316 = vld [vmem:[#allocation4 + $0x70] sm:$0xff]
      %v2317 = vld [vmem:[#allocation4 + $0x78] sm:$0xff]
      %v2318 = vld [vmem:[#allocation4 + $0x80] sm:$0xff]
      %v2319 = vld [vmem:[#allocation4 + $0x88] sm:$0xff]
      %v2320 = vld [vmem:[#allocation4 + $0x90] sm:$0xff]
      %v2321 = vld [vmem:[#allocation4 + $0x98] sm:$0xff]
      %v2322 = vld [vmem:[#allocation4 + $0xa0] sm:$0xff]
      %v2323 = vld [vmem:[#allocation4 + $0xa8] sm:$0xff]
      %v2324 = vld [vmem:[#allocation4 + $0xb0] sm:$0xff]
      %v2325 = vld [vmem:[#allocation4 + $0xb8] sm:$0xff]
      %v2326 = vld [vmem:[#allocation4 + $0xc0] sm:$0xff]
      %v2327 = vld [vmem:[#allocation4 + $0xc8] sm:$0xff]
      %v2328 = vld [vmem:[#allocation4 + $0xd0] sm:$0xff]
      %v2329 = vld [vmem:[#allocation4 + $0xd8] sm:$0xff]
      %v2330 = vld [vmem:[#allocation4 + $0xe0] sm:$0xff]
      %v2331 = vld [vmem:[#allocation4 + $0xe8] sm:$0xff]
      %v2332 = vld [vmem:[#allocation4 + $0xf0] sm:$0xff]
      %v2333 = vld [vmem:[#allocation4 + $0xf8] sm:$0xff]
      %s2334 = scalar_lea.vmem %s3, 128
      %v2335 = vld [vmem:[%s2334] sm:$0xff]
      %v2336 = vld [vmem:[%s2334 + $0x8] sm:$0xff]
      %v2337 = vld [vmem:[%s2334 + $0x10] sm:$0xff]
      %v2338 = vld [vmem:[%s2334 + $0x18] sm:$0xff]
      %v2339 = vld [vmem:[%s2334 + $0x20] sm:$0xff]
      %v2340 = vld [vmem:[%s2334 + $0x28] sm:$0xff]
      %v2341 = vld [vmem:[%s2334 + $0x30] sm:$0xff]
      %v2342 = vld [vmem:[%s2334 + $0x38] sm:$0xff]
      %v2343 = vld [vmem:[%s2334 + $0x40] sm:$0xff]
      %v2344 = vld [vmem:[%s2334 + $0x48] sm:$0xff]
      %v2345 = vld [vmem:[%s2334 + $0x50] sm:$0xff]
      %v2346 = vld [vmem:[%s2334 + $0x58] sm:$0xff]
      %v2347 = vld [vmem:[%s2334 + $0x60] sm:$0xff]
      %v2348 = vld [vmem:[%s2334 + $0x68] sm:$0xff]
      %v2349 = vld [vmem:[%s2334 + $0x70] sm:$0xff]
      %v2350 = vld [vmem:[%s2334 + $0x78] sm:$0xff]
      %2375 = vrot.lane.b32.xlu0 %v2278, 127
      %v2376 = vpop.permute.xlu0 %2375
      %2377 = vrot.lane.b32.xlu0 %v2279, 127
      %v2378 = vpop.permute.xlu0 %2377
      %2379 = vrot.lane.b32.xlu0 %v2280, 127
      %v2380 = vpop.permute.xlu0 %2379
      %2381 = vrot.lane.b32.xlu0 %v2281, 127
      %v2382 = vpop.permute.xlu0 %2381
      %2383 = vrot.lane.b32.xlu0 %v2282, 127
      %v2384 = vpop.permute.xlu0 %2383
      %2385 = vrot.lane.b32.xlu0 %v2283, 127
      %v2386 = vpop.permute.xlu0 %2385
      %2387 = vrot.lane.b32.xlu0 %v2284, 127
      %v2388 = vpop.permute.xlu0 %2387
      %2389 = vrot.lane.b32.xlu0 %v2285, 127
      %v2390 = vpop.permute.xlu0 %2389
      %2391 = vrot.lane.b32.xlu0 %v2286, 127
      %v2392 = vpop.permute.xlu0 %2391
      %2393 = vrot.lane.b32.xlu0 %v2287, 127
      %v2394 = vpop.permute.xlu0 %2393
      %2395 = vrot.lane.b32.xlu0 %v2288, 127
      %v2396 = vpop.permute.xlu0 %2395
      %2397 = vrot.lane.b32.xlu0 %v2289, 127
      %v2398 = vpop.permute.xlu0 %2397
      %2399 = vrot.lane.b32.xlu0 %v2290, 127
      %v2400 = vpop.permute.xlu0 %2399
      %2401 = vrot.lane.b32.xlu0 %v2291, 127
      %v2402 = vpop.permute.xlu0 %2401
      %2403 = vrot.lane.b32.xlu0 %v2292, 127
      %v2404 = vpop.permute.xlu0 %2403
      %2405 = vrot.lane.b32.xlu0 %v2293, 127
      %v2406 = vpop.permute.xlu0 %2405
      %2407 = vrot.lane.b32.xlu0 %v2294, 127
      %v2408 = vpop.permute.xlu0 %2407
      %2409 = vrot.lane.b32.xlu0 %v2295, 127
      %v2410 = vpop.permute.xlu0 %2409
      %2411 = vrot.lane.b32.xlu0 %v2296, 127
      %v2412 = vpop.permute.xlu0 %2411
      %2413 = vrot.lane.b32.xlu0 %v2297, 127
      %v2414 = vpop.permute.xlu0 %2413
      %2415 = vrot.lane.b32.xlu0 %v2298, 127
      %v2416 = vpop.permute.xlu0 %2415
      %2417 = vrot.lane.b32.xlu0 %v2299, 127
      %v2418 = vpop.permute.xlu0 %2417
      %2419 = vrot.lane.b32.xlu0 %v2300, 127
      %v2420 = vpop.permute.xlu0 %2419
      %2421 = vrot.lane.b32.xlu0 %v2301, 127
      %v2422 = vpop.permute.xlu0 %2421
      %v2423 = vsel %vm374, %v2376, %v2378
      %v2424 = vsel %vm374, %v2378, %v2380
      %v2425 = vsel %vm374, %v2382, %v2384
      %v2426 = vsel %vm374, %v2384, %v2386
      %v2427 = vsel %vm374, %v2388, %v2390
      %v2428 = vsel %vm374, %v2390, %v2392
      %v2429 = vsel %vm374, %v2394, %v2396
      %v2430 = vsel %vm374, %v2396, %v2398
      %v2431 = vsel %vm374, %v2400, %v2402
      %v2432 = vsel %vm374, %v2402, %v2404
      %v2433 = vsel %vm374, %v2406, %v2408
      %v2434 = vsel %vm374, %v2408, %v2410
      %v2435 = vsel %vm374, %v2412, %v2414
      %v2436 = vsel %vm374, %v2414, %v2416
      %v2437 = vsel %vm374, %v2418, %v2420
      %v2438 = vsel %vm374, %v2420, %v2422
      %v2456 = vsel %vm2035, %v2335, 0
      %v2459 = vsel %vm2035, %v2336, 0
      %v2462 = vsel %vm2035, %v2337, 0
      %v2465 = vsel %vm2035, %v2338, 0
      %v2468 = vsel %vm2035, %v2339, 0
      %v2471 = vsel %vm2035, %v2340, 0
      %v2474 = vsel %vm2035, %v2341, 0
      %v2477 = vsel %vm2035, %v2342, 0
      %v2480 = vsel %vm2035, %v2343, 0
      %v2483 = vsel %vm2035, %v2344, 0
      %v2486 = vsel %vm2035, %v2345, 0
      %v2489 = vsel %vm2035, %v2346, 0
      %v2492 = vsel %vm2035, %v2347, 0
      %v2495 = vsel %vm2035, %v2348, 0
      %v2498 = vsel %vm2035, %v2349, 0
      %v2501 = vsel %vm2035, %v2350, 0
      %2503 = vmatpush.msra.mxu0 0.0
      %2504 = vmatpush.msra.mxu0 0.0
      %2505 = vmatpush.msra.mxu0 0.0
      %2506 = vmatpush.msra.mxu0 0.0
      %2507 = vmatpush.msra.mxu0 0.0
      %2508 = vmatpush.msra.mxu0 0.0
      %2509 = vmatpush.msra.mxu0 0.0
      %2510 = vmatpush.msra.mxu0 0.0
      %2511 = vmatpush.msra.mxu0 %v2437
      %2512 = vmatpush.msra.mxu0 %v2435
      %2513 = vmatpush.msra.mxu0 %v2433
      %2514 = vmatpush.msra.mxu0 %v2431
      %2515 = vmatpush.msra.mxu0 %v2429
      %2516 = vmatpush.msra.mxu0 %v2427
      %2517 = vmatpush.msra.mxu0 %v2425
      %2518 = vmatpush.msra.mxu0 %v2423
      %2519 = vmatmul.f32.gmra.mxu0 %v2456
      %v2520 = vpop.f32.mrf.mxu0
      %v2521 = vadd.f32 0.0, %v2520
      %2522 = vmatmul.f32.gmra.mxu0 %v2459
      %v2523 = vpop.f32.mrf.mxu0
      %v2524 = vadd.f32 0.0, %v2523
      %2525 = vmatmul.f32.gmra.mxu0 %v2462
      %v2526 = vpop.f32.mrf.mxu0
      %v2527 = vadd.f32 0.0, %v2526
      %2528 = vmatmul.f32.gmra.mxu0 %v2465
      %v2529 = vpop.f32.mrf.mxu0
      %v2530 = vadd.f32 0.0, %v2529
      %2531 = vmatmul.f32.gmra.mxu0 %v2468
      %v2532 = vpop.f32.mrf.mxu0
      %v2533 = vadd.f32 0.0, %v2532
      %2534 = vmatmul.f32.gmra.mxu0 %v2471
      %v2535 = vpop.f32.mrf.mxu0
      %v2536 = vadd.f32 0.0, %v2535
      %2537 = vmatmul.f32.gmra.mxu0 %v2474
      %v2538 = vpop.f32.mrf.mxu0
      %v2539 = vadd.f32 0.0, %v2538
      %2540 = vmatmul.f32.gmra.mxu0 %v2477
      %v2541 = vpop.f32.mrf.mxu0
      %v2542 = vadd.f32 0.0, %v2541
      %2543 = vmatmul.f32.gmra.mxu0 %v2480
      %v2544 = vpop.f32.mrf.mxu0
      %v2545 = vadd.f32 0.0, %v2544
      %2546 = vmatmul.f32.gmra.mxu0 %v2483
      %v2547 = vpop.f32.mrf.mxu0
      %v2548 = vadd.f32 0.0, %v2547
      %2549 = vmatmul.f32.gmra.mxu0 %v2486
      %v2550 = vpop.f32.mrf.mxu0
      %v2551 = vadd.f32 0.0, %v2550
      %2552 = vmatmul.f32.gmra.mxu0 %v2489
      %v2553 = vpop.f32.mrf.mxu0
      %v2554 = vadd.f32 0.0, %v2553
      %2555 = vmatmul.f32.gmra.mxu0 %v2492
      %v2556 = vpop.f32.mrf.mxu0
      %v2557 = vadd.f32 0.0, %v2556
      %2558 = vmatmul.f32.gmra.mxu0 %v2495
      %v2559 = vpop.f32.mrf.mxu0
      %v2560 = vadd.f32 0.0, %v2559
      %2561 = vmatmul.f32.gmra.mxu0 %v2498
      %v2562 = vpop.f32.mrf.mxu0
      %v2563 = vadd.f32 0.0, %v2562
      %2564 = vmatmul.f32.gmra.mxu0 %v2501
      %v2565 = vpop.f32.mrf.mxu0
      %v2566 = vadd.f32 0.0, %v2565
      %2567 = vdwg.mxu0
      %2568 = vmatpush.msra.mxu0 0.0
      %2569 = vmatpush.msra.mxu0 0.0
      %2570 = vmatpush.msra.mxu0 0.0
      %2571 = vmatpush.msra.mxu0 0.0
      %2572 = vmatpush.msra.mxu0 0.0
      %2573 = vmatpush.msra.mxu0 0.0
      %2574 = vmatpush.msra.mxu0 0.0
      %2575 = vmatpush.msra.mxu0 0.0
      %2576 = vmatpush.msra.mxu0 %v2438
      %2577 = vmatpush.msra.mxu0 %v2436
      %2578 = vmatpush.msra.mxu0 %v2434
      %2579 = vmatpush.msra.mxu0 %v2432
      %2580 = vmatpush.msra.mxu0 %v2430
      %2581 = vmatpush.msra.mxu0 %v2428
      %2582 = vmatpush.msra.mxu0 %v2426
      %2583 = vmatpush.msra.mxu0 %v2424
      %2584 = vmatmul.f32.gmra.mxu0 %v2456
      %v2585 = vpop.f32.mrf.mxu0
      %v2586 = vadd.f32 0.0, %v2585
      %2587 = vmatmul.f32.gmra.mxu0 %v2459
      %v2588 = vpop.f32.mrf.mxu0
      %v2589 = vadd.f32 0.0, %v2588
      %2590 = vmatmul.f32.gmra.mxu0 %v2462
      %v2591 = vpop.f32.mrf.mxu0
      %v2592 = vadd.f32 0.0, %v2591
      %2593 = vmatmul.f32.gmra.mxu0 %v2465
      %v2594 = vpop.f32.mrf.mxu0
      %v2595 = vadd.f32 0.0, %v2594
      %2596 = vmatmul.f32.gmra.mxu0 %v2468
      %v2597 = vpop.f32.mrf.mxu0
      %v2598 = vadd.f32 0.0, %v2597
      %2599 = vmatmul.f32.gmra.mxu0 %v2471
      %v2600 = vpop.f32.mrf.mxu0
      %v2601 = vadd.f32 0.0, %v2600
      %2602 = vmatmul.f32.gmra.mxu0 %v2474
      %v2603 = vpop.f32.mrf.mxu0
      %v2604 = vadd.f32 0.0, %v2603
      %2605 = vmatmul.f32.gmra.mxu0 %v2477
      %v2606 = vpop.f32.mrf.mxu0
      %v2607 = vadd.f32 0.0, %v2606
      %2608 = vmatmul.f32.gmra.mxu0 %v2480
      %v2609 = vpop.f32.mrf.mxu0
      %v2610 = vadd.f32 0.0, %v2609
      %2611 = vmatmul.f32.gmra.mxu0 %v2483
      %v2612 = vpop.f32.mrf.mxu0
      %v2613 = vadd.f32 0.0, %v2612
      %2614 = vmatmul.f32.gmra.mxu0 %v2486
      %v2615 = vpop.f32.mrf.mxu0
      %v2616 = vadd.f32 0.0, %v2615
      %2617 = vmatmul.f32.gmra.mxu0 %v2489
      %v2618 = vpop.f32.mrf.mxu0
      %v2619 = vadd.f32 0.0, %v2618
      %2620 = vmatmul.f32.gmra.mxu0 %v2492
      %v2621 = vpop.f32.mrf.mxu0
      %v2622 = vadd.f32 0.0, %v2621
      %2623 = vmatmul.f32.gmra.mxu0 %v2495
      %v2624 = vpop.f32.mrf.mxu0
      %v2625 = vadd.f32 0.0, %v2624
      %2626 = vmatmul.f32.gmra.mxu0 %v2498
      %v2627 = vpop.f32.mrf.mxu0
      %v2628 = vadd.f32 0.0, %v2627
      %2629 = vmatmul.f32.gmra.mxu0 %v2501
      %v2630 = vpop.f32.mrf.mxu0
      %v2631 = vadd.f32 0.0, %v2630
      %2632 = vdwg.mxu0
      %v2633 = vadd.f32 %v2302, %v2521
      %v2634 = vadd.f32 %v2303, %v2586
      %v2635 = vadd.f32 %v2304, %v2524
      %v2636 = vadd.f32 %v2305, %v2589
      %v2637 = vadd.f32 %v2306, %v2527
      %v2638 = vadd.f32 %v2307, %v2592
      %v2639 = vadd.f32 %v2308, %v2530
      %v2640 = vadd.f32 %v2309, %v2595
      %v2641 = vadd.f32 %v2310, %v2533
      %v2642 = vadd.f32 %v2311, %v2598
      %v2643 = vadd.f32 %v2312, %v2536
      %v2644 = vadd.f32 %v2313, %v2601
      %v2645 = vadd.f32 %v2314, %v2539
      %v2646 = vadd.f32 %v2315, %v2604
      %v2647 = vadd.f32 %v2316, %v2542
      %v2648 = vadd.f32 %v2317, %v2607
      %v2649 = vadd.f32 %v2318, %v2545
      %v2650 = vadd.f32 %v2319, %v2610
      %v2651 = vadd.f32 %v2320, %v2548
      %v2652 = vadd.f32 %v2321, %v2613
      %v2653 = vadd.f32 %v2322, %v2551
      %v2654 = vadd.f32 %v2323, %v2616
      %v2655 = vadd.f32 %v2324, %v2554
      %v2656 = vadd.f32 %v2325, %v2619
      %v2657 = vadd.f32 %v2326, %v2557
      %v2658 = vadd.f32 %v2327, %v2622
      %v2659 = vadd.f32 %v2328, %v2560
      %v2660 = vadd.f32 %v2329, %v2625
      %v2661 = vadd.f32 %v2330, %v2563
      %v2662 = vadd.f32 %v2331, %v2628
      %v2663 = vadd.f32 %v2332, %v2566
      %v2664 = vadd.f32 %v2333, %v2631
      %2665 = vst [vmem:[#allocation4] sm:$0xff] %v2633
      %2666 = vst [vmem:[#allocation4 + $0x8] sm:$0xff] %v2634
      %2667 = vst [vmem:[#allocation4 + $0x10] sm:$0xff] %v2635
      %2668 = vst [vmem:[#allocation4 + $0x18] sm:$0xff] %v2636
      %2669 = vst [vmem:[#allocation4 + $0x20] sm:$0xff] %v2637
      %2670 = vst [vmem:[#allocation4 + $0x28] sm:$0xff] %v2638
      %2671 = vst [vmem:[#allocation4 + $0x30] sm:$0xff] %v2639
      %2672 = vst [vmem:[#allocation4 + $0x38] sm:$0xff] %v2640
      %2673 = vst [vmem:[#allocation4 + $0x40] sm:$0xff] %v2641
      %2674 = vst [vmem:[#allocation4 + $0x48] sm:$0xff] %v2642
      %2675 = vst [vmem:[#allocation4 + $0x50] sm:$0xff] %v2643
      %2676 = vst [vmem:[#allocation4 + $0x58] sm:$0xff] %v2644
      %2677 = vst [vmem:[#allocation4 + $0x60] sm:$0xff] %v2645
      %2678 = vst [vmem:[#allocation4 + $0x68] sm:$0xff] %v2646
      %2679 = vst [vmem:[#allocation4 + $0x70] sm:$0xff] %v2647
      %2680 = vst [vmem:[#allocation4 + $0x78] sm:$0xff] %v2648
      %2681 = vst [vmem:[#allocation4 + $0x80] sm:$0xff] %v2649
      %2682 = vst [vmem:[#allocation4 + $0x88] sm:$0xff] %v2650
      %2683 = vst [vmem:[#allocation4 + $0x90] sm:$0xff] %v2651
      %2684 = vst [vmem:[#allocation4 + $0x98] sm:$0xff] %v2652
      %2685 = vst [vmem:[#allocation4 + $0xa0] sm:$0xff] %v2653
      %2686 = vst [vmem:[#allocation4 + $0xa8] sm:$0xff] %v2654
      %2687 = vst [vmem:[#allocation4 + $0xb0] sm:$0xff] %v2655
      %2688 = vst [vmem:[#allocation4 + $0xb8] sm:$0xff] %v2656
      %2689 = vst [vmem:[#allocation4 + $0xc0] sm:$0xff] %v2657
      %2690 = vst [vmem:[#allocation4 + $0xc8] sm:$0xff] %v2658
      %2691 = vst [vmem:[#allocation4 + $0xd0] sm:$0xff] %v2659
      %2692 = vst [vmem:[#allocation4 + $0xd8] sm:$0xff] %v2660
      %2693 = vst [vmem:[#allocation4 + $0xe0] sm:$0xff] %v2661
      %2694 = vst [vmem:[#allocation4 + $0xe8] sm:$0xff] %v2662
      %2695 = vst [vmem:[#allocation4 + $0xf0] sm:$0xff] %v2663
      %2696 = vst [vmem:[#allocation4 + $0xf8] sm:$0xff] %v2664
      %v2697 = vld [vmem:[#allocation3] sm:$0xff]
      %v2698 = vld [vmem:[#allocation3 + $0x8] sm:$0xff]
      %v2699 = vld [vmem:[#allocation3 + $0x10] sm:$0xff]
      %v2700 = vld [vmem:[#allocation3 + $0x18] sm:$0xff]
      %v2701 = vld [vmem:[#allocation3 + $0x20] sm:$0xff]
      %v2702 = vld [vmem:[#allocation3 + $0x28] sm:$0xff]
      %v2703 = vld [vmem:[#allocation3 + $0x30] sm:$0xff]
      %v2704 = vld [vmem:[#allocation3 + $0x38] sm:$0xff]
      %v2705 = vld [vmem:[#allocation3 + $0x40] sm:$0xff]
      %v2706 = vld [vmem:[#allocation3 + $0x48] sm:$0xff]
      %v2707 = vld [vmem:[#allocation3 + $0x50] sm:$0xff]
      %v2708 = vld [vmem:[#allocation3 + $0x58] sm:$0xff]
      %v2709 = vld [vmem:[#allocation3 + $0x60] sm:$0xff]
      %v2710 = vld [vmem:[#allocation3 + $0x68] sm:$0xff]
      %v2711 = vld [vmem:[#allocation3 + $0x70] sm:$0xff]
      %v2712 = vld [vmem:[#allocation3 + $0x78] sm:$0xff]
      %v2713 = vld [vmem:[#allocation3 + $0x80] sm:$0xff]
      %v2714 = vld [vmem:[#allocation3 + $0x88] sm:$0xff]
      %v2715 = vld [vmem:[#allocation3 + $0x90] sm:$0xff]
      %v2716 = vld [vmem:[#allocation3 + $0x98] sm:$0xff]
      %v2717 = vld [vmem:[#allocation3 + $0xa0] sm:$0xff]
      %v2718 = vld [vmem:[#allocation3 + $0xa8] sm:$0xff]
      %v2719 = vld [vmem:[#allocation3 + $0xb0] sm:$0xff]
      %v2720 = vld [vmem:[#allocation3 + $0xb8] sm:$0xff]
      %2745 = vrot.lane.b32.xlu0 %v2697, 126
      %v2746 = vpop.permute.xlu0 %2745
      %2747 = vrot.lane.b32.xlu0 %v2698, 126
      %v2748 = vpop.permute.xlu0 %2747
      %2749 = vrot.lane.b32.xlu0 %v2699, 126
      %v2750 = vpop.permute.xlu0 %2749
      %2751 = vrot.lane.b32.xlu0 %v2700, 126
      %v2752 = vpop.permute.xlu0 %2751
      %2753 = vrot.lane.b32.xlu0 %v2701, 126
      %v2754 = vpop.permute.xlu0 %2753
      %2755 = vrot.lane.b32.xlu0 %v2702, 126
      %v2756 = vpop.permute.xlu0 %2755
      %2757 = vrot.lane.b32.xlu0 %v2703, 126
      %v2758 = vpop.permute.xlu0 %2757
      %2759 = vrot.lane.b32.xlu0 %v2704, 126
      %v2760 = vpop.permute.xlu0 %2759
      %2761 = vrot.lane.b32.xlu0 %v2705, 126
      %v2762 = vpop.permute.xlu0 %2761
      %2763 = vrot.lane.b32.xlu0 %v2706, 126
      %v2764 = vpop.permute.xlu0 %2763
      %2765 = vrot.lane.b32.xlu0 %v2707, 126
      %v2766 = vpop.permute.xlu0 %2765
      %2767 = vrot.lane.b32.xlu0 %v2708, 126
      %v2768 = vpop.permute.xlu0 %2767
      %2769 = vrot.lane.b32.xlu0 %v2709, 126
      %v2770 = vpop.permute.xlu0 %2769
      %2771 = vrot.lane.b32.xlu0 %v2710, 126
      %v2772 = vpop.permute.xlu0 %2771
      %2773 = vrot.lane.b32.xlu0 %v2711, 126
      %v2774 = vpop.permute.xlu0 %2773
      %2775 = vrot.lane.b32.xlu0 %v2712, 126
      %v2776 = vpop.permute.xlu0 %2775
      %2777 = vrot.lane.b32.xlu0 %v2713, 126
      %v2778 = vpop.permute.xlu0 %2777
      %2779 = vrot.lane.b32.xlu0 %v2714, 126
      %v2780 = vpop.permute.xlu0 %2779
      %2781 = vrot.lane.b32.xlu0 %v2715, 126
      %v2782 = vpop.permute.xlu0 %2781
      %2783 = vrot.lane.b32.xlu0 %v2716, 126
      %v2784 = vpop.permute.xlu0 %2783
      %2785 = vrot.lane.b32.xlu0 %v2717, 126
      %v2786 = vpop.permute.xlu0 %2785
      %2787 = vrot.lane.b32.xlu0 %v2718, 126
      %v2788 = vpop.permute.xlu0 %2787
      %2789 = vrot.lane.b32.xlu0 %v2719, 126
      %v2790 = vpop.permute.xlu0 %2789
      %2791 = vrot.lane.b32.xlu0 %v2720, 126
      %v2792 = vpop.permute.xlu0 %2791
      %v2793 = vsel %vm621, %v2746, %v2748
      %v2794 = vsel %vm621, %v2748, %v2750
      %v2795 = vsel %vm621, %v2752, %v2754
      %v2796 = vsel %vm621, %v2754, %v2756
      %v2797 = vsel %vm621, %v2758, %v2760
      %v2798 = vsel %vm621, %v2760, %v2762
      %v2799 = vsel %vm621, %v2764, %v2766
      %v2800 = vsel %vm621, %v2766, %v2768
      %v2801 = vsel %vm621, %v2770, %v2772
      %v2802 = vsel %vm621, %v2772, %v2774
      %v2803 = vsel %vm621, %v2776, %v2778
      %v2804 = vsel %vm621, %v2778, %v2780
      %v2805 = vsel %vm621, %v2782, %v2784
      %v2806 = vsel %vm621, %v2784, %v2786
      %v2807 = vsel %vm621, %v2788, %v2790
      %v2808 = vsel %vm621, %v2790, %v2792
      %v2825 = vsel %vm605, %v2793, 0.0
      %v2826 = vsel %vm606, %v2794, 0.0
      %v2827 = vsel %vm605, %v2795, 0.0
      %v2828 = vsel %vm606, %v2796, 0.0
      %v2829 = vsel %vm605, %v2797, 0.0
      %v2830 = vsel %vm606, %v2798, 0.0
      %v2831 = vsel %vm605, %v2799, 0.0
      %v2832 = vsel %vm606, %v2800, 0.0
      %v2833 = vsel %vm605, %v2801, 0.0
      %v2834 = vsel %vm606, %v2802, 0.0
      %v2835 = vsel %vm605, %v2803, 0.0
      %v2836 = vsel %vm606, %v2804, 0.0
      %v2837 = vsel %vm605, %v2805, 0.0
      %v2838 = vsel %vm606, %v2806, 0.0
      %v2839 = vsel %vm605, %v2807, 0.0
      %v2840 = vsel %vm606, %v2808, 0.0
      %v2841 = vld [vmem:[#allocation4] sm:$0xff]
      %v2842 = vld [vmem:[#allocation4 + $0x8] sm:$0xff]
      %v2843 = vld [vmem:[#allocation4 + $0x10] sm:$0xff]
      %v2844 = vld [vmem:[#allocation4 + $0x18] sm:$0xff]
      %v2845 = vld [vmem:[#allocation4 + $0x20] sm:$0xff]
      %v2846 = vld [vmem:[#allocation4 + $0x28] sm:$0xff]
      %v2847 = vld [vmem:[#allocation4 + $0x30] sm:$0xff]
      %v2848 = vld [vmem:[#allocation4 + $0x38] sm:$0xff]
      %v2849 = vld [vmem:[#allocation4 + $0x40] sm:$0xff]
      %v2850 = vld [vmem:[#allocation4 + $0x48] sm:$0xff]
      %v2851 = vld [vmem:[#allocation4 + $0x50] sm:$0xff]
      %v2852 = vld [vmem:[#allocation4 + $0x58] sm:$0xff]
      %v2853 = vld [vmem:[#allocation4 + $0x60] sm:$0xff]
      %v2854 = vld [vmem:[#allocation4 + $0x68] sm:$0xff]
      %v2855 = vld [vmem:[#allocation4 + $0x70] sm:$0xff]
      %v2856 = vld [vmem:[#allocation4 + $0x78] sm:$0xff]
      %v2857 = vld [vmem:[#allocation4 + $0x80] sm:$0xff]
      %v2858 = vld [vmem:[#allocation4 + $0x88] sm:$0xff]
      %v2859 = vld [vmem:[#allocation4 + $0x90] sm:$0xff]
      %v2860 = vld [vmem:[#allocation4 + $0x98] sm:$0xff]
      %v2861 = vld [vmem:[#allocation4 + $0xa0] sm:$0xff]
      %v2862 = vld [vmem:[#allocation4 + $0xa8] sm:$0xff]
      %v2863 = vld [vmem:[#allocation4 + $0xb0] sm:$0xff]
      %v2864 = vld [vmem:[#allocation4 + $0xb8] sm:$0xff]
      %v2865 = vld [vmem:[#allocation4 + $0xc0] sm:$0xff]
      %v2866 = vld [vmem:[#allocation4 + $0xc8] sm:$0xff]
      %v2867 = vld [vmem:[#allocation4 + $0xd0] sm:$0xff]
      %v2868 = vld [vmem:[#allocation4 + $0xd8] sm:$0xff]
      %v2869 = vld [vmem:[#allocation4 + $0xe0] sm:$0xff]
      %v2870 = vld [vmem:[#allocation4 + $0xe8] sm:$0xff]
      %v2871 = vld [vmem:[#allocation4 + $0xf0] sm:$0xff]
      %v2872 = vld [vmem:[#allocation4 + $0xf8] sm:$0xff]
      %s2873 = scalar_lea.vmem %s3, 256
      %v2874 = vld [vmem:[%s2873] sm:$0xff]
      %v2875 = vld [vmem:[%s2873 + $0x8] sm:$0xff]
      %v2876 = vld [vmem:[%s2873 + $0x10] sm:$0xff]
      %v2877 = vld [vmem:[%s2873 + $0x18] sm:$0xff]
      %v2878 = vld [vmem:[%s2873 + $0x20] sm:$0xff]
      %v2879 = vld [vmem:[%s2873 + $0x28] sm:$0xff]
      %v2880 = vld [vmem:[%s2873 + $0x30] sm:$0xff]
      %v2881 = vld [vmem:[%s2873 + $0x38] sm:$0xff]
      %v2882 = vld [vmem:[%s2873 + $0x40] sm:$0xff]
      %v2883 = vld [vmem:[%s2873 + $0x48] sm:$0xff]
      %v2884 = vld [vmem:[%s2873 + $0x50] sm:$0xff]
      %v2885 = vld [vmem:[%s2873 + $0x58] sm:$0xff]
      %v2886 = vld [vmem:[%s2873 + $0x60] sm:$0xff]
      %v2887 = vld [vmem:[%s2873 + $0x68] sm:$0xff]
      %v2888 = vld [vmem:[%s2873 + $0x70] sm:$0xff]
      %v2889 = vld [vmem:[%s2873 + $0x78] sm:$0xff]
      %v2891 = vsel %vm2035, %v2874, 0
      %v2894 = vsel %vm2035, %v2875, 0
      %v2897 = vsel %vm2035, %v2876, 0
      %v2900 = vsel %vm2035, %v2877, 0
      %v2903 = vsel %vm2035, %v2878, 0
      %v2906 = vsel %vm2035, %v2879, 0
      %v2909 = vsel %vm2035, %v2880, 0
      %v2912 = vsel %vm2035, %v2881, 0
      %v2915 = vsel %vm2035, %v2882, 0
      %v2918 = vsel %vm2035, %v2883, 0
      %v2921 = vsel %vm2035, %v2884, 0
      %v2924 = vsel %vm2035, %v2885, 0
      %v2927 = vsel %vm2035, %v2886, 0
      %v2930 = vsel %vm2035, %v2887, 0
      %v2933 = vsel %vm2035, %v2888, 0
      %v2936 = vsel %vm2035, %v2889, 0
      %2938 = vmatpush.msra.mxu0 0.0
      %2939 = vmatpush.msra.mxu0 0.0
      %2940 = vmatpush.msra.mxu0 0.0
      %2941 = vmatpush.msra.mxu0 0.0
      %2942 = vmatpush.msra.mxu0 0.0
      %2943 = vmatpush.msra.mxu0 0.0
      %2944 = vmatpush.msra.mxu0 0.0
      %2945 = vmatpush.msra.mxu0 0.0
      %2946 = vmatpush.msra.mxu0 %v2839
      %2947 = vmatpush.msra.mxu0 %v2837
      %2948 = vmatpush.msra.mxu0 %v2835
      %2949 = vmatpush.msra.mxu0 %v2833
      %2950 = vmatpush.msra.mxu0 %v2831
      %2951 = vmatpush.msra.mxu0 %v2829
      %2952 = vmatpush.msra.mxu0 %v2827
      %2953 = vmatpush.msra.mxu0 %v2825
      %2954 = vmatmul.f32.gmra.mxu0 %v2891
      %v2955 = vpop.f32.mrf.mxu0
      %v2956 = vadd.f32 0.0, %v2955
      %2957 = vmatmul.f32.gmra.mxu0 %v2894
      %v2958 = vpop.f32.mrf.mxu0
      %v2959 = vadd.f32 0.0, %v2958
      %2960 = vmatmul.f32.gmra.mxu0 %v2897
      %v2961 = vpop.f32.mrf.mxu0
      %v2962 = vadd.f32 0.0, %v2961
      %2963 = vmatmul.f32.gmra.mxu0 %v2900
      %v2964 = vpop.f32.mrf.mxu0
      %v2965 = vadd.f32 0.0, %v2964
      %2966 = vmatmul.f32.gmra.mxu0 %v2903
      %v2967 = vpop.f32.mrf.mxu0
      %v2968 = vadd.f32 0.0, %v2967
      %2969 = vmatmul.f32.gmra.mxu0 %v2906
      %v2970 = vpop.f32.mrf.mxu0
      %v2971 = vadd.f32 0.0, %v2970
      %2972 = vmatmul.f32.gmra.mxu0 %v2909
      %v2973 = vpop.f32.mrf.mxu0
      %v2974 = vadd.f32 0.0, %v2973
      %2975 = vmatmul.f32.gmra.mxu0 %v2912
      %v2976 = vpop.f32.mrf.mxu0
      %v2977 = vadd.f32 0.0, %v2976
      %2978 = vmatmul.f32.gmra.mxu0 %v2915
      %v2979 = vpop.f32.mrf.mxu0
      %v2980 = vadd.f32 0.0, %v2979
      %2981 = vmatmul.f32.gmra.mxu0 %v2918
      %v2982 = vpop.f32.mrf.mxu0
      %v2983 = vadd.f32 0.0, %v2982
      %2984 = vmatmul.f32.gmra.mxu0 %v2921
      %v2985 = vpop.f32.mrf.mxu0
      %v2986 = vadd.f32 0.0, %v2985
      %2987 = vmatmul.f32.gmra.mxu0 %v2924
      %v2988 = vpop.f32.mrf.mxu0
      %v2989 = vadd.f32 0.0, %v2988
      %2990 = vmatmul.f32.gmra.mxu0 %v2927
      %v2991 = vpop.f32.mrf.mxu0
      %v2992 = vadd.f32 0.0, %v2991
      %2993 = vmatmul.f32.gmra.mxu0 %v2930
      %v2994 = vpop.f32.mrf.mxu0
      %v2995 = vadd.f32 0.0, %v2994
      %2996 = vmatmul.f32.gmra.mxu0 %v2933
      %v2997 = vpop.f32.mrf.mxu0
      %v2998 = vadd.f32 0.0, %v2997
      %2999 = vmatmul.f32.gmra.mxu0 %v2936
      %v3000 = vpop.f32.mrf.mxu0
      %v3001 = vadd.f32 0.0, %v3000
      %3002 = vdwg.mxu0
      %3003 = vmatpush.msra.mxu0 0.0
      %3004 = vmatpush.msra.mxu0 0.0
      %3005 = vmatpush.msra.mxu0 0.0
      %3006 = vmatpush.msra.mxu0 0.0
      %3007 = vmatpush.msra.mxu0 0.0
      %3008 = vmatpush.msra.mxu0 0.0
      %3009 = vmatpush.msra.mxu0 0.0
      %3010 = vmatpush.msra.mxu0 0.0
      %3011 = vmatpush.msra.mxu0 %v2840
      %3012 = vmatpush.msra.mxu0 %v2838
      %3013 = vmatpush.msra.mxu0 %v2836
      %3014 = vmatpush.msra.mxu0 %v2834
      %3015 = vmatpush.msra.mxu0 %v2832
      %3016 = vmatpush.msra.mxu0 %v2830
      %3017 = vmatpush.msra.mxu0 %v2828
      %3018 = vmatpush.msra.mxu0 %v2826
      %3019 = vmatmul.f32.gmra.mxu0 %v2891
      %v3020 = vpop.f32.mrf.mxu0
      %v3021 = vadd.f32 0.0, %v3020
      %3022 = vmatmul.f32.gmra.mxu0 %v2894
      %v3023 = vpop.f32.mrf.mxu0
      %v3024 = vadd.f32 0.0, %v3023
      %3025 = vmatmul.f32.gmra.mxu0 %v2897
      %v3026 = vpop.f32.mrf.mxu0
      %v3027 = vadd.f32 0.0, %v3026
      %3028 = vmatmul.f32.gmra.mxu0 %v2900
      %v3029 = vpop.f32.mrf.mxu0
      %v3030 = vadd.f32 0.0, %v3029
      %3031 = vmatmul.f32.gmra.mxu0 %v2903
      %v3032 = vpop.f32.mrf.mxu0
      %v3033 = vadd.f32 0.0, %v3032
      %3034 = vmatmul.f32.gmra.mxu0 %v2906
      %v3035 = vpop.f32.mrf.mxu0
      %v3036 = vadd.f32 0.0, %v3035
      %3037 = vmatmul.f32.gmra.mxu0 %v2909
      %v3038 = vpop.f32.mrf.mxu0
      %v3039 = vadd.f32 0.0, %v3038
      %3040 = vmatmul.f32.gmra.mxu0 %v2912
      %v3041 = vpop.f32.mrf.mxu0
      %v3042 = vadd.f32 0.0, %v3041
      %3043 = vmatmul.f32.gmra.mxu0 %v2915
      %v3044 = vpop.f32.mrf.mxu0
      %v3045 = vadd.f32 0.0, %v3044
      %3046 = vmatmul.f32.gmra.mxu0 %v2918
      %v3047 = vpop.f32.mrf.mxu0
      %v3048 = vadd.f32 0.0, %v3047
      %3049 = vmatmul.f32.gmra.mxu0 %v2921
      %v3050 = vpop.f32.mrf.mxu0
      %v3051 = vadd.f32 0.0, %v3050
      %3052 = vmatmul.f32.gmra.mxu0 %v2924
      %v3053 = vpop.f32.mrf.mxu0
      %v3054 = vadd.f32 0.0, %v3053
      %3055 = vmatmul.f32.gmra.mxu0 %v2927
      %v3056 = vpop.f32.mrf.mxu0
      %v3057 = vadd.f32 0.0, %v3056
      %3058 = vmatmul.f32.gmra.mxu0 %v2930
      %v3059 = vpop.f32.mrf.mxu0
      %v3060 = vadd.f32 0.0, %v3059
      %3061 = vmatmul.f32.gmra.mxu0 %v2933
      %v3062 = vpop.f32.mrf.mxu0
      %v3063 = vadd.f32 0.0, %v3062
      %3064 = vmatmul.f32.gmra.mxu0 %v2936
      %v3065 = vpop.f32.mrf.mxu0
      %v3066 = vadd.f32 0.0, %v3065
      %3067 = vdwg.mxu0
      %v3068 = vadd.f32 %v2841, %v2956
      %v3069 = vadd.f32 %v2842, %v3021
      %v3070 = vadd.f32 %v2843, %v2959
      %v3071 = vadd.f32 %v2844, %v3024
      %v3072 = vadd.f32 %v2845, %v2962
      %v3073 = vadd.f32 %v2846, %v3027
      %v3074 = vadd.f32 %v2847, %v2965
      %v3075 = vadd.f32 %v2848, %v3030
      %v3076 = vadd.f32 %v2849, %v2968
      %v3077 = vadd.f32 %v2850, %v3033
      %v3078 = vadd.f32 %v2851, %v2971
      %v3079 = vadd.f32 %v2852, %v3036
      %v3080 = vadd.f32 %v2853, %v2974
      %v3081 = vadd.f32 %v2854, %v3039
      %v3082 = vadd.f32 %v2855, %v2977
      %v3083 = vadd.f32 %v2856, %v3042
      %v3084 = vadd.f32 %v2857, %v2980
      %v3085 = vadd.f32 %v2858, %v3045
      %v3086 = vadd.f32 %v2859, %v2983
      %v3087 = vadd.f32 %v2860, %v3048
      %v3088 = vadd.f32 %v2861, %v2986
      %v3089 = vadd.f32 %v2862, %v3051
      %v3090 = vadd.f32 %v2863, %v2989
      %v3091 = vadd.f32 %v2864, %v3054
      %v3092 = vadd.f32 %v2865, %v2992
      %v3093 = vadd.f32 %v2866, %v3057
      %v3094 = vadd.f32 %v2867, %v2995
      %v3095 = vadd.f32 %v2868, %v3060
      %v3096 = vadd.f32 %v2869, %v2998
      %v3097 = vadd.f32 %v2870, %v3063
      %v3098 = vadd.f32 %v2871, %v3001
      %v3099 = vadd.f32 %v2872, %v3066
      %3100 = vst [vmem:[#allocation4] sm:$0xff] %v3068
      %3101 = vst [vmem:[#allocation4 + $0x8] sm:$0xff] %v3069
      %3102 = vst [vmem:[#allocation4 + $0x10] sm:$0xff] %v3070
      %3103 = vst [vmem:[#allocation4 + $0x18] sm:$0xff] %v3071
      %3104 = vst [vmem:[#allocation4 + $0x20] sm:$0xff] %v3072
      %3105 = vst [vmem:[#allocation4 + $0x28] sm:$0xff] %v3073
      %3106 = vst [vmem:[#allocation4 + $0x30] sm:$0xff] %v3074
      %3107 = vst [vmem:[#allocation4 + $0x38] sm:$0xff] %v3075
      %3108 = vst [vmem:[#allocation4 + $0x40] sm:$0xff] %v3076
      %3109 = vst [vmem:[#allocation4 + $0x48] sm:$0xff] %v3077
      %3110 = vst [vmem:[#allocation4 + $0x50] sm:$0xff] %v3078
      %3111 = vst [vmem:[#allocation4 + $0x58] sm:$0xff] %v3079
      %3112 = vst [vmem:[#allocation4 + $0x60] sm:$0xff] %v3080
      %3113 = vst [vmem:[#allocation4 + $0x68] sm:$0xff] %v3081
      %3114 = vst [vmem:[#allocation4 + $0x70] sm:$0xff] %v3082
      %3115 = vst [vmem:[#allocation4 + $0x78] sm:$0xff] %v3083
      %3116 = vst [vmem:[#allocation4 + $0x80] sm:$0xff] %v3084
      %3117 = vst [vmem:[#allocation4 + $0x88] sm:$0xff] %v3085
      %3118 = vst [vmem:[#allocation4 + $0x90] sm:$0xff] %v3086
      %3119 = vst [vmem:[#allocation4 + $0x98] sm:$0xff] %v3087
      %3120 = vst [vmem:[#allocation4 + $0xa0] sm:$0xff] %v3088
      %3121 = vst [vmem:[#allocation4 + $0xa8] sm:$0xff] %v3089
      %3122 = vst [vmem:[#allocation4 + $0xb0] sm:$0xff] %v3090
      %3123 = vst [vmem:[#allocation4 + $0xb8] sm:$0xff] %v3091
      %3124 = vst [vmem:[#allocation4 + $0xc0] sm:$0xff] %v3092
      %3125 = vst [vmem:[#allocation4 + $0xc8] sm:$0xff] %v3093
      %3126 = vst [vmem:[#allocation4 + $0xd0] sm:$0xff] %v3094
      %3127 = vst [vmem:[#allocation4 + $0xd8] sm:$0xff] %v3095
      %3128 = vst [vmem:[#allocation4 + $0xe0] sm:$0xff] %v3096
      %3129 = vst [vmem:[#allocation4 + $0xe8] sm:$0xff] %v3097
      %3130 = vst [vmem:[#allocation4 + $0xf0] sm:$0xff] %v3098
      %3131 = vst [vmem:[#allocation4 + $0xf8] sm:$0xff] %v3099
      %v3132 = vld [vmem:[#allocation3] sm:$0xff]
      %v3133 = vld [vmem:[#allocation3 + $0x8] sm:$0xff]
      %v3134 = vld [vmem:[#allocation3 + $0x10] sm:$0xff]
      %v3135 = vld [vmem:[#allocation3 + $0x18] sm:$0xff]
      %v3136 = vld [vmem:[#allocation3 + $0x20] sm:$0xff]
      %v3137 = vld [vmem:[#allocation3 + $0x28] sm:$0xff]
      %v3138 = vld [vmem:[#allocation3 + $0x30] sm:$0xff]
      %v3139 = vld [vmem:[#allocation3 + $0x38] sm:$0xff]
      %v3140 = vld [vmem:[#allocation3 + $0x40] sm:$0xff]
      %v3141 = vld [vmem:[#allocation3 + $0x48] sm:$0xff]
      %v3142 = vld [vmem:[#allocation3 + $0x50] sm:$0xff]
      %v3143 = vld [vmem:[#allocation3 + $0x58] sm:$0xff]
      %v3144 = vld [vmem:[#allocation3 + $0x60] sm:$0xff]
      %v3145 = vld [vmem:[#allocation3 + $0x68] sm:$0xff]
      %v3146 = vld [vmem:[#allocation3 + $0x70] sm:$0xff]
      %v3147 = vld [vmem:[#allocation3 + $0x78] sm:$0xff]
      %v3148 = vld [vmem:[#allocation3 + $0x80] sm:$0xff]
      %v3149 = vld [vmem:[#allocation3 + $0x88] sm:$0xff]
      %v3150 = vld [vmem:[#allocation3 + $0x90] sm:$0xff]
      %v3151 = vld [vmem:[#allocation3 + $0x98] sm:$0xff]
      %v3152 = vld [vmem:[#allocation3 + $0xa0] sm:$0xff]
      %v3153 = vld [vmem:[#allocation3 + $0xa8] sm:$0xff]
      %v3154 = vld [vmem:[#allocation3 + $0xb0] sm:$0xff]
      %v3155 = vld [vmem:[#allocation3 + $0xb8] sm:$0xff]
      %3180 = vrot.lane.b32.xlu0 %v3132, 112
      %v3181 = vpop.permute.xlu0 %3180
      %3182 = vrot.lane.b32.xlu0 %v3133, 112
      %v3183 = vpop.permute.xlu0 %3182
      %3184 = vrot.lane.b32.xlu0 %v3134, 112
      %v3185 = vpop.permute.xlu0 %3184
      %3186 = vrot.lane.b32.xlu0 %v3135, 112
      %v3187 = vpop.permute.xlu0 %3186
      %3188 = vrot.lane.b32.xlu0 %v3136, 112
      %v3189 = vpop.permute.xlu0 %3188
      %3190 = vrot.lane.b32.xlu0 %v3137, 112
      %v3191 = vpop.permute.xlu0 %3190
      %3192 = vrot.lane.b32.xlu0 %v3138, 112
      %v3193 = vpop.permute.xlu0 %3192
      %3194 = vrot.lane.b32.xlu0 %v3139, 112
      %v3195 = vpop.permute.xlu0 %3194
      %3196 = vrot.lane.b32.xlu0 %v3140, 112
      %v3197 = vpop.permute.xlu0 %3196
      %3198 = vrot.lane.b32.xlu0 %v3141, 112
      %v3199 = vpop.permute.xlu0 %3198
      %3200 = vrot.lane.b32.xlu0 %v3142, 112
      %v3201 = vpop.permute.xlu0 %3200
      %3202 = vrot.lane.b32.xlu0 %v3143, 112
      %v3203 = vpop.permute.xlu0 %3202
      %3204 = vrot.lane.b32.xlu0 %v3144, 112
      %v3205 = vpop.permute.xlu0 %3204
      %3206 = vrot.lane.b32.xlu0 %v3145, 112
      %v3207 = vpop.permute.xlu0 %3206
      %3208 = vrot.lane.b32.xlu0 %v3146, 112
      %v3209 = vpop.permute.xlu0 %3208
      %3210 = vrot.lane.b32.xlu0 %v3147, 112
      %v3211 = vpop.permute.xlu0 %3210
      %3212 = vrot.lane.b32.xlu0 %v3148, 112
      %v3213 = vpop.permute.xlu0 %3212
      %3214 = vrot.lane.b32.xlu0 %v3149, 112
      %v3215 = vpop.permute.xlu0 %3214
      %3216 = vrot.lane.b32.xlu0 %v3150, 112
      %v3217 = vpop.permute.xlu0 %3216
      %3218 = vrot.lane.b32.xlu0 %v3151, 112
      %v3219 = vpop.permute.xlu0 %3218
      %3220 = vrot.lane.b32.xlu0 %v3152, 112
      %v3221 = vpop.permute.xlu0 %3220
      %3222 = vrot.lane.b32.xlu0 %v3153, 112
      %v3223 = vpop.permute.xlu0 %3222
      %3224 = vrot.lane.b32.xlu0 %v3154, 112
      %v3225 = vpop.permute.xlu0 %3224
      %3226 = vrot.lane.b32.xlu0 %v3155, 112
      %v3227 = vpop.permute.xlu0 %3226
      %v3228 = vsel %vm781, %v3181, %v3183
      %v3229 = vsel %vm781, %v3183, %v3185
      %v3230 = vsel %vm781, %v3187, %v3189
      %v3231 = vsel %vm781, %v3189, %v3191
      %v3232 = vsel %vm781, %v3193, %v3195
      %v3233 = vsel %vm781, %v3195, %v3197
      %v3234 = vsel %vm781, %v3199, %v3201
      %v3235 = vsel %vm781, %v3201, %v3203
      %v3236 = vsel %vm781, %v3205, %v3207
      %v3237 = vsel %vm781, %v3207, %v3209
      %v3238 = vsel %vm781, %v3211, %v3213
      %v3239 = vsel %vm781, %v3213, %v3215
      %v3240 = vsel %vm781, %v3217, %v3219
      %v3241 = vsel %vm781, %v3219, %v3221
      %v3242 = vsel %vm781, %v3223, %v3225
      %v3243 = vsel %vm781, %v3225, %v3227
      %v3260 = vsel %vm331, %v3228, 0.0
      %v3261 = vsel %vm332, %v3229, 0.0
      %v3262 = vsel %vm331, %v3230, 0.0
      %v3263 = vsel %vm332, %v3231, 0.0
      %v3264 = vsel %vm331, %v3232, 0.0
      %v3265 = vsel %vm332, %v3233, 0.0
      %v3266 = vsel %vm331, %v3234, 0.0
      %v3267 = vsel %vm332, %v3235, 0.0
      %v3268 = vsel %vm331, %v3236, 0.0
      %v3269 = vsel %vm332, %v3237, 0.0
      %v3270 = vsel %vm331, %v3238, 0.0
      %v3271 = vsel %vm332, %v3239, 0.0
      %v3272 = vsel %vm331, %v3240, 0.0
      %v3273 = vsel %vm332, %v3241, 0.0
      %v3274 = vsel %vm331, %v3242, 0.0
      %v3275 = vsel %vm332, %v3243, 0.0
      %v3276 = vld [vmem:[#allocation4] sm:$0xff]
      %v3277 = vld [vmem:[#allocation4 + $0x8] sm:$0xff]
      %v3278 = vld [vmem:[#allocation4 + $0x10] sm:$0xff]
      %v3279 = vld [vmem:[#allocation4 + $0x18] sm:$0xff]
      %v3280 = vld [vmem:[#allocation4 + $0x20] sm:$0xff]
      %v3281 = vld [vmem:[#allocation4 + $0x28] sm:$0xff]
      %v3282 = vld [vmem:[#allocation4 + $0x30] sm:$0xff]
      %v3283 = vld [vmem:[#allocation4 + $0x38] sm:$0xff]
      %v3284 = vld [vmem:[#allocation4 + $0x40] sm:$0xff]
      %v3285 = vld [vmem:[#allocation4 + $0x48] sm:$0xff]
      %v3286 = vld [vmem:[#allocation4 + $0x50] sm:$0xff]
      %v3287 = vld [vmem:[#allocation4 + $0x58] sm:$0xff]
      %v3288 = vld [vmem:[#allocation4 + $0x60] sm:$0xff]
      %v3289 = vld [vmem:[#allocation4 + $0x68] sm:$0xff]
      %v3290 = vld [vmem:[#allocation4 + $0x70] sm:$0xff]
      %v3291 = vld [vmem:[#allocation4 + $0x78] sm:$0xff]
      %v3292 = vld [vmem:[#allocation4 + $0x80] sm:$0xff]
      %v3293 = vld [vmem:[#allocation4 + $0x88] sm:$0xff]
      %v3294 = vld [vmem:[#allocation4 + $0x90] sm:$0xff]
      %v3295 = vld [vmem:[#allocation4 + $0x98] sm:$0xff]
      %v3296 = vld [vmem:[#allocation4 + $0xa0] sm:$0xff]
      %v3297 = vld [vmem:[#allocation4 + $0xa8] sm:$0xff]
      %v3298 = vld [vmem:[#allocation4 + $0xb0] sm:$0xff]
      %v3299 = vld [vmem:[#allocation4 + $0xb8] sm:$0xff]
      %v3300 = vld [vmem:[#allocation4 + $0xc0] sm:$0xff]
      %v3301 = vld [vmem:[#allocation4 + $0xc8] sm:$0xff]
      %v3302 = vld [vmem:[#allocation4 + $0xd0] sm:$0xff]
      %v3303 = vld [vmem:[#allocation4 + $0xd8] sm:$0xff]
      %v3304 = vld [vmem:[#allocation4 + $0xe0] sm:$0xff]
      %v3305 = vld [vmem:[#allocation4 + $0xe8] sm:$0xff]
      %v3306 = vld [vmem:[#allocation4 + $0xf0] sm:$0xff]
      %v3307 = vld [vmem:[#allocation4 + $0xf8] sm:$0xff]
      %s3308 = scalar_lea.vmem %s3, 384
      %v3309 = vld [vmem:[%s3308] sm:$0xff]
      %v3310 = vld [vmem:[%s3308 + $0x8] sm:$0xff]
      %v3311 = vld [vmem:[%s3308 + $0x10] sm:$0xff]
      %v3312 = vld [vmem:[%s3308 + $0x18] sm:$0xff]
      %v3313 = vld [vmem:[%s3308 + $0x20] sm:$0xff]
      %v3314 = vld [vmem:[%s3308 + $0x28] sm:$0xff]
      %v3315 = vld [vmem:[%s3308 + $0x30] sm:$0xff]
      %v3316 = vld [vmem:[%s3308 + $0x38] sm:$0xff]
      %v3317 = vld [vmem:[%s3308 + $0x40] sm:$0xff]
      %v3318 = vld [vmem:[%s3308 + $0x48] sm:$0xff]
      %v3319 = vld [vmem:[%s3308 + $0x50] sm:$0xff]
      %v3320 = vld [vmem:[%s3308 + $0x58] sm:$0xff]
      %v3321 = vld [vmem:[%s3308 + $0x60] sm:$0xff]
      %v3322 = vld [vmem:[%s3308 + $0x68] sm:$0xff]
      %v3323 = vld [vmem:[%s3308 + $0x70] sm:$0xff]
      %v3324 = vld [vmem:[%s3308 + $0x78] sm:$0xff]
      %v3326 = vsel %vm2035, %v3309, 0
      %v3329 = vsel %vm2035, %v3310, 0
      %v3332 = vsel %vm2035, %v3311, 0
      %v3335 = vsel %vm2035, %v3312, 0
      %v3338 = vsel %vm2035, %v3313, 0
      %v3341 = vsel %vm2035, %v3314, 0
      %v3344 = vsel %vm2035, %v3315, 0
      %v3347 = vsel %vm2035, %v3316, 0
      %v3350 = vsel %vm2035, %v3317, 0
      %v3353 = vsel %vm2035, %v3318, 0
      %v3356 = vsel %vm2035, %v3319, 0
      %v3359 = vsel %vm2035, %v3320, 0
      %v3362 = vsel %vm2035, %v3321, 0
      %v3365 = vsel %vm2035, %v3322, 0
      %v3368 = vsel %vm2035, %v3323, 0
      %v3371 = vsel %vm2035, %v3324, 0
      %3373 = vmatpush.msra.mxu0 0.0
      %3374 = vmatpush.msra.mxu0 0.0
      %3375 = vmatpush.msra.mxu0 0.0
      %3376 = vmatpush.msra.mxu0 0.0
      %3377 = vmatpush.msra.mxu0 0.0
      %3378 = vmatpush.msra.mxu0 0.0
      %3379 = vmatpush.msra.mxu0 0.0
      %3380 = vmatpush.msra.mxu0 0.0
      %3381 = vmatpush.msra.mxu0 %v3274
      %3382 = vmatpush.msra.mxu0 %v3272
      %3383 = vmatpush.msra.mxu0 %v3270
      %3384 = vmatpush.msra.mxu0 %v3268
      %3385 = vmatpush.msra.mxu0 %v3266
      %3386 = vmatpush.msra.mxu0 %v3264
      %3387 = vmatpush.msra.mxu0 %v3262
      %3388 = vmatpush.msra.mxu0 %v3260
      %3389 = vmatmul.f32.gmra.mxu0 %v3326
      %v3390 = vpop.f32.mrf.mxu0
      %v3391 = vadd.f32 0.0, %v3390
      %3392 = vmatmul.f32.gmra.mxu0 %v3329
      %v3393 = vpop.f32.mrf.mxu0
      %v3394 = vadd.f32 0.0, %v3393
      %3395 = vmatmul.f32.gmra.mxu0 %v3332
      %v3396 = vpop.f32.mrf.mxu0
      %v3397 = vadd.f32 0.0, %v3396
      %3398 = vmatmul.f32.gmra.mxu0 %v3335
      %v3399 = vpop.f32.mrf.mxu0
      %v3400 = vadd.f32 0.0, %v3399
      %3401 = vmatmul.f32.gmra.mxu0 %v3338
      %v3402 = vpop.f32.mrf.mxu0
      %v3403 = vadd.f32 0.0, %v3402
      %3404 = vmatmul.f32.gmra.mxu0 %v3341
      %v3405 = vpop.f32.mrf.mxu0
      %v3406 = vadd.f32 0.0, %v3405
      %3407 = vmatmul.f32.gmra.mxu0 %v3344
      %v3408 = vpop.f32.mrf.mxu0
      %v3409 = vadd.f32 0.0, %v3408
      %3410 = vmatmul.f32.gmra.mxu0 %v3347
      %v3411 = vpop.f32.mrf.mxu0
      %v3412 = vadd.f32 0.0, %v3411
      %3413 = vmatmul.f32.gmra.mxu0 %v3350
      %v3414 = vpop.f32.mrf.mxu0
      %v3415 = vadd.f32 0.0, %v3414
      %3416 = vmatmul.f32.gmra.mxu0 %v3353
      %v3417 = vpop.f32.mrf.mxu0
      %v3418 = vadd.f32 0.0, %v3417
      %3419 = vmatmul.f32.gmra.mxu0 %v3356
      %v3420 = vpop.f32.mrf.mxu0
      %v3421 = vadd.f32 0.0, %v3420
      %3422 = vmatmul.f32.gmra.mxu0 %v3359
      %v3423 = vpop.f32.mrf.mxu0
      %v3424 = vadd.f32 0.0, %v3423
      %3425 = vmatmul.f32.gmra.mxu0 %v3362
      %v3426 = vpop.f32.mrf.mxu0
      %v3427 = vadd.f32 0.0, %v3426
      %3428 = vmatmul.f32.gmra.mxu0 %v3365
      %v3429 = vpop.f32.mrf.mxu0
      %v3430 = vadd.f32 0.0, %v3429
      %3431 = vmatmul.f32.gmra.mxu0 %v3368
      %v3432 = vpop.f32.mrf.mxu0
      %v3433 = vadd.f32 0.0, %v3432
      %3434 = vmatmul.f32.gmra.mxu0 %v3371
      %v3435 = vpop.f32.mrf.mxu0
      %v3436 = vadd.f32 0.0, %v3435
      %3437 = vdwg.mxu0
      %3438 = vmatpush.msra.mxu0 0.0
      %3439 = vmatpush.msra.mxu0 0.0
      %3440 = vmatpush.msra.mxu0 0.0
      %3441 = vmatpush.msra.mxu0 0.0
      %3442 = vmatpush.msra.mxu0 0.0
      %3443 = vmatpush.msra.mxu0 0.0
      %3444 = vmatpush.msra.mxu0 0.0
      %3445 = vmatpush.msra.mxu0 0.0
      %3446 = vmatpush.msra.mxu0 %v3275
      %3447 = vmatpush.msra.mxu0 %v3273
      %3448 = vmatpush.msra.mxu0 %v3271
      %3449 = vmatpush.msra.mxu0 %v3269
      %3450 = vmatpush.msra.mxu0 %v3267
      %3451 = vmatpush.msra.mxu0 %v3265
      %3452 = vmatpush.msra.mxu0 %v3263
      %3453 = vmatpush.msra.mxu0 %v3261
      %3454 = vmatmul.f32.gmra.mxu0 %v3326
      %v3455 = vpop.f32.mrf.mxu0
      %v3456 = vadd.f32 0.0, %v3455
      %3457 = vmatmul.f32.gmra.mxu0 %v3329
      %v3458 = vpop.f32.mrf.mxu0
      %v3459 = vadd.f32 0.0, %v3458
      %3460 = vmatmul.f32.gmra.mxu0 %v3332
      %v3461 = vpop.f32.mrf.mxu0
      %v3462 = vadd.f32 0.0, %v3461
      %3463 = vmatmul.f32.gmra.mxu0 %v3335
      %v3464 = vpop.f32.mrf.mxu0
      %v3465 = vadd.f32 0.0, %v3464
      %3466 = vmatmul.f32.gmra.mxu0 %v3338
      %v3467 = vpop.f32.mrf.mxu0
      %v3468 = vadd.f32 0.0, %v3467
      %3469 = vmatmul.f32.gmra.mxu0 %v3341
      %v3470 = vpop.f32.mrf.mxu0
      %v3471 = vadd.f32 0.0, %v3470
      %3472 = vmatmul.f32.gmra.mxu0 %v3344
      %v3473 = vpop.f32.mrf.mxu0
      %v3474 = vadd.f32 0.0, %v3473
      %3475 = vmatmul.f32.gmra.mxu0 %v3347
      %v3476 = vpop.f32.mrf.mxu0
      %v3477 = vadd.f32 0.0, %v3476
      %3478 = vmatmul.f32.gmra.mxu0 %v3350
      %v3479 = vpop.f32.mrf.mxu0
      %v3480 = vadd.f32 0.0, %v3479
      %3481 = vmatmul.f32.gmra.mxu0 %v3353
      %v3482 = vpop.f32.mrf.mxu0
      %v3483 = vadd.f32 0.0, %v3482
      %3484 = vmatmul.f32.gmra.mxu0 %v3356
      %v3485 = vpop.f32.mrf.mxu0
      %v3486 = vadd.f32 0.0, %v3485
      %3487 = vmatmul.f32.gmra.mxu0 %v3359
      %v3488 = vpop.f32.mrf.mxu0
      %v3489 = vadd.f32 0.0, %v3488
      %3490 = vmatmul.f32.gmra.mxu0 %v3362
      %v3491 = vpop.f32.mrf.mxu0
      %v3492 = vadd.f32 0.0, %v3491
      %3493 = vmatmul.f32.gmra.mxu0 %v3365
      %v3494 = vpop.f32.mrf.mxu0
      %v3495 = vadd.f32 0.0, %v3494
      %3496 = vmatmul.f32.gmra.mxu0 %v3368
      %v3497 = vpop.f32.mrf.mxu0
      %v3498 = vadd.f32 0.0, %v3497
      %3499 = vmatmul.f32.gmra.mxu0 %v3371
      %v3500 = vpop.f32.mrf.mxu0
      %v3501 = vadd.f32 0.0, %v3500
      %3502 = vdwg.mxu0
      %v3503 = vadd.f32 %v3276, %v3391
      %v3504 = vadd.f32 %v3277, %v3456
      %v3505 = vadd.f32 %v3278, %v3394
      %v3506 = vadd.f32 %v3279, %v3459
      %v3507 = vadd.f32 %v3280, %v3397
      %v3508 = vadd.f32 %v3281, %v3462
      %v3509 = vadd.f32 %v3282, %v3400
      %v3510 = vadd.f32 %v3283, %v3465
      %v3511 = vadd.f32 %v3284, %v3403
      %v3512 = vadd.f32 %v3285, %v3468
      %v3513 = vadd.f32 %v3286, %v3406
      %v3514 = vadd.f32 %v3287, %v3471
      %v3515 = vadd.f32 %v3288, %v3409
      %v3516 = vadd.f32 %v3289, %v3474
      %v3517 = vadd.f32 %v3290, %v3412
      %v3518 = vadd.f32 %v3291, %v3477
      %v3519 = vadd.f32 %v3292, %v3415
      %v3520 = vadd.f32 %v3293, %v3480
      %v3521 = vadd.f32 %v3294, %v3418
      %v3522 = vadd.f32 %v3295, %v3483
      %v3523 = vadd.f32 %v3296, %v3421
      %v3524 = vadd.f32 %v3297, %v3486
      %v3525 = vadd.f32 %v3298, %v3424
      %v3526 = vadd.f32 %v3299, %v3489
      %v3527 = vadd.f32 %v3300, %v3427
      %v3528 = vadd.f32 %v3301, %v3492
      %v3529 = vadd.f32 %v3302, %v3430
      %v3530 = vadd.f32 %v3303, %v3495
      %v3531 = vadd.f32 %v3304, %v3433
      %v3532 = vadd.f32 %v3305, %v3498
      %v3533 = vadd.f32 %v3306, %v3436
      %v3534 = vadd.f32 %v3307, %v3501
      %3535 = vst [vmem:[#allocation4] sm:$0xff] %v3503
      %3536 = vst [vmem:[#allocation4 + $0x8] sm:$0xff] %v3504
      %3537 = vst [vmem:[#allocation4 + $0x10] sm:$0xff] %v3505
      %3538 = vst [vmem:[#allocation4 + $0x18] sm:$0xff] %v3506
      %3539 = vst [vmem:[#allocation4 + $0x20] sm:$0xff] %v3507
      %3540 = vst [vmem:[#allocation4 + $0x28] sm:$0xff] %v3508
      %3541 = vst [vmem:[#allocation4 + $0x30] sm:$0xff] %v3509
      %3542 = vst [vmem:[#allocation4 + $0x38] sm:$0xff] %v3510
      %3543 = vst [vmem:[#allocation4 + $0x40] sm:$0xff] %v3511
      %3544 = vst [vmem:[#allocation4 + $0x48] sm:$0xff] %v3512
      %3545 = vst [vmem:[#allocation4 + $0x50] sm:$0xff] %v3513
      %3546 = vst [vmem:[#allocation4 + $0x58] sm:$0xff] %v3514
      %3547 = vst [vmem:[#allocation4 + $0x60] sm:$0xff] %v3515
      %3548 = vst [vmem:[#allocation4 + $0x68] sm:$0xff] %v3516
      %3549 = vst [vmem:[#allocation4 + $0x70] sm:$0xff] %v3517
      %3550 = vst [vmem:[#allocation4 + $0x78] sm:$0xff] %v3518
      %3551 = vst [vmem:[#allocation4 + $0x80] sm:$0xff] %v3519
      %3552 = vst [vmem:[#allocation4 + $0x88] sm:$0xff] %v3520
      %3553 = vst [vmem:[#allocation4 + $0x90] sm:$0xff] %v3521
      %3554 = vst [vmem:[#allocation4 + $0x98] sm:$0xff] %v3522
      %3555 = vst [vmem:[#allocation4 + $0xa0] sm:$0xff] %v3523
      %3556 = vst [vmem:[#allocation4 + $0xa8] sm:$0xff] %v3524
      %3557 = vst [vmem:[#allocation4 + $0xb0] sm:$0xff] %v3525
      %3558 = vst [vmem:[#allocation4 + $0xb8] sm:$0xff] %v3526
      %3559 = vst [vmem:[#allocation4 + $0xc0] sm:$0xff] %v3527
      %3560 = vst [vmem:[#allocation4 + $0xc8] sm:$0xff] %v3528
      %3561 = vst [vmem:[#allocation4 + $0xd0] sm:$0xff] %v3529
      %3562 = vst [vmem:[#allocation4 + $0xd8] sm:$0xff] %v3530
      %3563 = vst [vmem:[#allocation4 + $0xe0] sm:$0xff] %v3531
      %3564 = vst [vmem:[#allocation4 + $0xe8] sm:$0xff] %v3532
      %3565 = vst [vmem:[#allocation4 + $0xf0] sm:$0xff] %v3533
      %3566 = vst [vmem:[#allocation4 + $0xf8] sm:$0xff] %v3534
      %v3567 = vld [vmem:[#allocation3] sm:$0xff]
      %v3568 = vld [vmem:[#allocation3 + $0x8] sm:$0xff]
      %v3569 = vld [vmem:[#allocation3 + $0x10] sm:$0xff]
      %v3570 = vld [vmem:[#allocation3 + $0x18] sm:$0xff]
      %v3571 = vld [vmem:[#allocation3 + $0x20] sm:$0xff]
      %v3572 = vld [vmem:[#allocation3 + $0x28] sm:$0xff]
      %v3573 = vld [vmem:[#allocation3 + $0x30] sm:$0xff]
      %v3574 = vld [vmem:[#allocation3 + $0x38] sm:$0xff]
      %v3575 = vld [vmem:[#allocation3 + $0x40] sm:$0xff]
      %v3576 = vld [vmem:[#allocation3 + $0x48] sm:$0xff]
      %v3577 = vld [vmem:[#allocation3 + $0x50] sm:$0xff]
      %v3578 = vld [vmem:[#allocation3 + $0x58] sm:$0xff]
      %v3579 = vld [vmem:[#allocation3 + $0x60] sm:$0xff]
      %v3580 = vld [vmem:[#allocation3 + $0x68] sm:$0xff]
      %v3581 = vld [vmem:[#allocation3 + $0x70] sm:$0xff]
      %v3582 = vld [vmem:[#allocation3 + $0x78] sm:$0xff]
      %v3583 = vld [vmem:[#allocation3 + $0x80] sm:$0xff]
      %v3584 = vld [vmem:[#allocation3 + $0x88] sm:$0xff]
      %v3585 = vld [vmem:[#allocation3 + $0x90] sm:$0xff]
      %v3586 = vld [vmem:[#allocation3 + $0x98] sm:$0xff]
      %v3587 = vld [vmem:[#allocation3 + $0xa0] sm:$0xff]
      %v3588 = vld [vmem:[#allocation3 + $0xa8] sm:$0xff]
      %v3589 = vld [vmem:[#allocation3 + $0xb0] sm:$0xff]
      %v3590 = vld [vmem:[#allocation3 + $0xb8] sm:$0xff]
      %v3591 = vld [vmem:[#allocation4] sm:$0xff]
      %v3592 = vld [vmem:[#allocation4 + $0x8] sm:$0xff]
      %v3593 = vld [vmem:[#allocation4 + $0x10] sm:$0xff]
      %v3594 = vld [vmem:[#allocation4 + $0x18] sm:$0xff]
      %v3595 = vld [vmem:[#allocation4 + $0x20] sm:$0xff]
      %v3596 = vld [vmem:[#allocation4 + $0x28] sm:$0xff]
      %v3597 = vld [vmem:[#allocation4 + $0x30] sm:$0xff]
      %v3598 = vld [vmem:[#allocation4 + $0x38] sm:$0xff]
      %v3599 = vld [vmem:[#allocation4 + $0x40] sm:$0xff]
      %v3600 = vld [vmem:[#allocation4 + $0x48] sm:$0xff]
      %v3601 = vld [vmem:[#allocation4 + $0x50] sm:$0xff]
      %v3602 = vld [vmem:[#allocation4 + $0x58] sm:$0xff]
      %v3603 = vld [vmem:[#allocation4 + $0x60] sm:$0xff]
      %v3604 = vld [vmem:[#allocation4 + $0x68] sm:$0xff]
      %v3605 = vld [vmem:[#allocation4 + $0x70] sm:$0xff]
      %v3606 = vld [vmem:[#allocation4 + $0x78] sm:$0xff]
      %v3607 = vld [vmem:[#allocation4 + $0x80] sm:$0xff]
      %v3608 = vld [vmem:[#allocation4 + $0x88] sm:$0xff]
      %v3609 = vld [vmem:[#allocation4 + $0x90] sm:$0xff]
      %v3610 = vld [vmem:[#allocation4 + $0x98] sm:$0xff]
      %v3611 = vld [vmem:[#allocation4 + $0xa0] sm:$0xff]
      %v3612 = vld [vmem:[#allocation4 + $0xa8] sm:$0xff]
      %v3613 = vld [vmem:[#allocation4 + $0xb0] sm:$0xff]
      %v3614 = vld [vmem:[#allocation4 + $0xb8] sm:$0xff]
      %v3615 = vld [vmem:[#allocation4 + $0xc0] sm:$0xff]
      %v3616 = vld [vmem:[#allocation4 + $0xc8] sm:$0xff]
      %v3617 = vld [vmem:[#allocation4 + $0xd0] sm:$0xff]
      %v3618 = vld [vmem:[#allocation4 + $0xd8] sm:$0xff]
      %v3619 = vld [vmem:[#allocation4 + $0xe0] sm:$0xff]
      %v3620 = vld [vmem:[#allocation4 + $0xe8] sm:$0xff]
      %v3621 = vld [vmem:[#allocation4 + $0xf0] sm:$0xff]
      %v3622 = vld [vmem:[#allocation4 + $0xf8] sm:$0xff]
      %s3623 = scalar_lea.vmem %s3, 512
      %v3624 = vld [vmem:[%s3623] sm:$0xff]
      %v3625 = vld [vmem:[%s3623 + $0x8] sm:$0xff]
      %v3626 = vld [vmem:[%s3623 + $0x10] sm:$0xff]
      %v3627 = vld [vmem:[%s3623 + $0x18] sm:$0xff]
      %v3628 = vld [vmem:[%s3623 + $0x20] sm:$0xff]
      %v3629 = vld [vmem:[%s3623 + $0x28] sm:$0xff]
      %v3630 = vld [vmem:[%s3623 + $0x30] sm:$0xff]
      %v3631 = vld [vmem:[%s3623 + $0x38] sm:$0xff]
      %v3632 = vld [vmem:[%s3623 + $0x40] sm:$0xff]
      %v3633 = vld [vmem:[%s3623 + $0x48] sm:$0xff]
      %v3634 = vld [vmem:[%s3623 + $0x50] sm:$0xff]
      %v3635 = vld [vmem:[%s3623 + $0x58] sm:$0xff]
      %v3636 = vld [vmem:[%s3623 + $0x60] sm:$0xff]
      %v3637 = vld [vmem:[%s3623 + $0x68] sm:$0xff]
      %v3638 = vld [vmem:[%s3623 + $0x70] sm:$0xff]
      %v3639 = vld [vmem:[%s3623 + $0x78] sm:$0xff]
      %3664 = vrot.lane.b32.xlu0 %v3567, 111
      %v3665 = vpop.permute.xlu0 %3664
      %3666 = vrot.lane.b32.xlu0 %v3568, 111
      %v3667 = vpop.permute.xlu0 %3666
      %3668 = vrot.lane.b32.xlu0 %v3569, 111
      %v3669 = vpop.permute.xlu0 %3668
      %3670 = vrot.lane.b32.xlu0 %v3570, 111
      %v3671 = vpop.permute.xlu0 %3670
      %3672 = vrot.lane.b32.xlu0 %v3571, 111
      %v3673 = vpop.permute.xlu0 %3672
      %3674 = vrot.lane.b32.xlu0 %v3572, 111
      %v3675 = vpop.permute.xlu0 %3674
      %3676 = vrot.lane.b32.xlu0 %v3573, 111
      %v3677 = vpop.permute.xlu0 %3676
      %3678 = vrot.lane.b32.xlu0 %v3574, 111
      %v3679 = vpop.permute.xlu0 %3678
      %3680 = vrot.lane.b32.xlu0 %v3575, 111
      %v3681 = vpop.permute.xlu0 %3680
      %3682 = vrot.lane.b32.xlu0 %v3576, 111
      %v3683 = vpop.permute.xlu0 %3682
      %3684 = vrot.lane.b32.xlu0 %v3577, 111
      %v3685 = vpop.permute.xlu0 %3684
      %3686 = vrot.lane.b32.xlu0 %v3578, 111
      %v3687 = vpop.permute.xlu0 %3686
      %3688 = vrot.lane.b32.xlu0 %v3579, 111
      %v3689 = vpop.permute.xlu0 %3688
      %3690 = vrot.lane.b32.xlu0 %v3580, 111
      %v3691 = vpop.permute.xlu0 %3690
      %3692 = vrot.lane.b32.xlu0 %v3581, 111
      %v3693 = vpop.permute.xlu0 %3692
      %3694 = vrot.lane.b32.xlu0 %v3582, 111
      %v3695 = vpop.permute.xlu0 %3694
      %3696 = vrot.lane.b32.xlu0 %v3583, 111
      %v3697 = vpop.permute.xlu0 %3696
      %3698 = vrot.lane.b32.xlu0 %v3584, 111
      %v3699 = vpop.permute.xlu0 %3698
      %3700 = vrot.lane.b32.xlu0 %v3585, 111
      %v3701 = vpop.permute.xlu0 %3700
      %3702 = vrot.lane.b32.xlu0 %v3586, 111
      %v3703 = vpop.permute.xlu0 %3702
      %3704 = vrot.lane.b32.xlu0 %v3587, 111
      %v3705 = vpop.permute.xlu0 %3704
      %3706 = vrot.lane.b32.xlu0 %v3588, 111
      %v3707 = vpop.permute.xlu0 %3706
      %3708 = vrot.lane.b32.xlu0 %v3589, 111
      %v3709 = vpop.permute.xlu0 %3708
      %3710 = vrot.lane.b32.xlu0 %v3590, 111
      %v3711 = vpop.permute.xlu0 %3710
      %v3712 = vsel %vm950, %v3665, %v3667
      %v3713 = vsel %vm950, %v3667, %v3669
      %v3714 = vsel %vm950, %v3671, %v3673
      %v3715 = vsel %vm950, %v3673, %v3675
      %v3716 = vsel %vm950, %v3677, %v3679
      %v3717 = vsel %vm950, %v3679, %v3681
      %v3718 = vsel %vm950, %v3683, %v3685
      %v3719 = vsel %vm950, %v3685, %v3687
      %v3720 = vsel %vm950, %v3689, %v3691
      %v3721 = vsel %vm950, %v3691, %v3693
      %v3722 = vsel %vm950, %v3695, %v3697
      %v3723 = vsel %vm950, %v3697, %v3699
      %v3724 = vsel %vm950, %v3701, %v3703
      %v3725 = vsel %vm950, %v3703, %v3705
      %v3726 = vsel %vm950, %v3707, %v3709
      %v3727 = vsel %vm950, %v3709, %v3711
      %v3745 = vsel %vm2035, %v3624, 0
      %v3748 = vsel %vm2035, %v3625, 0
      %v3751 = vsel %vm2035, %v3626, 0
      %v3754 = vsel %vm2035, %v3627, 0
      %v3757 = vsel %vm2035, %v3628, 0
      %v3760 = vsel %vm2035, %v3629, 0
      %v3763 = vsel %vm2035, %v3630, 0
      %v3766 = vsel %vm2035, %v3631, 0
      %v3769 = vsel %vm2035, %v3632, 0
      %v3772 = vsel %vm2035, %v3633, 0
      %v3775 = vsel %vm2035, %v3634, 0
      %v3778 = vsel %vm2035, %v3635, 0
      %v3781 = vsel %vm2035, %v3636, 0
      %v3784 = vsel %vm2035, %v3637, 0
      %v3787 = vsel %vm2035, %v3638, 0
      %v3790 = vsel %vm2035, %v3639, 0
      %3792 = vmatpush.msra.mxu0 0.0
      %3793 = vmatpush.msra.mxu0 0.0
      %3794 = vmatpush.msra.mxu0 0.0
      %3795 = vmatpush.msra.mxu0 0.0
      %3796 = vmatpush.msra.mxu0 0.0
      %3797 = vmatpush.msra.mxu0 0.0
      %3798 = vmatpush.msra.mxu0 0.0
      %3799 = vmatpush.msra.mxu0 0.0
      %3800 = vmatpush.msra.mxu0 %v3726
      %3801 = vmatpush.msra.mxu0 %v3724
      %3802 = vmatpush.msra.mxu0 %v3722
      %3803 = vmatpush.msra.mxu0 %v3720
      %3804 = vmatpush.msra.mxu0 %v3718
      %3805 = vmatpush.msra.mxu0 %v3716
      %3806 = vmatpush.msra.mxu0 %v3714
      %3807 = vmatpush.msra.mxu0 %v3712
      %3808 = vmatmul.f32.gmra.mxu0 %v3745
      %v3809 = vpop.f32.mrf.mxu0
      %v3810 = vadd.f32 0.0, %v3809
      %3811 = vmatmul.f32.gmra.mxu0 %v3748
      %v3812 = vpop.f32.mrf.mxu0
      %v3813 = vadd.f32 0.0, %v3812
      %3814 = vmatmul.f32.gmra.mxu0 %v3751
      %v3815 = vpop.f32.mrf.mxu0
      %v3816 = vadd.f32 0.0, %v3815
      %3817 = vmatmul.f32.gmra.mxu0 %v3754
      %v3818 = vpop.f32.mrf.mxu0
      %v3819 = vadd.f32 0.0, %v3818
      %3820 = vmatmul.f32.gmra.mxu0 %v3757
      %v3821 = vpop.f32.mrf.mxu0
      %v3822 = vadd.f32 0.0, %v3821
      %3823 = vmatmul.f32.gmra.mxu0 %v3760
      %v3824 = vpop.f32.mrf.mxu0
      %v3825 = vadd.f32 0.0, %v3824
      %3826 = vmatmul.f32.gmra.mxu0 %v3763
      %v3827 = vpop.f32.mrf.mxu0
      %v3828 = vadd.f32 0.0, %v3827
      %3829 = vmatmul.f32.gmra.mxu0 %v3766
      %v3830 = vpop.f32.mrf.mxu0
      %v3831 = vadd.f32 0.0, %v3830
      %3832 = vmatmul.f32.gmra.mxu0 %v3769
      %v3833 = vpop.f32.mrf.mxu0
      %v3834 = vadd.f32 0.0, %v3833
      %3835 = vmatmul.f32.gmra.mxu0 %v3772
      %v3836 = vpop.f32.mrf.mxu0
      %v3837 = vadd.f32 0.0, %v3836
      %3838 = vmatmul.f32.gmra.mxu0 %v3775
      %v3839 = vpop.f32.mrf.mxu0
      %v3840 = vadd.f32 0.0, %v3839
      %3841 = vmatmul.f32.gmra.mxu0 %v3778
      %v3842 = vpop.f32.mrf.mxu0
      %v3843 = vadd.f32 0.0, %v3842
      %3844 = vmatmul.f32.gmra.mxu0 %v3781
      %v3845 = vpop.f32.mrf.mxu0
      %v3846 = vadd.f32 0.0, %v3845
      %3847 = vmatmul.f32.gmra.mxu0 %v3784
      %v3848 = vpop.f32.mrf.mxu0
      %v3849 = vadd.f32 0.0, %v3848
      %3850 = vmatmul.f32.gmra.mxu0 %v3787
      %v3851 = vpop.f32.mrf.mxu0
      %v3852 = vadd.f32 0.0, %v3851
      %3853 = vmatmul.f32.gmra.mxu0 %v3790
      %v3854 = vpop.f32.mrf.mxu0
      %v3855 = vadd.f32 0.0, %v3854
      %3856 = vdwg.mxu0
      %3857 = vmatpush.msra.mxu0 0.0
      %3858 = vmatpush.msra.mxu0 0.0
      %3859 = vmatpush.msra.mxu0 0.0
      %3860 = vmatpush.msra.mxu0 0.0
      %3861 = vmatpush.msra.mxu0 0.0
      %3862 = vmatpush.msra.mxu0 0.0
      %3863 = vmatpush.msra.mxu0 0.0
      %3864 = vmatpush.msra.mxu0 0.0
      %3865 = vmatpush.msra.mxu0 %v3727
      %3866 = vmatpush.msra.mxu0 %v3725
      %3867 = vmatpush.msra.mxu0 %v3723
      %3868 = vmatpush.msra.mxu0 %v3721
      %3869 = vmatpush.msra.mxu0 %v3719
      %3870 = vmatpush.msra.mxu0 %v3717
      %3871 = vmatpush.msra.mxu0 %v3715
      %3872 = vmatpush.msra.mxu0 %v3713
      %3873 = vmatmul.f32.gmra.mxu0 %v3745
      %v3874 = vpop.f32.mrf.mxu0
      %v3875 = vadd.f32 0.0, %v3874
      %3876 = vmatmul.f32.gmra.mxu0 %v3748
      %v3877 = vpop.f32.mrf.mxu0
      %v3878 = vadd.f32 0.0, %v3877
      %3879 = vmatmul.f32.gmra.mxu0 %v3751
      %v3880 = vpop.f32.mrf.mxu0
      %v3881 = vadd.f32 0.0, %v3880
      %3882 = vmatmul.f32.gmra.mxu0 %v3754
      %v3883 = vpop.f32.mrf.mxu0
      %v3884 = vadd.f32 0.0, %v3883
      %3885 = vmatmul.f32.gmra.mxu0 %v3757
      %v3886 = vpop.f32.mrf.mxu0
      %v3887 = vadd.f32 0.0, %v3886
      %3888 = vmatmul.f32.gmra.mxu0 %v3760
      %v3889 = vpop.f32.mrf.mxu0
      %v3890 = vadd.f32 0.0, %v3889
      %3891 = vmatmul.f32.gmra.mxu0 %v3763
      %v3892 = vpop.f32.mrf.mxu0
      %v3893 = vadd.f32 0.0, %v3892
      %3894 = vmatmul.f32.gmra.mxu0 %v3766
      %v3895 = vpop.f32.mrf.mxu0
      %v3896 = vadd.f32 0.0, %v3895
      %3897 = vmatmul.f32.gmra.mxu0 %v3769
      %v3898 = vpop.f32.mrf.mxu0
      %v3899 = vadd.f32 0.0, %v3898
      %3900 = vmatmul.f32.gmra.mxu0 %v3772
      %v3901 = vpop.f32.mrf.mxu0
      %v3902 = vadd.f32 0.0, %v3901
      %3903 = vmatmul.f32.gmra.mxu0 %v3775
      %v3904 = vpop.f32.mrf.mxu0
      %v3905 = vadd.f32 0.0, %v3904
      %3906 = vmatmul.f32.gmra.mxu0 %v3778
      %v3907 = vpop.f32.mrf.mxu0
      %v3908 = vadd.f32 0.0, %v3907
      %3909 = vmatmul.f32.gmra.mxu0 %v3781
      %v3910 = vpop.f32.mrf.mxu0
      %v3911 = vadd.f32 0.0, %v3910
      %3912 = vmatmul.f32.gmra.mxu0 %v3784
      %v3913 = vpop.f32.mrf.mxu0
      %v3914 = vadd.f32 0.0, %v3913
      %3915 = vmatmul.f32.gmra.mxu0 %v3787
      %v3916 = vpop.f32.mrf.mxu0
      %v3917 = vadd.f32 0.0, %v3916
      %3918 = vmatmul.f32.gmra.mxu0 %v3790
      %v3919 = vpop.f32.mrf.mxu0
      %v3920 = vadd.f32 0.0, %v3919
      %3921 = vdwg.mxu0
      %v3922 = vadd.f32 %v3591, %v3810
      %v3923 = vadd.f32 %v3592, %v3875
      %v3924 = vadd.f32 %v3593, %v3813
      %v3925 = vadd.f32 %v3594, %v3878
      %v3926 = vadd.f32 %v3595, %v3816
      %v3927 = vadd.f32 %v3596, %v3881
      %v3928 = vadd.f32 %v3597, %v3819
      %v3929 = vadd.f32 %v3598, %v3884
      %v3930 = vadd.f32 %v3599, %v3822
      %v3931 = vadd.f32 %v3600, %v3887
      %v3932 = vadd.f32 %v3601, %v3825
      %v3933 = vadd.f32 %v3602, %v3890
      %v3934 = vadd.f32 %v3603, %v3828
      %v3935 = vadd.f32 %v3604, %v3893
      %v3936 = vadd.f32 %v3605, %v3831
      %v3937 = vadd.f32 %v3606, %v3896
      %v3938 = vadd.f32 %v3607, %v3834
      %v3939 = vadd.f32 %v3608, %v3899
      %v3940 = vadd.f32 %v3609, %v3837
      %v3941 = vadd.f32 %v3610, %v3902
      %v3942 = vadd.f32 %v3611, %v3840
      %v3943 = vadd.f32 %v3612, %v3905
      %v3944 = vadd.f32 %v3613, %v3843
      %v3945 = vadd.f32 %v3614, %v3908
      %v3946 = vadd.f32 %v3615, %v3846
      %v3947 = vadd.f32 %v3616, %v3911
      %v3948 = vadd.f32 %v3617, %v3849
      %v3949 = vadd.f32 %v3618, %v3914
      %v3950 = vadd.f32 %v3619, %v3852
      %v3951 = vadd.f32 %v3620, %v3917
      %v3952 = vadd.f32 %v3621, %v3855
      %v3953 = vadd.f32 %v3622, %v3920
      %3954 = vst [vmem:[#allocation4] sm:$0xff] %v3922
      %3955 = vst [vmem:[#allocation4 + $0x8] sm:$0xff] %v3923
      %3956 = vst [vmem:[#allocation4 + $0x10] sm:$0xff] %v3924
      %3957 = vst [vmem:[#allocation4 + $0x18] sm:$0xff] %v3925
      %3958 = vst [vmem:[#allocation4 + $0x20] sm:$0xff] %v3926
      %3959 = vst [vmem:[#allocation4 + $0x28] sm:$0xff] %v3927
      %3960 = vst [vmem:[#allocation4 + $0x30] sm:$0xff] %v3928
      %3961 = vst [vmem:[#allocation4 + $0x38] sm:$0xff] %v3929
      %3962 = vst [vmem:[#allocation4 + $0x40] sm:$0xff] %v3930
      %3963 = vst [vmem:[#allocation4 + $0x48] sm:$0xff] %v3931
      %3964 = vst [vmem:[#allocation4 + $0x50] sm:$0xff] %v3932
      %3965 = vst [vmem:[#allocation4 + $0x58] sm:$0xff] %v3933
      %3966 = vst [vmem:[#allocation4 + $0x60] sm:$0xff] %v3934
      %3967 = vst [vmem:[#allocation4 + $0x68] sm:$0xff] %v3935
      %3968 = vst [vmem:[#allocation4 + $0x70] sm:$0xff] %v3936
      %3969 = vst [vmem:[#allocation4 + $0x78] sm:$0xff] %v3937
      %3970 = vst [vmem:[#allocation4 + $0x80] sm:$0xff] %v3938
      %3971 = vst [vmem:[#allocation4 + $0x88] sm:$0xff] %v3939
      %3972 = vst [vmem:[#allocation4 + $0x90] sm:$0xff] %v3940
      %3973 = vst [vmem:[#allocation4 + $0x98] sm:$0xff] %v3941
      %3974 = vst [vmem:[#allocation4 + $0xa0] sm:$0xff] %v3942
      %3975 = vst [vmem:[#allocation4 + $0xa8] sm:$0xff] %v3943
      %3976 = vst [vmem:[#allocation4 + $0xb0] sm:$0xff] %v3944
      %3977 = vst [vmem:[#allocation4 + $0xb8] sm:$0xff] %v3945
      %3978 = vst [vmem:[#allocation4 + $0xc0] sm:$0xff] %v3946
      %3979 = vst [vmem:[#allocation4 + $0xc8] sm:$0xff] %v3947
      %3980 = vst [vmem:[#allocation4 + $0xd0] sm:$0xff] %v3948
      %3981 = vst [vmem:[#allocation4 + $0xd8] sm:$0xff] %v3949
      %3982 = vst [vmem:[#allocation4 + $0xe0] sm:$0xff] %v3950
      %3983 = vst [vmem:[#allocation4 + $0xe8] sm:$0xff] %v3951
      %3984 = vst [vmem:[#allocation4 + $0xf0] sm:$0xff] %v3952
      %3985 = vst [vmem:[#allocation4 + $0xf8] sm:$0xff] %v3953
      %v3986 = vld [vmem:[#allocation3] sm:$0xff]
      %v3987 = vld [vmem:[#allocation3 + $0x8] sm:$0xff]
      %v3988 = vld [vmem:[#allocation3 + $0x10] sm:$0xff]
      %v3989 = vld [vmem:[#allocation3 + $0x18] sm:$0xff]
      %v3990 = vld [vmem:[#allocation3 + $0x20] sm:$0xff]
      %v3991 = vld [vmem:[#allocation3 + $0x28] sm:$0xff]
      %v3992 = vld [vmem:[#allocation3 + $0x30] sm:$0xff]
      %v3993 = vld [vmem:[#allocation3 + $0x38] sm:$0xff]
      %v3994 = vld [vmem:[#allocation3 + $0x40] sm:$0xff]
      %v3995 = vld [vmem:[#allocation3 + $0x48] sm:$0xff]
      %v3996 = vld [vmem:[#allocation3 + $0x50] sm:$0xff]
      %v3997 = vld [vmem:[#allocation3 + $0x58] sm:$0xff]
      %v3998 = vld [vmem:[#allocation3 + $0x60] sm:$0xff]
      %v3999 = vld [vmem:[#allocation3 + $0x68] sm:$0xff]
      %v4000 = vld [vmem:[#allocation3 + $0x70] sm:$0xff]
      %v4001 = vld [vmem:[#allocation3 + $0x78] sm:$0xff]
      %v4002 = vld [vmem:[#allocation3 + $0x80] sm:$0xff]
      %v4003 = vld [vmem:[#allocation3 + $0x88] sm:$0xff]
      %v4004 = vld [vmem:[#allocation3 + $0x90] sm:$0xff]
      %v4005 = vld [vmem:[#allocation3 + $0x98] sm:$0xff]
      %v4006 = vld [vmem:[#allocation3 + $0xa0] sm:$0xff]
      %v4007 = vld [vmem:[#allocation3 + $0xa8] sm:$0xff]
      %v4008 = vld [vmem:[#allocation3 + $0xb0] sm:$0xff]
      %v4009 = vld [vmem:[#allocation3 + $0xb8] sm:$0xff]
      %4034 = vrot.lane.b32.xlu0 %v3986, 110
      %v4035 = vpop.permute.xlu0 %4034
      %4036 = vrot.lane.b32.xlu0 %v3987, 110
      %v4037 = vpop.permute.xlu0 %4036
      %4038 = vrot.lane.b32.xlu0 %v3988, 110
      %v4039 = vpop.permute.xlu0 %4038
      %4040 = vrot.lane.b32.xlu0 %v3989, 110
      %v4041 = vpop.permute.xlu0 %4040
      %4042 = vrot.lane.b32.xlu0 %v3990, 110
      %v4043 = vpop.permute.xlu0 %4042
      %4044 = vrot.lane.b32.xlu0 %v3991, 110
      %v4045 = vpop.permute.xlu0 %4044
      %4046 = vrot.lane.b32.xlu0 %v3992, 110
      %v4047 = vpop.permute.xlu0 %4046
      %4048 = vrot.lane.b32.xlu0 %v3993, 110
      %v4049 = vpop.permute.xlu0 %4048
      %4050 = vrot.lane.b32.xlu0 %v3994, 110
      %v4051 = vpop.permute.xlu0 %4050
      %4052 = vrot.lane.b32.xlu0 %v3995, 110
      %v4053 = vpop.permute.xlu0 %4052
      %4054 = vrot.lane.b32.xlu0 %v3996, 110
      %v4055 = vpop.permute.xlu0 %4054
      %4056 = vrot.lane.b32.xlu0 %v3997, 110
      %v4057 = vpop.permute.xlu0 %4056
      %4058 = vrot.lane.b32.xlu0 %v3998, 110
      %v4059 = vpop.permute.xlu0 %4058
      %4060 = vrot.lane.b32.xlu0 %v3999, 110
      %v4061 = vpop.permute.xlu0 %4060
      %4062 = vrot.lane.b32.xlu0 %v4000, 110
      %v4063 = vpop.permute.xlu0 %4062
      %4064 = vrot.lane.b32.xlu0 %v4001, 110
      %v4065 = vpop.permute.xlu0 %4064
      %4066 = vrot.lane.b32.xlu0 %v4002, 110
      %v4067 = vpop.permute.xlu0 %4066
      %4068 = vrot.lane.b32.xlu0 %v4003, 110
      %v4069 = vpop.permute.xlu0 %4068
      %4070 = vrot.lane.b32.xlu0 %v4004, 110
      %v4071 = vpop.permute.xlu0 %4070
      %4072 = vrot.lane.b32.xlu0 %v4005, 110
      %v4073 = vpop.permute.xlu0 %4072
      %4074 = vrot.lane.b32.xlu0 %v4006, 110
      %v4075 = vpop.permute.xlu0 %4074
      %4076 = vrot.lane.b32.xlu0 %v4007, 110
      %v4077 = vpop.permute.xlu0 %4076
      %4078 = vrot.lane.b32.xlu0 %v4008, 110
      %v4079 = vpop.permute.xlu0 %4078
      %4080 = vrot.lane.b32.xlu0 %v4009, 110
      %v4081 = vpop.permute.xlu0 %4080
      %v4082 = vsel %vm1095, %v4035, %v4037
      %v4083 = vsel %vm1095, %v4037, %v4039
      %v4084 = vsel %vm1095, %v4041, %v4043
      %v4085 = vsel %vm1095, %v4043, %v4045
      %v4086 = vsel %vm1095, %v4047, %v4049
      %v4087 = vsel %vm1095, %v4049, %v4051
      %v4088 = vsel %vm1095, %v4053, %v4055
      %v4089 = vsel %vm1095, %v4055, %v4057
      %v4090 = vsel %vm1095, %v4059, %v4061
      %v4091 = vsel %vm1095, %v4061, %v4063
      %v4092 = vsel %vm1095, %v4065, %v4067
      %v4093 = vsel %vm1095, %v4067, %v4069
      %v4094 = vsel %vm1095, %v4071, %v4073
      %v4095 = vsel %vm1095, %v4073, %v4075
      %v4096 = vsel %vm1095, %v4077, %v4079
      %v4097 = vsel %vm1095, %v4079, %v4081
      %v4114 = vsel %vm605, %v4082, 0.0
      %v4115 = vsel %vm606, %v4083, 0.0
      %v4116 = vsel %vm605, %v4084, 0.0
      %v4117 = vsel %vm606, %v4085, 0.0
      %v4118 = vsel %vm605, %v4086, 0.0
      %v4119 = vsel %vm606, %v4087, 0.0
      %v4120 = vsel %vm605, %v4088, 0.0
      %v4121 = vsel %vm606, %v4089, 0.0
      %v4122 = vsel %vm605, %v4090, 0.0
      %v4123 = vsel %vm606, %v4091, 0.0
      %v4124 = vsel %vm605, %v4092, 0.0
      %v4125 = vsel %vm606, %v4093, 0.0
      %v4126 = vsel %vm605, %v4094, 0.0
      %v4127 = vsel %vm606, %v4095, 0.0
      %v4128 = vsel %vm605, %v4096, 0.0
      %v4129 = vsel %vm606, %v4097, 0.0
      %v4130 = vld [vmem:[#allocation4] sm:$0xff]
      %v4131 = vld [vmem:[#allocation4 + $0x8] sm:$0xff]
      %v4132 = vld [vmem:[#allocation4 + $0x10] sm:$0xff]
      %v4133 = vld [vmem:[#allocation4 + $0x18] sm:$0xff]
      %v4134 = vld [vmem:[#allocation4 + $0x20] sm:$0xff]
      %v4135 = vld [vmem:[#allocation4 + $0x28] sm:$0xff]
      %v4136 = vld [vmem:[#allocation4 + $0x30] sm:$0xff]
      %v4137 = vld [vmem:[#allocation4 + $0x38] sm:$0xff]
      %v4138 = vld [vmem:[#allocation4 + $0x40] sm:$0xff]
      %v4139 = vld [vmem:[#allocation4 + $0x48] sm:$0xff]
      %v4140 = vld [vmem:[#allocation4 + $0x50] sm:$0xff]
      %v4141 = vld [vmem:[#allocation4 + $0x58] sm:$0xff]
      %v4142 = vld [vmem:[#allocation4 + $0x60] sm:$0xff]
      %v4143 = vld [vmem:[#allocation4 + $0x68] sm:$0xff]
      %v4144 = vld [vmem:[#allocation4 + $0x70] sm:$0xff]
      %v4145 = vld [vmem:[#allocation4 + $0x78] sm:$0xff]
      %v4146 = vld [vmem:[#allocation4 + $0x80] sm:$0xff]
      %v4147 = vld [vmem:[#allocation4 + $0x88] sm:$0xff]
      %v4148 = vld [vmem:[#allocation4 + $0x90] sm:$0xff]
      %v4149 = vld [vmem:[#allocation4 + $0x98] sm:$0xff]
      %v4150 = vld [vmem:[#allocation4 + $0xa0] sm:$0xff]
      %v4151 = vld [vmem:[#allocation4 + $0xa8] sm:$0xff]
      %v4152 = vld [vmem:[#allocation4 + $0xb0] sm:$0xff]
      %v4153 = vld [vmem:[#allocation4 + $0xb8] sm:$0xff]
      %v4154 = vld [vmem:[#allocation4 + $0xc0] sm:$0xff]
      %v4155 = vld [vmem:[#allocation4 + $0xc8] sm:$0xff]
      %v4156 = vld [vmem:[#allocation4 + $0xd0] sm:$0xff]
      %v4157 = vld [vmem:[#allocation4 + $0xd8] sm:$0xff]
      %v4158 = vld [vmem:[#allocation4 + $0xe0] sm:$0xff]
      %v4159 = vld [vmem:[#allocation4 + $0xe8] sm:$0xff]
      %v4160 = vld [vmem:[#allocation4 + $0xf0] sm:$0xff]
      %v4161 = vld [vmem:[#allocation4 + $0xf8] sm:$0xff]
      %s4162 = scalar_lea.vmem %s3, 640
      %v4163 = vld [vmem:[%s4162] sm:$0xff]
      %v4164 = vld [vmem:[%s4162 + $0x8] sm:$0xff]
      %v4165 = vld [vmem:[%s4162 + $0x10] sm:$0xff]
      %v4166 = vld [vmem:[%s4162 + $0x18] sm:$0xff]
      %v4167 = vld [vmem:[%s4162 + $0x20] sm:$0xff]
      %v4168 = vld [vmem:[%s4162 + $0x28] sm:$0xff]
      %v4169 = vld [vmem:[%s4162 + $0x30] sm:$0xff]
      %v4170 = vld [vmem:[%s4162 + $0x38] sm:$0xff]
      %v4171 = vld [vmem:[%s4162 + $0x40] sm:$0xff]
      %v4172 = vld [vmem:[%s4162 + $0x48] sm:$0xff]
      %v4173 = vld [vmem:[%s4162 + $0x50] sm:$0xff]
      %v4174 = vld [vmem:[%s4162 + $0x58] sm:$0xff]
      %v4175 = vld [vmem:[%s4162 + $0x60] sm:$0xff]
      %v4176 = vld [vmem:[%s4162 + $0x68] sm:$0xff]
      %v4177 = vld [vmem:[%s4162 + $0x70] sm:$0xff]
      %v4178 = vld [vmem:[%s4162 + $0x78] sm:$0xff]
      %v4180 = vsel %vm2035, %v4163, 0
      %v4183 = vsel %vm2035, %v4164, 0
      %v4186 = vsel %vm2035, %v4165, 0
      %v4189 = vsel %vm2035, %v4166, 0
      %v4192 = vsel %vm2035, %v4167, 0
      %v4195 = vsel %vm2035, %v4168, 0
      %v4198 = vsel %vm2035, %v4169, 0
      %v4201 = vsel %vm2035, %v4170, 0
      %v4204 = vsel %vm2035, %v4171, 0
      %v4207 = vsel %vm2035, %v4172, 0
      %v4210 = vsel %vm2035, %v4173, 0
      %v4213 = vsel %vm2035, %v4174, 0
      %v4216 = vsel %vm2035, %v4175, 0
      %v4219 = vsel %vm2035, %v4176, 0
      %v4222 = vsel %vm2035, %v4177, 0
      %v4225 = vsel %vm2035, %v4178, 0
      %4227 = vmatpush.msra.mxu0 0.0
      %4228 = vmatpush.msra.mxu0 0.0
      %4229 = vmatpush.msra.mxu0 0.0
      %4230 = vmatpush.msra.mxu0 0.0
      %4231 = vmatpush.msra.mxu0 0.0
      %4232 = vmatpush.msra.mxu0 0.0
      %4233 = vmatpush.msra.mxu0 0.0
      %4234 = vmatpush.msra.mxu0 0.0
      %4235 = vmatpush.msra.mxu0 %v4128
      %4236 = vmatpush.msra.mxu0 %v4126
      %4237 = vmatpush.msra.mxu0 %v4124
      %4238 = vmatpush.msra.mxu0 %v4122
      %4239 = vmatpush.msra.mxu0 %v4120
      %4240 = vmatpush.msra.mxu0 %v4118
      %4241 = vmatpush.msra.mxu0 %v4116
      %4242 = vmatpush.msra.mxu0 %v4114
      %4243 = vmatmul.f32.gmra.mxu0 %v4180
      %v4244 = vpop.f32.mrf.mxu0
      %v4245 = vadd.f32 0.0, %v4244
      %4246 = vmatmul.f32.gmra.mxu0 %v4183
      %v4247 = vpop.f32.mrf.mxu0
      %v4248 = vadd.f32 0.0, %v4247
      %4249 = vmatmul.f32.gmra.mxu0 %v4186
      %v4250 = vpop.f32.mrf.mxu0
      %v4251 = vadd.f32 0.0, %v4250
      %4252 = vmatmul.f32.gmra.mxu0 %v4189
      %v4253 = vpop.f32.mrf.mxu0
      %v4254 = vadd.f32 0.0, %v4253
      %4255 = vmatmul.f32.gmra.mxu0 %v4192
      %v4256 = vpop.f32.mrf.mxu0
      %v4257 = vadd.f32 0.0, %v4256
      %4258 = vmatmul.f32.gmra.mxu0 %v4195
      %v4259 = vpop.f32.mrf.mxu0
      %v4260 = vadd.f32 0.0, %v4259
      %4261 = vmatmul.f32.gmra.mxu0 %v4198
      %v4262 = vpop.f32.mrf.mxu0
      %v4263 = vadd.f32 0.0, %v4262
      %4264 = vmatmul.f32.gmra.mxu0 %v4201
      %v4265 = vpop.f32.mrf.mxu0
      %v4266 = vadd.f32 0.0, %v4265
      %4267 = vmatmul.f32.gmra.mxu0 %v4204
      %v4268 = vpop.f32.mrf.mxu0
      %v4269 = vadd.f32 0.0, %v4268
      %4270 = vmatmul.f32.gmra.mxu0 %v4207
      %v4271 = vpop.f32.mrf.mxu0
      %v4272 = vadd.f32 0.0, %v4271
      %4273 = vmatmul.f32.gmra.mxu0 %v4210
      %v4274 = vpop.f32.mrf.mxu0
      %v4275 = vadd.f32 0.0, %v4274
      %4276 = vmatmul.f32.gmra.mxu0 %v4213
      %v4277 = vpop.f32.mrf.mxu0
      %v4278 = vadd.f32 0.0, %v4277
      %4279 = vmatmul.f32.gmra.mxu0 %v4216
      %v4280 = vpop.f32.mrf.mxu0
      %v4281 = vadd.f32 0.0, %v4280
      %4282 = vmatmul.f32.gmra.mxu0 %v4219
      %v4283 = vpop.f32.mrf.mxu0
      %v4284 = vadd.f32 0.0, %v4283
      %4285 = vmatmul.f32.gmra.mxu0 %v4222
      %v4286 = vpop.f32.mrf.mxu0
      %v4287 = vadd.f32 0.0, %v4286
      %4288 = vmatmul.f32.gmra.mxu0 %v4225
      %v4289 = vpop.f32.mrf.mxu0
      %v4290 = vadd.f32 0.0, %v4289
      %4291 = vdwg.mxu0
      %4292 = vmatpush.msra.mxu0 0.0
      %4293 = vmatpush.msra.mxu0 0.0
      %4294 = vmatpush.msra.mxu0 0.0
      %4295 = vmatpush.msra.mxu0 0.0
      %4296 = vmatpush.msra.mxu0 0.0
      %4297 = vmatpush.msra.mxu0 0.0
      %4298 = vmatpush.msra.mxu0 0.0
      %4299 = vmatpush.msra.mxu0 0.0
      %4300 = vmatpush.msra.mxu0 %v4129
      %4301 = vmatpush.msra.mxu0 %v4127
      %4302 = vmatpush.msra.mxu0 %v4125
      %4303 = vmatpush.msra.mxu0 %v4123
      %4304 = vmatpush.msra.mxu0 %v4121
      %4305 = vmatpush.msra.mxu0 %v4119
      %4306 = vmatpush.msra.mxu0 %v4117
      %4307 = vmatpush.msra.mxu0 %v4115
      %4308 = vmatmul.f32.gmra.mxu0 %v4180
      %v4309 = vpop.f32.mrf.mxu0
      %v4310 = vadd.f32 0.0, %v4309
      %4311 = vmatmul.f32.gmra.mxu0 %v4183
      %v4312 = vpop.f32.mrf.mxu0
      %v4313 = vadd.f32 0.0, %v4312
      %4314 = vmatmul.f32.gmra.mxu0 %v4186
      %v4315 = vpop.f32.mrf.mxu0
      %v4316 = vadd.f32 0.0, %v4315
      %4317 = vmatmul.f32.gmra.mxu0 %v4189
      %v4318 = vpop.f32.mrf.mxu0
      %v4319 = vadd.f32 0.0, %v4318
      %4320 = vmatmul.f32.gmra.mxu0 %v4192
      %v4321 = vpop.f32.mrf.mxu0
      %v4322 = vadd.f32 0.0, %v4321
      %4323 = vmatmul.f32.gmra.mxu0 %v4195
      %v4324 = vpop.f32.mrf.mxu0
      %v4325 = vadd.f32 0.0, %v4324
      %4326 = vmatmul.f32.gmra.mxu0 %v4198
      %v4327 = vpop.f32.mrf.mxu0
      %v4328 = vadd.f32 0.0, %v4327
      %4329 = vmatmul.f32.gmra.mxu0 %v4201
      %v4330 = vpop.f32.mrf.mxu0
      %v4331 = vadd.f32 0.0, %v4330
      %4332 = vmatmul.f32.gmra.mxu0 %v4204
      %v4333 = vpop.f32.mrf.mxu0
      %v4334 = vadd.f32 0.0, %v4333
      %4335 = vmatmul.f32.gmra.mxu0 %v4207
      %v4336 = vpop.f32.mrf.mxu0
      %v4337 = vadd.f32 0.0, %v4336
      %4338 = vmatmul.f32.gmra.mxu0 %v4210
      %v4339 = vpop.f32.mrf.mxu0
      %v4340 = vadd.f32 0.0, %v4339
      %4341 = vmatmul.f32.gmra.mxu0 %v4213
      %v4342 = vpop.f32.mrf.mxu0
      %v4343 = vadd.f32 0.0, %v4342
      %4344 = vmatmul.f32.gmra.mxu0 %v4216
      %v4345 = vpop.f32.mrf.mxu0
      %v4346 = vadd.f32 0.0, %v4345
      %4347 = vmatmul.f32.gmra.mxu0 %v4219
      %v4348 = vpop.f32.mrf.mxu0
      %v4349 = vadd.f32 0.0, %v4348
      %4350 = vmatmul.f32.gmra.mxu0 %v4222
      %v4351 = vpop.f32.mrf.mxu0
      %v4352 = vadd.f32 0.0, %v4351
      %4353 = vmatmul.f32.gmra.mxu0 %v4225
      %v4354 = vpop.f32.mrf.mxu0
      %v4355 = vadd.f32 0.0, %v4354
      %4356 = vdwg.mxu0
      %v4357 = vadd.f32 %v4130, %v4245
      %v4358 = vadd.f32 %v4131, %v4310
      %v4359 = vadd.f32 %v4132, %v4248
      %v4360 = vadd.f32 %v4133, %v4313
      %v4361 = vadd.f32 %v4134, %v4251
      %v4362 = vadd.f32 %v4135, %v4316
      %v4363 = vadd.f32 %v4136, %v4254
      %v4364 = vadd.f32 %v4137, %v4319
      %v4365 = vadd.f32 %v4138, %v4257
      %v4366 = vadd.f32 %v4139, %v4322
      %v4367 = vadd.f32 %v4140, %v4260
      %v4368 = vadd.f32 %v4141, %v4325
      %v4369 = vadd.f32 %v4142, %v4263
      %v4370 = vadd.f32 %v4143, %v4328
      %v4371 = vadd.f32 %v4144, %v4266
      %v4372 = vadd.f32 %v4145, %v4331
      %v4373 = vadd.f32 %v4146, %v4269
      %v4374 = vadd.f32 %v4147, %v4334
      %v4375 = vadd.f32 %v4148, %v4272
      %v4376 = vadd.f32 %v4149, %v4337
      %v4377 = vadd.f32 %v4150, %v4275
      %v4378 = vadd.f32 %v4151, %v4340
      %v4379 = vadd.f32 %v4152, %v4278
      %v4380 = vadd.f32 %v4153, %v4343
      %v4381 = vadd.f32 %v4154, %v4281
      %v4382 = vadd.f32 %v4155, %v4346
      %v4383 = vadd.f32 %v4156, %v4284
      %v4384 = vadd.f32 %v4157, %v4349
      %v4385 = vadd.f32 %v4158, %v4287
      %v4386 = vadd.f32 %v4159, %v4352
      %v4387 = vadd.f32 %v4160, %v4290
      %v4388 = vadd.f32 %v4161, %v4355
      %4389 = vst [vmem:[#allocation4] sm:$0xff] %v4357
      %4390 = vst [vmem:[#allocation4 + $0x8] sm:$0xff] %v4358
      %4391 = vst [vmem:[#allocation4 + $0x10] sm:$0xff] %v4359
      %4392 = vst [vmem:[#allocation4 + $0x18] sm:$0xff] %v4360
      %4393 = vst [vmem:[#allocation4 + $0x20] sm:$0xff] %v4361
      %4394 = vst [vmem:[#allocation4 + $0x28] sm:$0xff] %v4362
      %4395 = vst [vmem:[#allocation4 + $0x30] sm:$0xff] %v4363
      %4396 = vst [vmem:[#allocation4 + $0x38] sm:$0xff] %v4364
      %4397 = vst [vmem:[#allocation4 + $0x40] sm:$0xff] %v4365
      %4398 = vst [vmem:[#allocation4 + $0x48] sm:$0xff] %v4366
      %4399 = vst [vmem:[#allocation4 + $0x50] sm:$0xff] %v4367
      %4400 = vst [vmem:[#allocation4 + $0x58] sm:$0xff] %v4368
      %4401 = vst [vmem:[#allocation4 + $0x60] sm:$0xff] %v4369
      %4402 = vst [vmem:[#allocation4 + $0x68] sm:$0xff] %v4370
      %4403 = vst [vmem:[#allocation4 + $0x70] sm:$0xff] %v4371
      %4404 = vst [vmem:[#allocation4 + $0x78] sm:$0xff] %v4372
      %4405 = vst [vmem:[#allocation4 + $0x80] sm:$0xff] %v4373
      %4406 = vst [vmem:[#allocation4 + $0x88] sm:$0xff] %v4374
      %4407 = vst [vmem:[#allocation4 + $0x90] sm:$0xff] %v4375
      %4408 = vst [vmem:[#allocation4 + $0x98] sm:$0xff] %v4376
      %4409 = vst [vmem:[#allocation4 + $0xa0] sm:$0xff] %v4377
      %4410 = vst [vmem:[#allocation4 + $0xa8] sm:$0xff] %v4378
      %4411 = vst [vmem:[#allocation4 + $0xb0] sm:$0xff] %v4379
      %4412 = vst [vmem:[#allocation4 + $0xb8] sm:$0xff] %v4380
      %4413 = vst [vmem:[#allocation4 + $0xc0] sm:$0xff] %v4381
      %4414 = vst [vmem:[#allocation4 + $0xc8] sm:$0xff] %v4382
      %4415 = vst [vmem:[#allocation4 + $0xd0] sm:$0xff] %v4383
      %4416 = vst [vmem:[#allocation4 + $0xd8] sm:$0xff] %v4384
      %4417 = vst [vmem:[#allocation4 + $0xe0] sm:$0xff] %v4385
      %4418 = vst [vmem:[#allocation4 + $0xe8] sm:$0xff] %v4386
      %4419 = vst [vmem:[#allocation4 + $0xf0] sm:$0xff] %v4387
      %4420 = vst [vmem:[#allocation4 + $0xf8] sm:$0xff] %v4388
      %v4421 = vld [vmem:[#allocation3] sm:$0xff]
      %v4422 = vld [vmem:[#allocation3 + $0x8] sm:$0xff]
      %v4423 = vld [vmem:[#allocation3 + $0x10] sm:$0xff]
      %v4424 = vld [vmem:[#allocation3 + $0x18] sm:$0xff]
      %v4425 = vld [vmem:[#allocation3 + $0x20] sm:$0xff]
      %v4426 = vld [vmem:[#allocation3 + $0x28] sm:$0xff]
      %v4427 = vld [vmem:[#allocation3 + $0x30] sm:$0xff]
      %v4428 = vld [vmem:[#allocation3 + $0x38] sm:$0xff]
      %v4429 = vld [vmem:[#allocation3 + $0x40] sm:$0xff]
      %v4430 = vld [vmem:[#allocation3 + $0x48] sm:$0xff]
      %v4431 = vld [vmem:[#allocation3 + $0x50] sm:$0xff]
      %v4432 = vld [vmem:[#allocation3 + $0x58] sm:$0xff]
      %v4433 = vld [vmem:[#allocation3 + $0x60] sm:$0xff]
      %v4434 = vld [vmem:[#allocation3 + $0x68] sm:$0xff]
      %v4435 = vld [vmem:[#allocation3 + $0x70] sm:$0xff]
      %v4436 = vld [vmem:[#allocation3 + $0x78] sm:$0xff]
      %v4437 = vld [vmem:[#allocation3 + $0x80] sm:$0xff]
      %v4438 = vld [vmem:[#allocation3 + $0x88] sm:$0xff]
      %v4439 = vld [vmem:[#allocation3 + $0x90] sm:$0xff]
      %v4440 = vld [vmem:[#allocation3 + $0x98] sm:$0xff]
      %v4441 = vld [vmem:[#allocation3 + $0xa0] sm:$0xff]
      %v4442 = vld [vmem:[#allocation3 + $0xa8] sm:$0xff]
      %v4443 = vld [vmem:[#allocation3 + $0xb0] sm:$0xff]
      %v4444 = vld [vmem:[#allocation3 + $0xb8] sm:$0xff]
      %4469 = vrot.lane.b32.xlu0 %v4421, 96
      %v4470 = vpop.permute.xlu0 %4469
      %4471 = vrot.lane.b32.xlu0 %v4422, 96
      %v4472 = vpop.permute.xlu0 %4471
      %4473 = vrot.lane.b32.xlu0 %v4423, 96
      %v4474 = vpop.permute.xlu0 %4473
      %4475 = vrot.lane.b32.xlu0 %v4424, 96
      %v4476 = vpop.permute.xlu0 %4475
      %4477 = vrot.lane.b32.xlu0 %v4425, 96
      %v4478 = vpop.permute.xlu0 %4477
      %4479 = vrot.lane.b32.xlu0 %v4426, 96
      %v4480 = vpop.permute.xlu0 %4479
      %4481 = vrot.lane.b32.xlu0 %v4427, 96
      %v4482 = vpop.permute.xlu0 %4481
      %4483 = vrot.lane.b32.xlu0 %v4428, 96
      %v4484 = vpop.permute.xlu0 %4483
      %4485 = vrot.lane.b32.xlu0 %v4429, 96
      %v4486 = vpop.permute.xlu0 %4485
      %4487 = vrot.lane.b32.xlu0 %v4430, 96
      %v4488 = vpop.permute.xlu0 %4487
      %4489 = vrot.lane.b32.xlu0 %v4431, 96
      %v4490 = vpop.permute.xlu0 %4489
      %4491 = vrot.lane.b32.xlu0 %v4432, 96
      %v4492 = vpop.permute.xlu0 %4491
      %4493 = vrot.lane.b32.xlu0 %v4433, 96
      %v4494 = vpop.permute.xlu0 %4493
      %4495 = vrot.lane.b32.xlu0 %v4434, 96
      %v4496 = vpop.permute.xlu0 %4495
      %4497 = vrot.lane.b32.xlu0 %v4435, 96
      %v4498 = vpop.permute.xlu0 %4497
      %4499 = vrot.lane.b32.xlu0 %v4436, 96
      %v4500 = vpop.permute.xlu0 %4499
      %4501 = vrot.lane.b32.xlu0 %v4437, 96
      %v4502 = vpop.permute.xlu0 %4501
      %4503 = vrot.lane.b32.xlu0 %v4438, 96
      %v4504 = vpop.permute.xlu0 %4503
      %4505 = vrot.lane.b32.xlu0 %v4439, 96
      %v4506 = vpop.permute.xlu0 %4505
      %4507 = vrot.lane.b32.xlu0 %v4440, 96
      %v4508 = vpop.permute.xlu0 %4507
      %4509 = vrot.lane.b32.xlu0 %v4441, 96
      %v4510 = vpop.permute.xlu0 %4509
      %4511 = vrot.lane.b32.xlu0 %v4442, 96
      %v4512 = vpop.permute.xlu0 %4511
      %4513 = vrot.lane.b32.xlu0 %v4443, 96
      %v4514 = vpop.permute.xlu0 %4513
      %4515 = vrot.lane.b32.xlu0 %v4444, 96
      %v4516 = vpop.permute.xlu0 %4515
      %v4517 = vsel %vm1255, %v4470, %v4472
      %v4518 = vsel %vm1255, %v4472, %v4474
      %v4519 = vsel %vm1255, %v4476, %v4478
      %v4520 = vsel %vm1255, %v4478, %v4480
      %v4521 = vsel %vm1255, %v4482, %v4484
      %v4522 = vsel %vm1255, %v4484, %v4486
      %v4523 = vsel %vm1255, %v4488, %v4490
      %v4524 = vsel %vm1255, %v4490, %v4492
      %v4525 = vsel %vm1255, %v4494, %v4496
      %v4526 = vsel %vm1255, %v4496, %v4498
      %v4527 = vsel %vm1255, %v4500, %v4502
      %v4528 = vsel %vm1255, %v4502, %v4504
      %v4529 = vsel %vm1255, %v4506, %v4508
      %v4530 = vsel %vm1255, %v4508, %v4510
      %v4531 = vsel %vm1255, %v4512, %v4514
      %v4532 = vsel %vm1255, %v4514, %v4516
      %v4549 = vsel %vm331, %v4517, 0.0
      %v4550 = vsel %vm332, %v4518, 0.0
      %v4551 = vsel %vm331, %v4519, 0.0
      %v4552 = vsel %vm332, %v4520, 0.0
      %v4553 = vsel %vm331, %v4521, 0.0
      %v4554 = vsel %vm332, %v4522, 0.0
      %v4555 = vsel %vm331, %v4523, 0.0
      %v4556 = vsel %vm332, %v4524, 0.0
      %v4557 = vsel %vm331, %v4525, 0.0
      %v4558 = vsel %vm332, %v4526, 0.0
      %v4559 = vsel %vm331, %v4527, 0.0
      %v4560 = vsel %vm332, %v4528, 0.0
      %v4561 = vsel %vm331, %v4529, 0.0
      %v4562 = vsel %vm332, %v4530, 0.0
      %v4563 = vsel %vm331, %v4531, 0.0
      %v4564 = vsel %vm332, %v4532, 0.0
      %v4565 = vld [vmem:[#allocation4] sm:$0xff]
      %v4566 = vld [vmem:[#allocation4 + $0x8] sm:$0xff]
      %v4567 = vld [vmem:[#allocation4 + $0x10] sm:$0xff]
      %v4568 = vld [vmem:[#allocation4 + $0x18] sm:$0xff]
      %v4569 = vld [vmem:[#allocation4 + $0x20] sm:$0xff]
      %v4570 = vld [vmem:[#allocation4 + $0x28] sm:$0xff]
      %v4571 = vld [vmem:[#allocation4 + $0x30] sm:$0xff]
      %v4572 = vld [vmem:[#allocation4 + $0x38] sm:$0xff]
      %v4573 = vld [vmem:[#allocation4 + $0x40] sm:$0xff]
      %v4574 = vld [vmem:[#allocation4 + $0x48] sm:$0xff]
      %v4575 = vld [vmem:[#allocation4 + $0x50] sm:$0xff]
      %v4576 = vld [vmem:[#allocation4 + $0x58] sm:$0xff]
      %v4577 = vld [vmem:[#allocation4 + $0x60] sm:$0xff]
      %v4578 = vld [vmem:[#allocation4 + $0x68] sm:$0xff]
      %v4579 = vld [vmem:[#allocation4 + $0x70] sm:$0xff]
      %v4580 = vld [vmem:[#allocation4 + $0x78] sm:$0xff]
      %v4581 = vld [vmem:[#allocation4 + $0x80] sm:$0xff]
      %v4582 = vld [vmem:[#allocation4 + $0x88] sm:$0xff]
      %v4583 = vld [vmem:[#allocation4 + $0x90] sm:$0xff]
      %v4584 = vld [vmem:[#allocation4 + $0x98] sm:$0xff]
      %v4585 = vld [vmem:[#allocation4 + $0xa0] sm:$0xff]
      %v4586 = vld [vmem:[#allocation4 + $0xa8] sm:$0xff]
      %v4587 = vld [vmem:[#allocation4 + $0xb0] sm:$0xff]
      %v4588 = vld [vmem:[#allocation4 + $0xb8] sm:$0xff]
      %v4589 = vld [vmem:[#allocation4 + $0xc0] sm:$0xff]
      %v4590 = vld [vmem:[#allocation4 + $0xc8] sm:$0xff]
      %v4591 = vld [vmem:[#allocation4 + $0xd0] sm:$0xff]
      %v4592 = vld [vmem:[#allocation4 + $0xd8] sm:$0xff]
      %v4593 = vld [vmem:[#allocation4 + $0xe0] sm:$0xff]
      %v4594 = vld [vmem:[#allocation4 + $0xe8] sm:$0xff]
      %v4595 = vld [vmem:[#allocation4 + $0xf0] sm:$0xff]
      %v4596 = vld [vmem:[#allocation4 + $0xf8] sm:$0xff]
      %s4597 = scalar_lea.vmem %s3, 768
      %v4598 = vld [vmem:[%s4597] sm:$0xff]
      %v4599 = vld [vmem:[%s4597 + $0x8] sm:$0xff]
      %v4600 = vld [vmem:[%s4597 + $0x10] sm:$0xff]
      %v4601 = vld [vmem:[%s4597 + $0x18] sm:$0xff]
      %v4602 = vld [vmem:[%s4597 + $0x20] sm:$0xff]
      %v4603 = vld [vmem:[%s4597 + $0x28] sm:$0xff]
      %v4604 = vld [vmem:[%s4597 + $0x30] sm:$0xff]
      %v4605 = vld [vmem:[%s4597 + $0x38] sm:$0xff]
      %v4606 = vld [vmem:[%s4597 + $0x40] sm:$0xff]
      %v4607 = vld [vmem:[%s4597 + $0x48] sm:$0xff]
      %v4608 = vld [vmem:[%s4597 + $0x50] sm:$0xff]
      %v4609 = vld [vmem:[%s4597 + $0x58] sm:$0xff]
      %v4610 = vld [vmem:[%s4597 + $0x60] sm:$0xff]
      %v4611 = vld [vmem:[%s4597 + $0x68] sm:$0xff]
      %v4612 = vld [vmem:[%s4597 + $0x70] sm:$0xff]
      %v4613 = vld [vmem:[%s4597 + $0x78] sm:$0xff]
      %v4615 = vsel %vm2035, %v4598, 0
      %v4618 = vsel %vm2035, %v4599, 0
      %v4621 = vsel %vm2035, %v4600, 0
      %v4624 = vsel %vm2035, %v4601, 0
      %v4627 = vsel %vm2035, %v4602, 0
      %v4630 = vsel %vm2035, %v4603, 0
      %v4633 = vsel %vm2035, %v4604, 0
      %v4636 = vsel %vm2035, %v4605, 0
      %v4639 = vsel %vm2035, %v4606, 0
      %v4642 = vsel %vm2035, %v4607, 0
      %v4645 = vsel %vm2035, %v4608, 0
      %v4648 = vsel %vm2035, %v4609, 0
      %v4651 = vsel %vm2035, %v4610, 0
      %v4654 = vsel %vm2035, %v4611, 0
      %v4657 = vsel %vm2035, %v4612, 0
      %v4660 = vsel %vm2035, %v4613, 0
      %4662 = vmatpush.msra.mxu0 0.0
      %4663 = vmatpush.msra.mxu0 0.0
      %4664 = vmatpush.msra.mxu0 0.0
      %4665 = vmatpush.msra.mxu0 0.0
      %4666 = vmatpush.msra.mxu0 0.0
      %4667 = vmatpush.msra.mxu0 0.0
      %4668 = vmatpush.msra.mxu0 0.0
      %4669 = vmatpush.msra.mxu0 0.0
      %4670 = vmatpush.msra.mxu0 %v4563
      %4671 = vmatpush.msra.mxu0 %v4561
      %4672 = vmatpush.msra.mxu0 %v4559
      %4673 = vmatpush.msra.mxu0 %v4557
      %4674 = vmatpush.msra.mxu0 %v4555
      %4675 = vmatpush.msra.mxu0 %v4553
      %4676 = vmatpush.msra.mxu0 %v4551
      %4677 = vmatpush.msra.mxu0 %v4549
      %4678 = vmatmul.f32.gmra.mxu0 %v4615
      %v4679 = vpop.f32.mrf.mxu0
      %v4680 = vadd.f32 0.0, %v4679
      %4681 = vmatmul.f32.gmra.mxu0 %v4618
      %v4682 = vpop.f32.mrf.mxu0
      %v4683 = vadd.f32 0.0, %v4682
      %4684 = vmatmul.f32.gmra.mxu0 %v4621
      %v4685 = vpop.f32.mrf.mxu0
      %v4686 = vadd.f32 0.0, %v4685
      %4687 = vmatmul.f32.gmra.mxu0 %v4624
      %v4688 = vpop.f32.mrf.mxu0
      %v4689 = vadd.f32 0.0, %v4688
      %4690 = vmatmul.f32.gmra.mxu0 %v4627
      %v4691 = vpop.f32.mrf.mxu0
      %v4692 = vadd.f32 0.0, %v4691
      %4693 = vmatmul.f32.gmra.mxu0 %v4630
      %v4694 = vpop.f32.mrf.mxu0
      %v4695 = vadd.f32 0.0, %v4694
      %4696 = vmatmul.f32.gmra.mxu0 %v4633
      %v4697 = vpop.f32.mrf.mxu0
      %v4698 = vadd.f32 0.0, %v4697
      %4699 = vmatmul.f32.gmra.mxu0 %v4636
      %v4700 = vpop.f32.mrf.mxu0
      %v4701 = vadd.f32 0.0, %v4700
      %4702 = vmatmul.f32.gmra.mxu0 %v4639
      %v4703 = vpop.f32.mrf.mxu0
      %v4704 = vadd.f32 0.0, %v4703
      %4705 = vmatmul.f32.gmra.mxu0 %v4642
      %v4706 = vpop.f32.mrf.mxu0
      %v4707 = vadd.f32 0.0, %v4706
      %4708 = vmatmul.f32.gmra.mxu0 %v4645
      %v4709 = vpop.f32.mrf.mxu0
      %v4710 = vadd.f32 0.0, %v4709
      %4711 = vmatmul.f32.gmra.mxu0 %v4648
      %v4712 = vpop.f32.mrf.mxu0
      %v4713 = vadd.f32 0.0, %v4712
      %4714 = vmatmul.f32.gmra.mxu0 %v4651
      %v4715 = vpop.f32.mrf.mxu0
      %v4716 = vadd.f32 0.0, %v4715
      %4717 = vmatmul.f32.gmra.mxu0 %v4654
      %v4718 = vpop.f32.mrf.mxu0
      %v4719 = vadd.f32 0.0, %v4718
      %4720 = vmatmul.f32.gmra.mxu0 %v4657
      %v4721 = vpop.f32.mrf.mxu0
      %v4722 = vadd.f32 0.0, %v4721
      %4723 = vmatmul.f32.gmra.mxu0 %v4660
      %v4724 = vpop.f32.mrf.mxu0
      %v4725 = vadd.f32 0.0, %v4724
      %4726 = vdwg.mxu0
      %4727 = vmatpush.msra.mxu0 0.0
      %4728 = vmatpush.msra.mxu0 0.0
      %4729 = vmatpush.msra.mxu0 0.0
      %4730 = vmatpush.msra.mxu0 0.0
      %4731 = vmatpush.msra.mxu0 0.0
      %4732 = vmatpush.msra.mxu0 0.0
      %4733 = vmatpush.msra.mxu0 0.0
      %4734 = vmatpush.msra.mxu0 0.0
      %4735 = vmatpush.msra.mxu0 %v4564
      %4736 = vmatpush.msra.mxu0 %v4562
      %4737 = vmatpush.msra.mxu0 %v4560
      %4738 = vmatpush.msra.mxu0 %v4558
      %4739 = vmatpush.msra.mxu0 %v4556
      %4740 = vmatpush.msra.mxu0 %v4554
      %4741 = vmatpush.msra.mxu0 %v4552
      %4742 = vmatpush.msra.mxu0 %v4550
      %4743 = vmatmul.f32.gmra.mxu0 %v4615
      %v4744 = vpop.f32.mrf.mxu0
      %v4745 = vadd.f32 0.0, %v4744
      %4746 = vmatmul.f32.gmra.mxu0 %v4618
      %v4747 = vpop.f32.mrf.mxu0
      %v4748 = vadd.f32 0.0, %v4747
      %4749 = vmatmul.f32.gmra.mxu0 %v4621
      %v4750 = vpop.f32.mrf.mxu0
      %v4751 = vadd.f32 0.0, %v4750
      %4752 = vmatmul.f32.gmra.mxu0 %v4624
      %v4753 = vpop.f32.mrf.mxu0
      %v4754 = vadd.f32 0.0, %v4753
      %4755 = vmatmul.f32.gmra.mxu0 %v4627
      %v4756 = vpop.f32.mrf.mxu0
      %v4757 = vadd.f32 0.0, %v4756
      %4758 = vmatmul.f32.gmra.mxu0 %v4630
      %v4759 = vpop.f32.mrf.mxu0
      %v4760 = vadd.f32 0.0, %v4759
      %4761 = vmatmul.f32.gmra.mxu0 %v4633
      %v4762 = vpop.f32.mrf.mxu0
      %v4763 = vadd.f32 0.0, %v4762
      %4764 = vmatmul.f32.gmra.mxu0 %v4636
      %v4765 = vpop.f32.mrf.mxu0
      %v4766 = vadd.f32 0.0, %v4765
      %4767 = vmatmul.f32.gmra.mxu0 %v4639
      %v4768 = vpop.f32.mrf.mxu0
      %v4769 = vadd.f32 0.0, %v4768
      %4770 = vmatmul.f32.gmra.mxu0 %v4642
      %v4771 = vpop.f32.mrf.mxu0
      %v4772 = vadd.f32 0.0, %v4771
      %4773 = vmatmul.f32.gmra.mxu0 %v4645
      %v4774 = vpop.f32.mrf.mxu0
      %v4775 = vadd.f32 0.0, %v4774
      %4776 = vmatmul.f32.gmra.mxu0 %v4648
      %v4777 = vpop.f32.mrf.mxu0
      %v4778 = vadd.f32 0.0, %v4777
      %4779 = vmatmul.f32.gmra.mxu0 %v4651
      %v4780 = vpop.f32.mrf.mxu0
      %v4781 = vadd.f32 0.0, %v4780
      %4782 = vmatmul.f32.gmra.mxu0 %v4654
      %v4783 = vpop.f32.mrf.mxu0
      %v4784 = vadd.f32 0.0, %v4783
      %4785 = vmatmul.f32.gmra.mxu0 %v4657
      %v4786 = vpop.f32.mrf.mxu0
      %v4787 = vadd.f32 0.0, %v4786
      %4788 = vmatmul.f32.gmra.mxu0 %v4660
      %v4789 = vpop.f32.mrf.mxu0
      %v4790 = vadd.f32 0.0, %v4789
      %4791 = vdwg.mxu0
      %v4792 = vadd.f32 %v4565, %v4680
      %v4793 = vadd.f32 %v4566, %v4745
      %v4794 = vadd.f32 %v4567, %v4683
      %v4795 = vadd.f32 %v4568, %v4748
      %v4796 = vadd.f32 %v4569, %v4686
      %v4797 = vadd.f32 %v4570, %v4751
      %v4798 = vadd.f32 %v4571, %v4689
      %v4799 = vadd.f32 %v4572, %v4754
      %v4800 = vadd.f32 %v4573, %v4692
      %v4801 = vadd.f32 %v4574, %v4757
      %v4802 = vadd.f32 %v4575, %v4695
      %v4803 = vadd.f32 %v4576, %v4760
      %v4804 = vadd.f32 %v4577, %v4698
      %v4805 = vadd.f32 %v4578, %v4763
      %v4806 = vadd.f32 %v4579, %v4701
      %v4807 = vadd.f32 %v4580, %v4766
      %v4808 = vadd.f32 %v4581, %v4704
      %v4809 = vadd.f32 %v4582, %v4769
      %v4810 = vadd.f32 %v4583, %v4707
      %v4811 = vadd.f32 %v4584, %v4772
      %v4812 = vadd.f32 %v4585, %v4710
      %v4813 = vadd.f32 %v4586, %v4775
      %v4814 = vadd.f32 %v4587, %v4713
      %v4815 = vadd.f32 %v4588, %v4778
      %v4816 = vadd.f32 %v4589, %v4716
      %v4817 = vadd.f32 %v4590, %v4781
      %v4818 = vadd.f32 %v4591, %v4719
      %v4819 = vadd.f32 %v4592, %v4784
      %v4820 = vadd.f32 %v4593, %v4722
      %v4821 = vadd.f32 %v4594, %v4787
      %v4822 = vadd.f32 %v4595, %v4725
      %v4823 = vadd.f32 %v4596, %v4790
      %4824 = vst [vmem:[#allocation4] sm:$0xff] %v4792
      %4825 = vst [vmem:[#allocation4 + $0x8] sm:$0xff] %v4793
      %4826 = vst [vmem:[#allocation4 + $0x10] sm:$0xff] %v4794
      %4827 = vst [vmem:[#allocation4 + $0x18] sm:$0xff] %v4795
      %4828 = vst [vmem:[#allocation4 + $0x20] sm:$0xff] %v4796
      %4829 = vst [vmem:[#allocation4 + $0x28] sm:$0xff] %v4797
      %4830 = vst [vmem:[#allocation4 + $0x30] sm:$0xff] %v4798
      %4831 = vst [vmem:[#allocation4 + $0x38] sm:$0xff] %v4799
      %4832 = vst [vmem:[#allocation4 + $0x40] sm:$0xff] %v4800
      %4833 = vst [vmem:[#allocation4 + $0x48] sm:$0xff] %v4801
      %4834 = vst [vmem:[#allocation4 + $0x50] sm:$0xff] %v4802
      %4835 = vst [vmem:[#allocation4 + $0x58] sm:$0xff] %v4803
      %4836 = vst [vmem:[#allocation4 + $0x60] sm:$0xff] %v4804
      %4837 = vst [vmem:[#allocation4 + $0x68] sm:$0xff] %v4805
      %4838 = vst [vmem:[#allocation4 + $0x70] sm:$0xff] %v4806
      %4839 = vst [vmem:[#allocation4 + $0x78] sm:$0xff] %v4807
      %4840 = vst [vmem:[#allocation4 + $0x80] sm:$0xff] %v4808
      %4841 = vst [vmem:[#allocation4 + $0x88] sm:$0xff] %v4809
      %4842 = vst [vmem:[#allocation4 + $0x90] sm:$0xff] %v4810
      %4843 = vst [vmem:[#allocation4 + $0x98] sm:$0xff] %v4811
      %4844 = vst [vmem:[#allocation4 + $0xa0] sm:$0xff] %v4812
      %4845 = vst [vmem:[#allocation4 + $0xa8] sm:$0xff] %v4813
      %4846 = vst [vmem:[#allocation4 + $0xb0] sm:$0xff] %v4814
      %4847 = vst [vmem:[#allocation4 + $0xb8] sm:$0xff] %v4815
      %4848 = vst [vmem:[#allocation4 + $0xc0] sm:$0xff] %v4816
      %4849 = vst [vmem:[#allocation4 + $0xc8] sm:$0xff] %v4817
      %4850 = vst [vmem:[#allocation4 + $0xd0] sm:$0xff] %v4818
      %4851 = vst [vmem:[#allocation4 + $0xd8] sm:$0xff] %v4819
      %4852 = vst [vmem:[#allocation4 + $0xe0] sm:$0xff] %v4820
      %4853 = vst [vmem:[#allocation4 + $0xe8] sm:$0xff] %v4821
      %4854 = vst [vmem:[#allocation4 + $0xf0] sm:$0xff] %v4822
      %4855 = vst [vmem:[#allocation4 + $0xf8] sm:$0xff] %v4823
      %v4856 = vld [vmem:[#allocation3] sm:$0xff]
      %v4857 = vld [vmem:[#allocation3 + $0x8] sm:$0xff]
      %v4858 = vld [vmem:[#allocation3 + $0x10] sm:$0xff]
      %v4859 = vld [vmem:[#allocation3 + $0x18] sm:$0xff]
      %v4860 = vld [vmem:[#allocation3 + $0x20] sm:$0xff]
      %v4861 = vld [vmem:[#allocation3 + $0x28] sm:$0xff]
      %v4862 = vld [vmem:[#allocation3 + $0x30] sm:$0xff]
      %v4863 = vld [vmem:[#allocation3 + $0x38] sm:$0xff]
      %v4864 = vld [vmem:[#allocation3 + $0x40] sm:$0xff]
      %v4865 = vld [vmem:[#allocation3 + $0x48] sm:$0xff]
      %v4866 = vld [vmem:[#allocation3 + $0x50] sm:$0xff]
      %v4867 = vld [vmem:[#allocation3 + $0x58] sm:$0xff]
      %v4868 = vld [vmem:[#allocation3 + $0x60] sm:$0xff]
      %v4869 = vld [vmem:[#allocation3 + $0x68] sm:$0xff]
      %v4870 = vld [vmem:[#allocation3 + $0x70] sm:$0xff]
      %v4871 = vld [vmem:[#allocation3 + $0x78] sm:$0xff]
      %v4872 = vld [vmem:[#allocation3 + $0x80] sm:$0xff]
      %v4873 = vld [vmem:[#allocation3 + $0x88] sm:$0xff]
      %v4874 = vld [vmem:[#allocation3 + $0x90] sm:$0xff]
      %v4875 = vld [vmem:[#allocation3 + $0x98] sm:$0xff]
      %v4876 = vld [vmem:[#allocation3 + $0xa0] sm:$0xff]
      %v4877 = vld [vmem:[#allocation3 + $0xa8] sm:$0xff]
      %v4878 = vld [vmem:[#allocation3 + $0xb0] sm:$0xff]
      %v4879 = vld [vmem:[#allocation3 + $0xb8] sm:$0xff]
      %v4880 = vld [vmem:[#allocation4] sm:$0xff]
      %v4881 = vld [vmem:[#allocation4 + $0x8] sm:$0xff]
      %v4882 = vld [vmem:[#allocation4 + $0x10] sm:$0xff]
      %v4883 = vld [vmem:[#allocation4 + $0x18] sm:$0xff]
      %v4884 = vld [vmem:[#allocation4 + $0x20] sm:$0xff]
      %v4885 = vld [vmem:[#allocation4 + $0x28] sm:$0xff]
      %v4886 = vld [vmem:[#allocation4 + $0x30] sm:$0xff]
      %v4887 = vld [vmem:[#allocation4 + $0x38] sm:$0xff]
      %v4888 = vld [vmem:[#allocation4 + $0x40] sm:$0xff]
      %v4889 = vld [vmem:[#allocation4 + $0x48] sm:$0xff]
      %v4890 = vld [vmem:[#allocation4 + $0x50] sm:$0xff]
      %v4891 = vld [vmem:[#allocation4 + $0x58] sm:$0xff]
      %v4892 = vld [vmem:[#allocation4 + $0x60] sm:$0xff]
      %v4893 = vld [vmem:[#allocation4 + $0x68] sm:$0xff]
      %v4894 = vld [vmem:[#allocation4 + $0x70] sm:$0xff]
      %v4895 = vld [vmem:[#allocation4 + $0x78] sm:$0xff]
      %v4896 = vld [vmem:[#allocation4 + $0x80] sm:$0xff]
      %v4897 = vld [vmem:[#allocation4 + $0x88] sm:$0xff]
      %v4898 = vld [vmem:[#allocation4 + $0x90] sm:$0xff]
      %v4899 = vld [vmem:[#allocation4 + $0x98] sm:$0xff]
      %v4900 = vld [vmem:[#allocation4 + $0xa0] sm:$0xff]
      %v4901 = vld [vmem:[#allocation4 + $0xa8] sm:$0xff]
      %v4902 = vld [vmem:[#allocation4 + $0xb0] sm:$0xff]
      %v4903 = vld [vmem:[#allocation4 + $0xb8] sm:$0xff]
      %v4904 = vld [vmem:[#allocation4 + $0xc0] sm:$0xff]
      %v4905 = vld [vmem:[#allocation4 + $0xc8] sm:$0xff]
      %v4906 = vld [vmem:[#allocation4 + $0xd0] sm:$0xff]
      %v4907 = vld [vmem:[#allocation4 + $0xd8] sm:$0xff]
      %v4908 = vld [vmem:[#allocation4 + $0xe0] sm:$0xff]
      %v4909 = vld [vmem:[#allocation4 + $0xe8] sm:$0xff]
      %v4910 = vld [vmem:[#allocation4 + $0xf0] sm:$0xff]
      %v4911 = vld [vmem:[#allocation4 + $0xf8] sm:$0xff]
      %s4912 = scalar_lea.vmem %s3, 896
      %v4913 = vld [vmem:[%s4912] sm:$0xff]
      %v4914 = vld [vmem:[%s4912 + $0x8] sm:$0xff]
      %v4915 = vld [vmem:[%s4912 + $0x10] sm:$0xff]
      %v4916 = vld [vmem:[%s4912 + $0x18] sm:$0xff]
      %v4917 = vld [vmem:[%s4912 + $0x20] sm:$0xff]
      %v4918 = vld [vmem:[%s4912 + $0x28] sm:$0xff]
      %v4919 = vld [vmem:[%s4912 + $0x30] sm:$0xff]
      %v4920 = vld [vmem:[%s4912 + $0x38] sm:$0xff]
      %v4921 = vld [vmem:[%s4912 + $0x40] sm:$0xff]
      %v4922 = vld [vmem:[%s4912 + $0x48] sm:$0xff]
      %v4923 = vld [vmem:[%s4912 + $0x50] sm:$0xff]
      %v4924 = vld [vmem:[%s4912 + $0x58] sm:$0xff]
      %v4925 = vld [vmem:[%s4912 + $0x60] sm:$0xff]
      %v4926 = vld [vmem:[%s4912 + $0x68] sm:$0xff]
      %v4927 = vld [vmem:[%s4912 + $0x70] sm:$0xff]
      %v4928 = vld [vmem:[%s4912 + $0x78] sm:$0xff]
      %4953 = vrot.lane.b32.xlu0 %v4856, 95
      %v4954 = vpop.permute.xlu0 %4953
      %4955 = vrot.lane.b32.xlu0 %v4857, 95
      %v4956 = vpop.permute.xlu0 %4955
      %4957 = vrot.lane.b32.xlu0 %v4858, 95
      %v4958 = vpop.permute.xlu0 %4957
      %4959 = vrot.lane.b32.xlu0 %v4859, 95
      %v4960 = vpop.permute.xlu0 %4959
      %4961 = vrot.lane.b32.xlu0 %v4860, 95
      %v4962 = vpop.permute.xlu0 %4961
      %4963 = vrot.lane.b32.xlu0 %v4861, 95
      %v4964 = vpop.permute.xlu0 %4963
      %4965 = vrot.lane.b32.xlu0 %v4862, 95
      %v4966 = vpop.permute.xlu0 %4965
      %4967 = vrot.lane.b32.xlu0 %v4863, 95
      %v4968 = vpop.permute.xlu0 %4967
      %4969 = vrot.lane.b32.xlu0 %v4864, 95
      %v4970 = vpop.permute.xlu0 %4969
      %4971 = vrot.lane.b32.xlu0 %v4865, 95
      %v4972 = vpop.permute.xlu0 %4971
      %4973 = vrot.lane.b32.xlu0 %v4866, 95
      %v4974 = vpop.permute.xlu0 %4973
      %4975 = vrot.lane.b32.xlu0 %v4867, 95
      %v4976 = vpop.permute.xlu0 %4975
      %4977 = vrot.lane.b32.xlu0 %v4868, 95
      %v4978 = vpop.permute.xlu0 %4977
      %4979 = vrot.lane.b32.xlu0 %v4869, 95
      %v4980 = vpop.permute.xlu0 %4979
      %4981 = vrot.lane.b32.xlu0 %v4870, 95
      %v4982 = vpop.permute.xlu0 %4981
      %4983 = vrot.lane.b32.xlu0 %v4871, 95
      %v4984 = vpop.permute.xlu0 %4983
      %4985 = vrot.lane.b32.xlu0 %v4872, 95
      %v4986 = vpop.permute.xlu0 %4985
      %4987 = vrot.lane.b32.xlu0 %v4873, 95
      %v4988 = vpop.permute.xlu0 %4987
      %4989 = vrot.lane.b32.xlu0 %v4874, 95
      %v4990 = vpop.permute.xlu0 %4989
      %4991 = vrot.lane.b32.xlu0 %v4875, 95
      %v4992 = vpop.permute.xlu0 %4991
      %4993 = vrot.lane.b32.xlu0 %v4876, 95
      %v4994 = vpop.permute.xlu0 %4993
      %4995 = vrot.lane.b32.xlu0 %v4877, 95
      %v4996 = vpop.permute.xlu0 %4995
      %4997 = vrot.lane.b32.xlu0 %v4878, 95
      %v4998 = vpop.permute.xlu0 %4997
      %4999 = vrot.lane.b32.xlu0 %v4879, 95
      %v5000 = vpop.permute.xlu0 %4999
      %v5001 = vsel %vm1424, %v4954, %v4956
      %v5002 = vsel %vm1424, %v4956, %v4958
      %v5003 = vsel %vm1424, %v4960, %v4962
      %v5004 = vsel %vm1424, %v4962, %v4964
      %v5005 = vsel %vm1424, %v4966, %v4968
      %v5006 = vsel %vm1424, %v4968, %v4970
      %v5007 = vsel %vm1424, %v4972, %v4974
      %v5008 = vsel %vm1424, %v4974, %v4976
      %v5009 = vsel %vm1424, %v4978, %v4980
      %v5010 = vsel %vm1424, %v4980, %v4982
      %v5011 = vsel %vm1424, %v4984, %v4986
      %v5012 = vsel %vm1424, %v4986, %v4988
      %v5013 = vsel %vm1424, %v4990, %v4992
      %v5014 = vsel %vm1424, %v4992, %v4994
      %v5015 = vsel %vm1424, %v4996, %v4998
      %v5016 = vsel %vm1424, %v4998, %v5000
      %v5034 = vsel %vm2035, %v4913, 0
      %v5037 = vsel %vm2035, %v4914, 0
      %v5040 = vsel %vm2035, %v4915, 0
      %v5043 = vsel %vm2035, %v4916, 0
      %v5046 = vsel %vm2035, %v4917, 0
      %v5049 = vsel %vm2035, %v4918, 0
      %v5052 = vsel %vm2035, %v4919, 0
      %v5055 = vsel %vm2035, %v4920, 0
      %v5058 = vsel %vm2035, %v4921, 0
      %v5061 = vsel %vm2035, %v4922, 0
      %v5064 = vsel %vm2035, %v4923, 0
      %v5067 = vsel %vm2035, %v4924, 0
      %v5070 = vsel %vm2035, %v4925, 0
      %v5073 = vsel %vm2035, %v4926, 0
      %v5076 = vsel %vm2035, %v4927, 0
      %v5079 = vsel %vm2035, %v4928, 0
      %5081 = vmatpush.msra.mxu0 0.0
      %5082 = vmatpush.msra.mxu0 0.0
      %5083 = vmatpush.msra.mxu0 0.0
      %5084 = vmatpush.msra.mxu0 0.0
      %5085 = vmatpush.msra.mxu0 0.0
      %5086 = vmatpush.msra.mxu0 0.0
      %5087 = vmatpush.msra.mxu0 0.0
      %5088 = vmatpush.msra.mxu0 0.0
      %5089 = vmatpush.msra.mxu0 %v5015
      %5090 = vmatpush.msra.mxu0 %v5013
      %5091 = vmatpush.msra.mxu0 %v5011
      %5092 = vmatpush.msra.mxu0 %v5009
      %5093 = vmatpush.msra.mxu0 %v5007
      %5094 = vmatpush.msra.mxu0 %v5005
      %5095 = vmatpush.msra.mxu0 %v5003
      %5096 = vmatpush.msra.mxu0 %v5001
      %5097 = vmatmul.f32.gmra.mxu0 %v5034
      %v5098 = vpop.f32.mrf.mxu0
      %v5099 = vadd.f32 0.0, %v5098
      %5100 = vmatmul.f32.gmra.mxu0 %v5037
      %v5101 = vpop.f32.mrf.mxu0
      %v5102 = vadd.f32 0.0, %v5101
      %5103 = vmatmul.f32.gmra.mxu0 %v5040
      %v5104 = vpop.f32.mrf.mxu0
      %v5105 = vadd.f32 0.0, %v5104
      %5106 = vmatmul.f32.gmra.mxu0 %v5043
      %v5107 = vpop.f32.mrf.mxu0
      %v5108 = vadd.f32 0.0, %v5107
      %5109 = vmatmul.f32.gmra.mxu0 %v5046
      %v5110 = vpop.f32.mrf.mxu0
      %v5111 = vadd.f32 0.0, %v5110
      %5112 = vmatmul.f32.gmra.mxu0 %v5049
      %v5113 = vpop.f32.mrf.mxu0
      %v5114 = vadd.f32 0.0, %v5113
      %5115 = vmatmul.f32.gmra.mxu0 %v5052
      %v5116 = vpop.f32.mrf.mxu0
      %v5117 = vadd.f32 0.0, %v5116
      %5118 = vmatmul.f32.gmra.mxu0 %v5055
      %v5119 = vpop.f32.mrf.mxu0
      %v5120 = vadd.f32 0.0, %v5119
      %5121 = vmatmul.f32.gmra.mxu0 %v5058
      %v5122 = vpop.f32.mrf.mxu0
      %v5123 = vadd.f32 0.0, %v5122
      %5124 = vmatmul.f32.gmra.mxu0 %v5061
      %v5125 = vpop.f32.mrf.mxu0
      %v5126 = vadd.f32 0.0, %v5125
      %5127 = vmatmul.f32.gmra.mxu0 %v5064
      %v5128 = vpop.f32.mrf.mxu0
      %v5129 = vadd.f32 0.0, %v5128
      %5130 = vmatmul.f32.gmra.mxu0 %v5067
      %v5131 = vpop.f32.mrf.mxu0
      %v5132 = vadd.f32 0.0, %v5131
      %5133 = vmatmul.f32.gmra.mxu0 %v5070
      %v5134 = vpop.f32.mrf.mxu0
      %v5135 = vadd.f32 0.0, %v5134
      %5136 = vmatmul.f32.gmra.mxu0 %v5073
      %v5137 = vpop.f32.mrf.mxu0
      %v5138 = vadd.f32 0.0, %v5137
      %5139 = vmatmul.f32.gmra.mxu0 %v5076
      %v5140 = vpop.f32.mrf.mxu0
      %v5141 = vadd.f32 0.0, %v5140
      %5142 = vmatmul.f32.gmra.mxu0 %v5079
      %v5143 = vpop.f32.mrf.mxu0
      %v5144 = vadd.f32 0.0, %v5143
      %5145 = vdwg.mxu0
      %5146 = vmatpush.msra.mxu0 0.0
      %5147 = vmatpush.msra.mxu0 0.0
      %5148 = vmatpush.msra.mxu0 0.0
      %5149 = vmatpush.msra.mxu0 0.0
      %5150 = vmatpush.msra.mxu0 0.0
      %5151 = vmatpush.msra.mxu0 0.0
      %5152 = vmatpush.msra.mxu0 0.0
      %5153 = vmatpush.msra.mxu0 0.0
      %5154 = vmatpush.msra.mxu0 %v5016
      %5155 = vmatpush.msra.mxu0 %v5014
      %5156 = vmatpush.msra.mxu0 %v5012
      %5157 = vmatpush.msra.mxu0 %v5010
      %5158 = vmatpush.msra.mxu0 %v5008
      %5159 = vmatpush.msra.mxu0 %v5006
      %5160 = vmatpush.msra.mxu0 %v5004
      %5161 = vmatpush.msra.mxu0 %v5002
      %5162 = vmatmul.f32.gmra.mxu0 %v5034
      %v5163 = vpop.f32.mrf.mxu0
      %v5164 = vadd.f32 0.0, %v5163
      %5165 = vmatmul.f32.gmra.mxu0 %v5037
      %v5166 = vpop.f32.mrf.mxu0
      %v5167 = vadd.f32 0.0, %v5166
      %5168 = vmatmul.f32.gmra.mxu0 %v5040
      %v5169 = vpop.f32.mrf.mxu0
      %v5170 = vadd.f32 0.0, %v5169
      %5171 = vmatmul.f32.gmra.mxu0 %v5043
      %v5172 = vpop.f32.mrf.mxu0
      %v5173 = vadd.f32 0.0, %v5172
      %5174 = vmatmul.f32.gmra.mxu0 %v5046
      %v5175 = vpop.f32.mrf.mxu0
      %v5176 = vadd.f32 0.0, %v5175
      %5177 = vmatmul.f32.gmra.mxu0 %v5049
      %v5178 = vpop.f32.mrf.mxu0
      %v5179 = vadd.f32 0.0, %v5178
      %5180 = vmatmul.f32.gmra.mxu0 %v5052
      %v5181 = vpop.f32.mrf.mxu0
      %v5182 = vadd.f32 0.0, %v5181
      %5183 = vmatmul.f32.gmra.mxu0 %v5055
      %v5184 = vpop.f32.mrf.mxu0
      %v5185 = vadd.f32 0.0, %v5184
      %5186 = vmatmul.f32.gmra.mxu0 %v5058
      %v5187 = vpop.f32.mrf.mxu0
      %v5188 = vadd.f32 0.0, %v5187
      %5189 = vmatmul.f32.gmra.mxu0 %v5061
      %v5190 = vpop.f32.mrf.mxu0
      %v5191 = vadd.f32 0.0, %v5190
      %5192 = vmatmul.f32.gmra.mxu0 %v5064
      %v5193 = vpop.f32.mrf.mxu0
      %v5194 = vadd.f32 0.0, %v5193
      %5195 = vmatmul.f32.gmra.mxu0 %v5067
      %v5196 = vpop.f32.mrf.mxu0
      %v5197 = vadd.f32 0.0, %v5196
      %5198 = vmatmul.f32.gmra.mxu0 %v5070
      %v5199 = vpop.f32.mrf.mxu0
      %v5200 = vadd.f32 0.0, %v5199
      %5201 = vmatmul.f32.gmra.mxu0 %v5073
      %v5202 = vpop.f32.mrf.mxu0
      %v5203 = vadd.f32 0.0, %v5202
      %5204 = vmatmul.f32.gmra.mxu0 %v5076
      %v5205 = vpop.f32.mrf.mxu0
      %v5206 = vadd.f32 0.0, %v5205
      %5207 = vmatmul.f32.gmra.mxu0 %v5079
      %v5208 = vpop.f32.mrf.mxu0
      %v5209 = vadd.f32 0.0, %v5208
      %5210 = vdwg.mxu0
      %v5211 = vadd.f32 %v4880, %v5099
      %v5212 = vadd.f32 %v4881, %v5164
      %v5213 = vadd.f32 %v4882, %v5102
      %v5214 = vadd.f32 %v4883, %v5167
      %v5215 = vadd.f32 %v4884, %v5105
      %v5216 = vadd.f32 %v4885, %v5170
      %v5217 = vadd.f32 %v4886, %v5108
      %v5218 = vadd.f32 %v4887, %v5173
      %v5219 = vadd.f32 %v4888, %v5111
      %v5220 = vadd.f32 %v4889, %v5176
      %v5221 = vadd.f32 %v4890, %v5114
      %v5222 = vadd.f32 %v4891, %v5179
      %v5223 = vadd.f32 %v4892, %v5117
      %v5224 = vadd.f32 %v4893, %v5182
      %v5225 = vadd.f32 %v4894, %v5120
      %v5226 = vadd.f32 %v4895, %v5185
      %v5227 = vadd.f32 %v4896, %v5123
      %v5228 = vadd.f32 %v4897, %v5188
      %v5229 = vadd.f32 %v4898, %v5126
      %v5230 = vadd.f32 %v4899, %v5191
      %v5231 = vadd.f32 %v4900, %v5129
      %v5232 = vadd.f32 %v4901, %v5194
      %v5233 = vadd.f32 %v4902, %v5132
      %v5234 = vadd.f32 %v4903, %v5197
      %v5235 = vadd.f32 %v4904, %v5135
      %v5236 = vadd.f32 %v4905, %v5200
      %v5237 = vadd.f32 %v4906, %v5138
      %v5238 = vadd.f32 %v4907, %v5203
      %v5239 = vadd.f32 %v4908, %v5141
      %v5240 = vadd.f32 %v4909, %v5206
      %v5241 = vadd.f32 %v4910, %v5144
      %v5242 = vadd.f32 %v4911, %v5209
      %5243 = vst [vmem:[#allocation4] sm:$0xff] %v5211
      %5244 = vst [vmem:[#allocation4 + $0x8] sm:$0xff] %v5212
      %5245 = vst [vmem:[#allocation4 + $0x10] sm:$0xff] %v5213
      %5246 = vst [vmem:[#allocation4 + $0x18] sm:$0xff] %v5214
      %5247 = vst [vmem:[#allocation4 + $0x20] sm:$0xff] %v5215
      %5248 = vst [vmem:[#allocation4 + $0x28] sm:$0xff] %v5216
      %5249 = vst [vmem:[#allocation4 + $0x30] sm:$0xff] %v5217
      %5250 = vst [vmem:[#allocation4 + $0x38] sm:$0xff] %v5218
      %5251 = vst [vmem:[#allocation4 + $0x40] sm:$0xff] %v5219
      %5252 = vst [vmem:[#allocation4 + $0x48] sm:$0xff] %v5220
      %5253 = vst [vmem:[#allocation4 + $0x50] sm:$0xff] %v5221
      %5254 = vst [vmem:[#allocation4 + $0x58] sm:$0xff] %v5222
      %5255 = vst [vmem:[#allocation4 + $0x60] sm:$0xff] %v5223
      %5256 = vst [vmem:[#allocation4 + $0x68] sm:$0xff] %v5224
      %5257 = vst [vmem:[#allocation4 + $0x70] sm:$0xff] %v5225
      %5258 = vst [vmem:[#allocation4 + $0x78] sm:$0xff] %v5226
      %5259 = vst [vmem:[#allocation4 + $0x80] sm:$0xff] %v5227
      %5260 = vst [vmem:[#allocation4 + $0x88] sm:$0xff] %v5228
      %5261 = vst [vmem:[#allocation4 + $0x90] sm:$0xff] %v5229
      %5262 = vst [vmem:[#allocation4 + $0x98] sm:$0xff] %v5230
      %5263 = vst [vmem:[#allocation4 + $0xa0] sm:$0xff] %v5231
      %5264 = vst [vmem:[#allocation4 + $0xa8] sm:$0xff] %v5232
      %5265 = vst [vmem:[#allocation4 + $0xb0] sm:$0xff] %v5233
      %5266 = vst [vmem:[#allocation4 + $0xb8] sm:$0xff] %v5234
      %5267 = vst [vmem:[#allocation4 + $0xc0] sm:$0xff] %v5235
      %5268 = vst [vmem:[#allocation4 + $0xc8] sm:$0xff] %v5236
      %5269 = vst [vmem:[#allocation4 + $0xd0] sm:$0xff] %v5237
      %5270 = vst [vmem:[#allocation4 + $0xd8] sm:$0xff] %v5238
      %5271 = vst [vmem:[#allocation4 + $0xe0] sm:$0xff] %v5239
      %5272 = vst [vmem:[#allocation4 + $0xe8] sm:$0xff] %v5240
      %5273 = vst [vmem:[#allocation4 + $0xf0] sm:$0xff] %v5241
      %5274 = vst [vmem:[#allocation4 + $0xf8] sm:$0xff] %v5242
      %v5275 = vld [vmem:[#allocation3] sm:$0xff]
      %v5276 = vld [vmem:[#allocation3 + $0x8] sm:$0xff]
      %v5277 = vld [vmem:[#allocation3 + $0x10] sm:$0xff]
      %v5278 = vld [vmem:[#allocation3 + $0x18] sm:$0xff]
      %v5279 = vld [vmem:[#allocation3 + $0x20] sm:$0xff]
      %v5280 = vld [vmem:[#allocation3 + $0x28] sm:$0xff]
      %v5281 = vld [vmem:[#allocation3 + $0x30] sm:$0xff]
      %v5282 = vld [vmem:[#allocation3 + $0x38] sm:$0xff]
      %v5283 = vld [vmem:[#allocation3 + $0x40] sm:$0xff]
      %v5284 = vld [vmem:[#allocation3 + $0x48] sm:$0xff]
      %v5285 = vld [vmem:[#allocation3 + $0x50] sm:$0xff]
      %v5286 = vld [vmem:[#allocation3 + $0x58] sm:$0xff]
      %v5287 = vld [vmem:[#allocation3 + $0x60] sm:$0xff]
      %v5288 = vld [vmem:[#allocation3 + $0x68] sm:$0xff]
      %v5289 = vld [vmem:[#allocation3 + $0x70] sm:$0xff]
      %v5290 = vld [vmem:[#allocation3 + $0x78] sm:$0xff]
      %v5291 = vld [vmem:[#allocation3 + $0x80] sm:$0xff]
      %v5292 = vld [vmem:[#allocation3 + $0x88] sm:$0xff]
      %v5293 = vld [vmem:[#allocation3 + $0x90] sm:$0xff]
      %v5294 = vld [vmem:[#allocation3 + $0x98] sm:$0xff]
      %v5295 = vld [vmem:[#allocation3 + $0xa0] sm:$0xff]
      %v5296 = vld [vmem:[#allocation3 + $0xa8] sm:$0xff]
      %v5297 = vld [vmem:[#allocation3 + $0xb0] sm:$0xff]
      %v5298 = vld [vmem:[#allocation3 + $0xb8] sm:$0xff]
      %5323 = vrot.lane.b32.xlu0 %v5275, 94
      %v5324 = vpop.permute.xlu0 %5323
      %5325 = vrot.lane.b32.xlu0 %v5276, 94
      %v5326 = vpop.permute.xlu0 %5325
      %5327 = vrot.lane.b32.xlu0 %v5277, 94
      %v5328 = vpop.permute.xlu0 %5327
      %5329 = vrot.lane.b32.xlu0 %v5278, 94
      %v5330 = vpop.permute.xlu0 %5329
      %5331 = vrot.lane.b32.xlu0 %v5279, 94
      %v5332 = vpop.permute.xlu0 %5331
      %5333 = vrot.lane.b32.xlu0 %v5280, 94
      %v5334 = vpop.permute.xlu0 %5333
      %5335 = vrot.lane.b32.xlu0 %v5281, 94
      %v5336 = vpop.permute.xlu0 %5335
      %5337 = vrot.lane.b32.xlu0 %v5282, 94
      %v5338 = vpop.permute.xlu0 %5337
      %5339 = vrot.lane.b32.xlu0 %v5283, 94
      %v5340 = vpop.permute.xlu0 %5339
      %5341 = vrot.lane.b32.xlu0 %v5284, 94
      %v5342 = vpop.permute.xlu0 %5341
      %5343 = vrot.lane.b32.xlu0 %v5285, 94
      %v5344 = vpop.permute.xlu0 %5343
      %5345 = vrot.lane.b32.xlu0 %v5286, 94
      %v5346 = vpop.permute.xlu0 %5345
      %5347 = vrot.lane.b32.xlu0 %v5287, 94
      %v5348 = vpop.permute.xlu0 %5347
      %5349 = vrot.lane.b32.xlu0 %v5288, 94
      %v5350 = vpop.permute.xlu0 %5349
      %5351 = vrot.lane.b32.xlu0 %v5289, 94
      %v5352 = vpop.permute.xlu0 %5351
      %5353 = vrot.lane.b32.xlu0 %v5290, 94
      %v5354 = vpop.permute.xlu0 %5353
      %5355 = vrot.lane.b32.xlu0 %v5291, 94
      %v5356 = vpop.permute.xlu0 %5355
      %5357 = vrot.lane.b32.xlu0 %v5292, 94
      %v5358 = vpop.permute.xlu0 %5357
      %5359 = vrot.lane.b32.xlu0 %v5293, 94
      %v5360 = vpop.permute.xlu0 %5359
      %5361 = vrot.lane.b32.xlu0 %v5294, 94
      %v5362 = vpop.permute.xlu0 %5361
      %5363 = vrot.lane.b32.xlu0 %v5295, 94
      %v5364 = vpop.permute.xlu0 %5363
      %5365 = vrot.lane.b32.xlu0 %v5296, 94
      %v5366 = vpop.permute.xlu0 %5365
      %5367 = vrot.lane.b32.xlu0 %v5297, 94
      %v5368 = vpop.permute.xlu0 %5367
      %5369 = vrot.lane.b32.xlu0 %v5298, 94
      %v5370 = vpop.permute.xlu0 %5369
      %v5371 = vsel %vm1569, %v5324, %v5326
      %v5372 = vsel %vm1569, %v5326, %v5328
      %v5373 = vsel %vm1569, %v5330, %v5332
      %v5374 = vsel %vm1569, %v5332, %v5334
      %v5375 = vsel %vm1569, %v5336, %v5338
      %v5376 = vsel %vm1569, %v5338, %v5340
      %v5377 = vsel %vm1569, %v5342, %v5344
      %v5378 = vsel %vm1569, %v5344, %v5346
      %v5379 = vsel %vm1569, %v5348, %v5350
      %v5380 = vsel %vm1569, %v5350, %v5352
      %v5381 = vsel %vm1569, %v5354, %v5356
      %v5382 = vsel %vm1569, %v5356, %v5358
      %v5383 = vsel %vm1569, %v5360, %v5362
      %v5384 = vsel %vm1569, %v5362, %v5364
      %v5385 = vsel %vm1569, %v5366, %v5368
      %v5386 = vsel %vm1569, %v5368, %v5370
      %v5403 = vsel %vm605, %v5371, 0.0
      %v5404 = vsel %vm606, %v5372, 0.0
      %v5405 = vsel %vm605, %v5373, 0.0
      %v5406 = vsel %vm606, %v5374, 0.0
      %v5407 = vsel %vm605, %v5375, 0.0
      %v5408 = vsel %vm606, %v5376, 0.0
      %v5409 = vsel %vm605, %v5377, 0.0
      %v5410 = vsel %vm606, %v5378, 0.0
      %v5411 = vsel %vm605, %v5379, 0.0
      %v5412 = vsel %vm606, %v5380, 0.0
      %v5413 = vsel %vm605, %v5381, 0.0
      %v5414 = vsel %vm606, %v5382, 0.0
      %v5415 = vsel %vm605, %v5383, 0.0
      %v5416 = vsel %vm606, %v5384, 0.0
      %v5417 = vsel %vm605, %v5385, 0.0
      %v5418 = vsel %vm606, %v5386, 0.0
      %v5419 = vld [vmem:[#allocation4] sm:$0xff]
      %v5420 = vld [vmem:[#allocation4 + $0x8] sm:$0xff]
      %v5421 = vld [vmem:[#allocation4 + $0x10] sm:$0xff]
      %v5422 = vld [vmem:[#allocation4 + $0x18] sm:$0xff]
      %v5423 = vld [vmem:[#allocation4 + $0x20] sm:$0xff]
      %v5424 = vld [vmem:[#allocation4 + $0x28] sm:$0xff]
      %v5425 = vld [vmem:[#allocation4 + $0x30] sm:$0xff]
      %v5426 = vld [vmem:[#allocation4 + $0x38] sm:$0xff]
      %v5427 = vld [vmem:[#allocation4 + $0x40] sm:$0xff]
      %v5428 = vld [vmem:[#allocation4 + $0x48] sm:$0xff]
      %v5429 = vld [vmem:[#allocation4 + $0x50] sm:$0xff]
      %v5430 = vld [vmem:[#allocation4 + $0x58] sm:$0xff]
      %v5431 = vld [vmem:[#allocation4 + $0x60] sm:$0xff]
      %v5432 = vld [vmem:[#allocation4 + $0x68] sm:$0xff]
      %v5433 = vld [vmem:[#allocation4 + $0x70] sm:$0xff]
      %v5434 = vld [vmem:[#allocation4 + $0x78] sm:$0xff]
      %v5435 = vld [vmem:[#allocation4 + $0x80] sm:$0xff]
      %v5436 = vld [vmem:[#allocation4 + $0x88] sm:$0xff]
      %v5437 = vld [vmem:[#allocation4 + $0x90] sm:$0xff]
      %v5438 = vld [vmem:[#allocation4 + $0x98] sm:$0xff]
      %v5439 = vld [vmem:[#allocation4 + $0xa0] sm:$0xff]
      %v5440 = vld [vmem:[#allocation4 + $0xa8] sm:$0xff]
      %v5441 = vld [vmem:[#allocation4 + $0xb0] sm:$0xff]
      %v5442 = vld [vmem:[#allocation4 + $0xb8] sm:$0xff]
      %v5443 = vld [vmem:[#allocation4 + $0xc0] sm:$0xff]
      %v5444 = vld [vmem:[#allocation4 + $0xc8] sm:$0xff]
      %v5445 = vld [vmem:[#allocation4 + $0xd0] sm:$0xff]
      %v5446 = vld [vmem:[#allocation4 + $0xd8] sm:$0xff]
      %v5447 = vld [vmem:[#allocation4 + $0xe0] sm:$0xff]
      %v5448 = vld [vmem:[#allocation4 + $0xe8] sm:$0xff]
      %v5449 = vld [vmem:[#allocation4 + $0xf0] sm:$0xff]
      %v5450 = vld [vmem:[#allocation4 + $0xf8] sm:$0xff]
      %s5451 = scalar_lea.vmem %s3, 1024
      %v5452 = vld [vmem:[%s5451] sm:$0xff]
      %v5453 = vld [vmem:[%s5451 + $0x8] sm:$0xff]
      %v5454 = vld [vmem:[%s5451 + $0x10] sm:$0xff]
      %v5455 = vld [vmem:[%s5451 + $0x18] sm:$0xff]
      %v5456 = vld [vmem:[%s5451 + $0x20] sm:$0xff]
      %v5457 = vld [vmem:[%s5451 + $0x28] sm:$0xff]
      %v5458 = vld [vmem:[%s5451 + $0x30] sm:$0xff]
      %v5459 = vld [vmem:[%s5451 + $0x38] sm:$0xff]
      %v5460 = vld [vmem:[%s5451 + $0x40] sm:$0xff]
      %v5461 = vld [vmem:[%s5451 + $0x48] sm:$0xff]
      %v5462 = vld [vmem:[%s5451 + $0x50] sm:$0xff]
      %v5463 = vld [vmem:[%s5451 + $0x58] sm:$0xff]
      %v5464 = vld [vmem:[%s5451 + $0x60] sm:$0xff]
      %v5465 = vld [vmem:[%s5451 + $0x68] sm:$0xff]
      %v5466 = vld [vmem:[%s5451 + $0x70] sm:$0xff]
      %v5467 = vld [vmem:[%s5451 + $0x78] sm:$0xff]
      %v5469 = vsel %vm2035, %v5452, 0
      %v5472 = vsel %vm2035, %v5453, 0
      %v5475 = vsel %vm2035, %v5454, 0
      %v5478 = vsel %vm2035, %v5455, 0
      %v5481 = vsel %vm2035, %v5456, 0
      %v5484 = vsel %vm2035, %v5457, 0
      %v5487 = vsel %vm2035, %v5458, 0
      %v5490 = vsel %vm2035, %v5459, 0
      %v5493 = vsel %vm2035, %v5460, 0
      %v5496 = vsel %vm2035, %v5461, 0
      %v5499 = vsel %vm2035, %v5462, 0
      %v5502 = vsel %vm2035, %v5463, 0
      %v5505 = vsel %vm2035, %v5464, 0
      %v5508 = vsel %vm2035, %v5465, 0
      %v5511 = vsel %vm2035, %v5466, 0
      %v5514 = vsel %vm2035, %v5467, 0
      %5516 = vmatpush.msra.mxu0 0.0
      %5517 = vmatpush.msra.mxu0 0.0
      %5518 = vmatpush.msra.mxu0 0.0
      %5519 = vmatpush.msra.mxu0 0.0
      %5520 = vmatpush.msra.mxu0 0.0
      %5521 = vmatpush.msra.mxu0 0.0
      %5522 = vmatpush.msra.mxu0 0.0
      %5523 = vmatpush.msra.mxu0 0.0
      %5524 = vmatpush.msra.mxu0 %v5417
      %5525 = vmatpush.msra.mxu0 %v5415
      %5526 = vmatpush.msra.mxu0 %v5413
      %5527 = vmatpush.msra.mxu0 %v5411
      %5528 = vmatpush.msra.mxu0 %v5409
      %5529 = vmatpush.msra.mxu0 %v5407
      %5530 = vmatpush.msra.mxu0 %v5405
      %5531 = vmatpush.msra.mxu0 %v5403
      %5532 = vmatmul.f32.gmra.mxu0 %v5469
      %v5533 = vpop.f32.mrf.mxu0
      %v5534 = vadd.f32 0.0, %v5533
      %5535 = vmatmul.f32.gmra.mxu0 %v5472
      %v5536 = vpop.f32.mrf.mxu0
      %v5537 = vadd.f32 0.0, %v5536
      %5538 = vmatmul.f32.gmra.mxu0 %v5475
      %v5539 = vpop.f32.mrf.mxu0
      %v5540 = vadd.f32 0.0, %v5539
      %5541 = vmatmul.f32.gmra.mxu0 %v5478
      %v5542 = vpop.f32.mrf.mxu0
      %v5543 = vadd.f32 0.0, %v5542
      %5544 = vmatmul.f32.gmra.mxu0 %v5481
      %v5545 = vpop.f32.mrf.mxu0
      %v5546 = vadd.f32 0.0, %v5545
      %5547 = vmatmul.f32.gmra.mxu0 %v5484
      %v5548 = vpop.f32.mrf.mxu0
      %v5549 = vadd.f32 0.0, %v5548
      %5550 = vmatmul.f32.gmra.mxu0 %v5487
      %v5551 = vpop.f32.mrf.mxu0
      %v5552 = vadd.f32 0.0, %v5551
      %5553 = vmatmul.f32.gmra.mxu0 %v5490
      %v5554 = vpop.f32.mrf.mxu0
      %v5555 = vadd.f32 0.0, %v5554
      %5556 = vmatmul.f32.gmra.mxu0 %v5493
      %v5557 = vpop.f32.mrf.mxu0
      %v5558 = vadd.f32 0.0, %v5557
      %5559 = vmatmul.f32.gmra.mxu0 %v5496
      %v5560 = vpop.f32.mrf.mxu0
      %v5561 = vadd.f32 0.0, %v5560
      %5562 = vmatmul.f32.gmra.mxu0 %v5499
      %v5563 = vpop.f32.mrf.mxu0
      %v5564 = vadd.f32 0.0, %v5563
      %5565 = vmatmul.f32.gmra.mxu0 %v5502
      %v5566 = vpop.f32.mrf.mxu0
      %v5567 = vadd.f32 0.0, %v5566
      %5568 = vmatmul.f32.gmra.mxu0 %v5505
      %v5569 = vpop.f32.mrf.mxu0
      %v5570 = vadd.f32 0.0, %v5569
      %5571 = vmatmul.f32.gmra.mxu0 %v5508
      %v5572 = vpop.f32.mrf.mxu0
      %v5573 = vadd.f32 0.0, %v5572
      %5574 = vmatmul.f32.gmra.mxu0 %v5511
      %v5575 = vpop.f32.mrf.mxu0
      %v5576 = vadd.f32 0.0, %v5575
      %5577 = vmatmul.f32.gmra.mxu0 %v5514
      %v5578 = vpop.f32.mrf.mxu0
      %v5579 = vadd.f32 0.0, %v5578
      %5580 = vdwg.mxu0
      %5581 = vmatpush.msra.mxu0 0.0
      %5582 = vmatpush.msra.mxu0 0.0
      %5583 = vmatpush.msra.mxu0 0.0
      %5584 = vmatpush.msra.mxu0 0.0
      %5585 = vmatpush.msra.mxu0 0.0
      %5586 = vmatpush.msra.mxu0 0.0
      %5587 = vmatpush.msra.mxu0 0.0
      %5588 = vmatpush.msra.mxu0 0.0
      %5589 = vmatpush.msra.mxu0 %v5418
      %5590 = vmatpush.msra.mxu0 %v5416
      %5591 = vmatpush.msra.mxu0 %v5414
      %5592 = vmatpush.msra.mxu0 %v5412
      %5593 = vmatpush.msra.mxu0 %v5410
      %5594 = vmatpush.msra.mxu0 %v5408
      %5595 = vmatpush.msra.mxu0 %v5406
      %5596 = vmatpush.msra.mxu0 %v5404
      %5597 = vmatmul.f32.gmra.mxu0 %v5469
      %v5598 = vpop.f32.mrf.mxu0
      %v5599 = vadd.f32 0.0, %v5598
      %5600 = vmatmul.f32.gmra.mxu0 %v5472
      %v5601 = vpop.f32.mrf.mxu0
      %v5602 = vadd.f32 0.0, %v5601
      %5603 = vmatmul.f32.gmra.mxu0 %v5475
      %v5604 = vpop.f32.mrf.mxu0
      %v5605 = vadd.f32 0.0, %v5604
      %5606 = vmatmul.f32.gmra.mxu0 %v5478
      %v5607 = vpop.f32.mrf.mxu0
      %v5608 = vadd.f32 0.0, %v5607
      %5609 = vmatmul.f32.gmra.mxu0 %v5481
      %v5610 = vpop.f32.mrf.mxu0
      %v5611 = vadd.f32 0.0, %v5610
      %5612 = vmatmul.f32.gmra.mxu0 %v5484
      %v5613 = vpop.f32.mrf.mxu0
      %v5614 = vadd.f32 0.0, %v5613
      %5615 = vmatmul.f32.gmra.mxu0 %v5487
      %v5616 = vpop.f32.mrf.mxu0
      %v5617 = vadd.f32 0.0, %v5616
      %5618 = vmatmul.f32.gmra.mxu0 %v5490
      %v5619 = vpop.f32.mrf.mxu0
      %v5620 = vadd.f32 0.0, %v5619
      %5621 = vmatmul.f32.gmra.mxu0 %v5493
      %v5622 = vpop.f32.mrf.mxu0
      %v5623 = vadd.f32 0.0, %v5622
      %5624 = vmatmul.f32.gmra.mxu0 %v5496
      %v5625 = vpop.f32.mrf.mxu0
      %v5626 = vadd.f32 0.0, %v5625
      %5627 = vmatmul.f32.gmra.mxu0 %v5499
      %v5628 = vpop.f32.mrf.mxu0
      %v5629 = vadd.f32 0.0, %v5628
      %5630 = vmatmul.f32.gmra.mxu0 %v5502
      %v5631 = vpop.f32.mrf.mxu0
      %v5632 = vadd.f32 0.0, %v5631
      %5633 = vmatmul.f32.gmra.mxu0 %v5505
      %v5634 = vpop.f32.mrf.mxu0
      %v5635 = vadd.f32 0.0, %v5634
      %5636 = vmatmul.f32.gmra.mxu0 %v5508
      %v5637 = vpop.f32.mrf.mxu0
      %v5638 = vadd.f32 0.0, %v5637
      %5639 = vmatmul.f32.gmra.mxu0 %v5511
      %v5640 = vpop.f32.mrf.mxu0
      %v5641 = vadd.f32 0.0, %v5640
      %5642 = vmatmul.f32.gmra.mxu0 %v5514
      %v5643 = vpop.f32.mrf.mxu0
      %v5644 = vadd.f32 0.0, %v5643
      %5645 = vdwg.mxu0
      %v5646 = vadd.f32 %v5419, %v5534
      %v5647 = vadd.f32 %v5420, %v5599
      %v5648 = vadd.f32 %v5421, %v5537
      %v5649 = vadd.f32 %v5422, %v5602
      %v5650 = vadd.f32 %v5423, %v5540
      %v5651 = vadd.f32 %v5424, %v5605
      %v5652 = vadd.f32 %v5425, %v5543
      %v5653 = vadd.f32 %v5426, %v5608
      %v5654 = vadd.f32 %v5427, %v5546
      %v5655 = vadd.f32 %v5428, %v5611
      %v5656 = vadd.f32 %v5429, %v5549
      %v5657 = vadd.f32 %v5430, %v5614
      %v5658 = vadd.f32 %v5431, %v5552
      %v5659 = vadd.f32 %v5432, %v5617
      %v5660 = vadd.f32 %v5433, %v5555
      %v5661 = vadd.f32 %v5434, %v5620
      %v5662 = vadd.f32 %v5435, %v5558
      %v5663 = vadd.f32 %v5436, %v5623
      %v5664 = vadd.f32 %v5437, %v5561
      %v5665 = vadd.f32 %v5438, %v5626
      %v5666 = vadd.f32 %v5439, %v5564
      %v5667 = vadd.f32 %v5440, %v5629
      %v5668 = vadd.f32 %v5441, %v5567
      %v5669 = vadd.f32 %v5442, %v5632
      %v5670 = vadd.f32 %v5443, %v5570
      %v5671 = vadd.f32 %v5444, %v5635
      %v5672 = vadd.f32 %v5445, %v5573
      %v5673 = vadd.f32 %v5446, %v5638
      %v5674 = vadd.f32 %v5447, %v5576
      %v5675 = vadd.f32 %v5448, %v5641
      %v5676 = vadd.f32 %v5449, %v5579
      %v5677 = vadd.f32 %v5450, %v5644
      %5678 = vst [vmem:[#allocation4] sm:$0xff] %v5646
      %5679 = vst [vmem:[#allocation4 + $0x8] sm:$0xff] %v5647
      %5680 = vst [vmem:[#allocation4 + $0x10] sm:$0xff] %v5648
      %5681 = vst [vmem:[#allocation4 + $0x18] sm:$0xff] %v5649
      %5682 = vst [vmem:[#allocation4 + $0x20] sm:$0xff] %v5650
      %5683 = vst [vmem:[#allocation4 + $0x28] sm:$0xff] %v5651
      %5684 = vst [vmem:[#allocation4 + $0x30] sm:$0xff] %v5652
      %5685 = vst [vmem:[#allocation4 + $0x38] sm:$0xff] %v5653
      %5686 = vst [vmem:[#allocation4 + $0x40] sm:$0xff] %v5654
      %5687 = vst [vmem:[#allocation4 + $0x48] sm:$0xff] %v5655
      %5688 = vst [vmem:[#allocation4 + $0x50] sm:$0xff] %v5656
      %5689 = vst [vmem:[#allocation4 + $0x58] sm:$0xff] %v5657
      %5690 = vst [vmem:[#allocation4 + $0x60] sm:$0xff] %v5658
      %5691 = vst [vmem:[#allocation4 + $0x68] sm:$0xff] %v5659
      %5692 = vst [vmem:[#allocation4 + $0x70] sm:$0xff] %v5660
      %5693 = vst [vmem:[#allocation4 + $0x78] sm:$0xff] %v5661
      %5694 = vst [vmem:[#allocation4 + $0x80] sm:$0xff] %v5662
      %5695 = vst [vmem:[#allocation4 + $0x88] sm:$0xff] %v5663
      %5696 = vst [vmem:[#allocation4 + $0x90] sm:$0xff] %v5664
      %5697 = vst [vmem:[#allocation4 + $0x98] sm:$0xff] %v5665
      %5698 = vst [vmem:[#allocation4 + $0xa0] sm:$0xff] %v5666
      %5699 = vst [vmem:[#allocation4 + $0xa8] sm:$0xff] %v5667
      %5700 = vst [vmem:[#allocation4 + $0xb0] sm:$0xff] %v5668
      %5701 = vst [vmem:[#allocation4 + $0xb8] sm:$0xff] %v5669
      %5702 = vst [vmem:[#allocation4 + $0xc0] sm:$0xff] %v5670
      %5703 = vst [vmem:[#allocation4 + $0xc8] sm:$0xff] %v5671
      %5704 = vst [vmem:[#allocation4 + $0xd0] sm:$0xff] %v5672
      %5705 = vst [vmem:[#allocation4 + $0xd8] sm:$0xff] %v5673
      %5706 = vst [vmem:[#allocation4 + $0xe0] sm:$0xff] %v5674
      %5707 = vst [vmem:[#allocation4 + $0xe8] sm:$0xff] %v5675
      %5708 = vst [vmem:[#allocation4 + $0xf0] sm:$0xff] %v5676
      %5709 = vst [vmem:[#allocation4 + $0xf8] sm:$0xff] %v5677
      %v5710 = vld [vmem:[#allocation4] sm:$0xff]
      %v5711 = vld [vmem:[#allocation4 + $0x8] sm:$0xff]
      %v5712 = vld [vmem:[#allocation4 + $0x10] sm:$0xff]
      %v5713 = vld [vmem:[#allocation4 + $0x18] sm:$0xff]
      %v5714 = vld [vmem:[#allocation4 + $0x20] sm:$0xff]
      %v5715 = vld [vmem:[#allocation4 + $0x28] sm:$0xff]
      %v5716 = vld [vmem:[#allocation4 + $0x30] sm:$0xff]
      %v5717 = vld [vmem:[#allocation4 + $0x38] sm:$0xff]
      %v5718 = vld [vmem:[#allocation4 + $0x40] sm:$0xff]
      %v5719 = vld [vmem:[#allocation4 + $0x48] sm:$0xff]
      %v5720 = vld [vmem:[#allocation4 + $0x50] sm:$0xff]
      %v5721 = vld [vmem:[#allocation4 + $0x58] sm:$0xff]
      %v5722 = vld [vmem:[#allocation4 + $0x60] sm:$0xff]
      %v5723 = vld [vmem:[#allocation4 + $0x68] sm:$0xff]
      %v5724 = vld [vmem:[#allocation4 + $0x70] sm:$0xff]
      %v5725 = vld [vmem:[#allocation4 + $0x78] sm:$0xff]
      %v5726 = vld [vmem:[#allocation4 + $0x80] sm:$0xff]
      %v5727 = vld [vmem:[#allocation4 + $0x88] sm:$0xff]
      %v5728 = vld [vmem:[#allocation4 + $0x90] sm:$0xff]
      %v5729 = vld [vmem:[#allocation4 + $0x98] sm:$0xff]
      %v5730 = vld [vmem:[#allocation4 + $0xa0] sm:$0xff]
      %v5731 = vld [vmem:[#allocation4 + $0xa8] sm:$0xff]
      %v5732 = vld [vmem:[#allocation4 + $0xb0] sm:$0xff]
      %v5733 = vld [vmem:[#allocation4 + $0xb8] sm:$0xff]
      %v5734 = vld [vmem:[#allocation4 + $0xc0] sm:$0xff]
      %v5735 = vld [vmem:[#allocation4 + $0xc8] sm:$0xff]
      %v5736 = vld [vmem:[#allocation4 + $0xd0] sm:$0xff]
      %v5737 = vld [vmem:[#allocation4 + $0xd8] sm:$0xff]
      %v5738 = vld [vmem:[#allocation4 + $0xe0] sm:$0xff]
      %v5739 = vld [vmem:[#allocation4 + $0xe8] sm:$0xff]
      %v5740 = vld [vmem:[#allocation4 + $0xf0] sm:$0xff]
      %v5741 = vld [vmem:[#allocation4 + $0xf8] sm:$0xff]
      %v5742 = vld [vmem:[%s4] sm:$0xff]
      %v5743 = vld [vmem:[%s4 + $0x8] sm:$0xff]
      %v5744 = vld [vmem:[%s4 + $0x10] sm:$0xff]
      %v5745 = vld [vmem:[%s4 + $0x18] sm:$0xff]
      %v5746 = vld [vmem:[%s4 + $0x20] sm:$0xff]
      %v5747 = vld [vmem:[%s4 + $0x28] sm:$0xff]
      %v5748 = vld [vmem:[%s4 + $0x30] sm:$0xff]
      %v5749 = vld [vmem:[%s4 + $0x38] sm:$0xff]
      %v5750 = vld [vmem:[%s4 + $0x40] sm:$0xff]
      %v5751 = vld [vmem:[%s4 + $0x48] sm:$0xff]
      %v5752 = vld [vmem:[%s4 + $0x50] sm:$0xff]
      %v5753 = vld [vmem:[%s4 + $0x58] sm:$0xff]
      %v5754 = vld [vmem:[%s4 + $0x60] sm:$0xff]
      %v5755 = vld [vmem:[%s4 + $0x68] sm:$0xff]
      %v5756 = vld [vmem:[%s4 + $0x70] sm:$0xff]
      %v5757 = vld [vmem:[%s4 + $0x78] sm:$0xff]
      %5759 = vset.pattern.permute.xlu0 0
      %5760 = vperm.xlu0 %5759, %v5742
      %v5761 = vpop.permute.xlu0 %5760
      %5764 = vset.pattern.permute.xlu0 0
      %5765 = vperm.xlu0 %5764, %v5743
      %v5766 = vpop.permute.xlu0 %5765
      %5769 = vset.pattern.permute.xlu0 0
      %5770 = vperm.xlu0 %5769, %v5744
      %v5771 = vpop.permute.xlu0 %5770
      %5774 = vset.pattern.permute.xlu0 0
      %5775 = vperm.xlu0 %5774, %v5745
      %v5776 = vpop.permute.xlu0 %5775
      %5779 = vset.pattern.permute.xlu0 0
      %5780 = vperm.xlu0 %5779, %v5746
      %v5781 = vpop.permute.xlu0 %5780
      %5784 = vset.pattern.permute.xlu0 0
      %5785 = vperm.xlu0 %5784, %v5747
      %v5786 = vpop.permute.xlu0 %5785
      %5789 = vset.pattern.permute.xlu0 0
      %5790 = vperm.xlu0 %5789, %v5748
      %v5791 = vpop.permute.xlu0 %5790
      %5794 = vset.pattern.permute.xlu0 0
      %5795 = vperm.xlu0 %5794, %v5749
      %v5796 = vpop.permute.xlu0 %5795
      %5799 = vset.pattern.permute.xlu0 0
      %5800 = vperm.xlu0 %5799, %v5750
      %v5801 = vpop.permute.xlu0 %5800
      %5804 = vset.pattern.permute.xlu0 0
      %5805 = vperm.xlu0 %5804, %v5751
      %v5806 = vpop.permute.xlu0 %5805
      %5809 = vset.pattern.permute.xlu0 0
      %5810 = vperm.xlu0 %5809, %v5752
      %v5811 = vpop.permute.xlu0 %5810
      %5814 = vset.pattern.permute.xlu0 0
      %5815 = vperm.xlu0 %5814, %v5753
      %v5816 = vpop.permute.xlu0 %5815
      %5819 = vset.pattern.permute.xlu0 0
      %5820 = vperm.xlu0 %5819, %v5754
      %v5821 = vpop.permute.xlu0 %5820
      %5824 = vset.pattern.permute.xlu0 0
      %5825 = vperm.xlu0 %5824, %v5755
      %v5826 = vpop.permute.xlu0 %5825
      %5829 = vset.pattern.permute.xlu0 0
      %5830 = vperm.xlu0 %5829, %v5756
      %v5831 = vpop.permute.xlu0 %5830
      %5834 = vset.pattern.permute.xlu0 0
      %5835 = vperm.xlu0 %5834, %v5757
      %v5836 = vpop.permute.xlu0 %5835
      %v5838 = vadd.f32 %v5710, %v5761
      %v5839 = vadd.f32 %v5711, %v5761
      %v5840 = vadd.f32 %v5712, %v5766
      %v5841 = vadd.f32 %v5713, %v5766
      %v5842 = vadd.f32 %v5714, %v5771
      %v5843 = vadd.f32 %v5715, %v5771
      %v5844 = vadd.f32 %v5716, %v5776
      %v5845 = vadd.f32 %v5717, %v5776
      %v5846 = vadd.f32 %v5718, %v5781
      %v5847 = vadd.f32 %v5719, %v5781
      %v5848 = vadd.f32 %v5720, %v5786
      %v5849 = vadd.f32 %v5721, %v5786
      %v5850 = vadd.f32 %v5722, %v5791
      %v5851 = vadd.f32 %v5723, %v5791
      %v5852 = vadd.f32 %v5724, %v5796
      %v5853 = vadd.f32 %v5725, %v5796
      %v5854 = vadd.f32 %v5726, %v5801
      %v5855 = vadd.f32 %v5727, %v5801
      %v5856 = vadd.f32 %v5728, %v5806
      %v5857 = vadd.f32 %v5729, %v5806
      %v5858 = vadd.f32 %v5730, %v5811
      %v5859 = vadd.f32 %v5731, %v5811
      %v5860 = vadd.f32 %v5732, %v5816
      %v5861 = vadd.f32 %v5733, %v5816
      %v5862 = vadd.f32 %v5734, %v5821
      %v5863 = vadd.f32 %v5735, %v5821
      %v5864 = vadd.f32 %v5736, %v5826
      %v5865 = vadd.f32 %v5737, %v5826
      %v5866 = vadd.f32 %v5738, %v5831
      %v5867 = vadd.f32 %v5739, %v5831
      %v5868 = vadd.f32 %v5740, %v5836
      %v5869 = vadd.f32 %v5741, %v5836
      %v5870 = vmax.f32 %v5838, 0.0
      %v5871 = vmax.f32 %v5839, 0.0
      %v5872 = vmax.f32 %v5840, 0.0
      %v5873 = vmax.f32 %v5841, 0.0
      %v5874 = vmax.f32 %v5842, 0.0
      %v5875 = vmax.f32 %v5843, 0.0
      %v5876 = vmax.f32 %v5844, 0.0
      %v5877 = vmax.f32 %v5845, 0.0
      %v5878 = vmax.f32 %v5846, 0.0
      %v5879 = vmax.f32 %v5847, 0.0
      %v5880 = vmax.f32 %v5848, 0.0
      %v5881 = vmax.f32 %v5849, 0.0
      %v5882 = vmax.f32 %v5850, 0.0
      %v5883 = vmax.f32 %v5851, 0.0
      %v5884 = vmax.f32 %v5852, 0.0
      %v5885 = vmax.f32 %v5853, 0.0
      %v5886 = vmax.f32 %v5854, 0.0
      %v5887 = vmax.f32 %v5855, 0.0
      %v5888 = vmax.f32 %v5856, 0.0
      %v5889 = vmax.f32 %v5857, 0.0
      %v5890 = vmax.f32 %v5858, 0.0
      %v5891 = vmax.f32 %v5859, 0.0
      %v5892 = vmax.f32 %v5860, 0.0
      %v5893 = vmax.f32 %v5861, 0.0
      %v5894 = vmax.f32 %v5862, 0.0
      %v5895 = vmax.f32 %v5863, 0.0
      %v5896 = vmax.f32 %v5864, 0.0
      %v5897 = vmax.f32 %v5865, 0.0
      %v5898 = vmax.f32 %v5866, 0.0
      %v5899 = vmax.f32 %v5867, 0.0
      %v5900 = vmax.f32 %v5868, 0.0
      %v5901 = vmax.f32 %v5869, 0.0
      %v5902 = vld [vmem:[%s5] sm:$0x1]
      %v5903 = vld [vmem:[#allocation5] sm:$0x1]
      %5905 = vset.pattern.permute.xlu0 0
      %5906 = vperm.xlu0 %5905, %v5903
      %v5907 = vpop.permute.xlu0 %5906
      %v5909 = vperm.slane %v5907, 0
      %5910 = vmatpush.msra.mxu0 %v5900
      %5911 = vmatpush.msra.mxu0 %v5898
      %5912 = vmatpush.msra.mxu0 %v5896
      %5913 = vmatpush.msra.mxu0 %v5894
      %5914 = vmatpush.msra.mxu0 %v5892
      %5915 = vmatpush.msra.mxu0 %v5890
      %5916 = vmatpush.msra.mxu0 %v5888
      %5917 = vmatpush.msra.mxu0 %v5886
      %5918 = vmatpush.msra.mxu0 %v5884
      %5919 = vmatpush.msra.mxu0 %v5882
      %5920 = vmatpush.msra.mxu0 %v5880
      %5921 = vmatpush.msra.mxu0 %v5878
      %5922 = vmatpush.msra.mxu0 %v5876
      %5923 = vmatpush.msra.mxu0 %v5874
      %5924 = vmatpush.msra.mxu0 %v5872
      %5925 = vmatpush.msra.mxu0 %v5870
      %5926 = vmatmul.f32.gmra.mxu0 %v5902
      %v5927 = vpop.f32.mrf.mxu0
      %v5928 = vadd.f32 %v5909, %v5927
      %5929 = vdwg.mxu0
      %5930 = vmatpush.msra.mxu0 %v5901
      %5931 = vmatpush.msra.mxu0 %v5899
      %5932 = vmatpush.msra.mxu0 %v5897
      %5933 = vmatpush.msra.mxu0 %v5895
      %5934 = vmatpush.msra.mxu0 %v5893
      %5935 = vmatpush.msra.mxu0 %v5891
      %5936 = vmatpush.msra.mxu0 %v5889
      %5937 = vmatpush.msra.mxu0 %v5887
      %5938 = vmatpush.msra.mxu0 %v5885
      %5939 = vmatpush.msra.mxu0 %v5883
      %5940 = vmatpush.msra.mxu0 %v5881
      %5941 = vmatpush.msra.mxu0 %v5879
      %5942 = vmatpush.msra.mxu0 %v5877
      %5943 = vmatpush.msra.mxu0 %v5875
      %5944 = vmatpush.msra.mxu0 %v5873
      %5945 = vmatpush.msra.mxu0 %v5871
      %5946 = vmatmul.f32.gmra.mxu0 %v5902
      %v5947 = vpop.f32.mrf.mxu0
      %v5948 = vadd.f32 %v5909, %v5947
      %5949 = vdwg.mxu0
      %v5952 = vrot.slane %v5948, 7
      %vm5953 = vcmask 1040384
      %v5954 = vsel %vm5953, %v5928, %v5952
      %v5956 = vlaneseq
      %vm5957 = vcmp.ge.s32.totalorder %v5956, 0
      %vm5958 = vcmp.lt.s32.totalorder %v5956, 256
      %vm5959 = vmand %vm5957, %vm5958
      %5960 = vst.msk [vmem:[%s278] sm:$0x3] %vm5959, %v5954
      %p5961 = scmp.lt.s32.totalorder %s20, 1
      %s5962 = scalar_select %p5961, %s20, 1
      %s5963 = smul.addr %s5962, 2
      %s5964 = scalar_lea.vmem %s7, %s5963
      // Predicated region
      $region49: #{simple_cnn_forward.1} parent=47 // pred_check
        %p5965 = pneg %p190
      $region50: #{simple_cnn_forward.1} parent=47 // pred_check_branch
        %5967 = sbr.rel (%p5965) target = $region52
      $region51: #{simple_cnn_forward.1} parent=47 // pred_region
        _
      $region52: #{simple_cnn_forward.1} parent=47 // pred_fallthru
        _
    $region48: #{simple_cnn_forward.1} parent=5 // pred_fallthru
      _
    %p5968 = scmp.le.s32.totalorder 2, %s15
    // Predicated region
    $region53: #{simple_cnn_forward.1} parent=5 // pred_check
      %p5969 = pneg %p5968
    $region54: #{simple_cnn_forward.1} parent=5 // pred_check_branch
      %5971 = sbr.rel (%p5969) target = $region56
    $region55: #{simple_cnn_forward.1} parent=5 // pred_region
      %s5972 = ssub.s32 %s15, 2
      // Predicated region
      $region57: #{simple_cnn_forward.1} parent=55 // pred_check
        %p5973 = pneg %p196
      $region58: #{simple_cnn_forward.1} parent=55 // pred_check_branch
        %5975 = sbr.rel (%p5973) target = $region60
      $region59: #{simple_cnn_forward.1} parent=55 // pred_region
        %p5976 = scmp.lt.s32.totalorder %s21, 1
        %s5977 = scalar_select %p5976, %s21, 1
        %s5978 = smul.addr %s5977, 2
        %s5979 = scalar_lea.vmem %s7, %s5978
      $region60: #{simple_cnn_forward.1} parent=55 // pred_fallthru
        _
    $region56: #{simple_cnn_forward.1} parent=5 // pred_fallthru
      _
  $region6: #{simple_cnn_forward.1} parent=0 // loop_footer
    %s19 = sadd.s32 1, %s15
  $region7: #{simple_cnn_forward.1} parent=0 // loop_footer_branch
    %14 = sbr.rel target = $region3
  $region8: #{simple_cnn_forward.1} parent=0 // loop_exit
    _

</llo_original>
